<compile_context>
chip_gen: v7x
topology: tpu7x:2x2x1
jax: 0.10.0
libtpu: 0.0.40
codegen_flags: <defaults>
</compile_context>

<pallas_src>
import functools

import jax
import jax.numpy as jnp
from jax.experimental import pallas as pl
from jax.experimental.pallas import tpu as pltpu


# ----------------------------------------------------------------------------
# Tiling policy (generation-aware chunking + batch split).
# ----------------------------------------------------------------------------
def _choose_tiling(T, B, H, V, stream_itemsize, max_chunk, vmem_budget_bytes):
    """Returns (chunk, n_chunks, T_pad, nb).

    chunk  : time steps per grid iteration -- largest value whose double-buffered streamed
             blocks (+ f32 hidden-seq scratch) fit the VMEM budget.  Default budget (24 MiB)
             is safe on v7x (64 MiB VMEM); raise it on v5e/v6e (128 MiB) for longer chunks.
    T_pad  : T rounded up to a multiple of chunk (padded steps are masked in-kernel).
    nb     : batch blocks for the leading "parallel" grid axis (2 when B allows an 8-aligned
             split -> v7x's two TensorCores each run half the batch's recurrence).
    """
    per_t = B * 3 * H * stream_itemsize + B * max(H * stream_itemsize, V * 4)
    scratch_per_t = B * H * 4                     # f32 hidden-seq scratch in the fused layer
    reserve = 4 << 20                             # weights / biases / hidden blocks
    cap = max(1, (vmem_budget_bytes - reserve) // (2 * per_t + scratch_per_t))
    cap = min(cap, max_chunk)
    if T <= min(cap, 8):
        chunk = T                                 # single chunk; block == full time dim
    else:
        # multiple of 8 so the (B, chunk, V) logits block satisfies the (8,128) rule
        chunk = min(max(8, (cap // 8) * 8), ((T + 7) // 8) * 8)
    n_chunks = -(-T // chunk)
    T_pad = n_chunks * chunk
    nb = 2 if B % 16 == 0 else 1
    return chunk, n_chunks, T_pad, nb


# ----------------------------------------------------------------------------
# GRU recurrence kernel (intermediate layer). Grid = (batch_blocks, time_chunks).
# ----------------------------------------------------------------------------
def _make_gru_kernel(H, chunk, t_valid, needs_mask):
    unroll = 8 if chunk % 8 == 0 else True

    def kernel(xp_ref, whh_ref, bhn_ref, h0_ref, out_ref, hN_ref, h_ref):
        c = pl.program_id(1)
        Bb = h0_ref.shape[0]

        @pl.when(c == 0)
        def _():
            h_ref[...] = h0_ref[...]

        whh = whh_ref[...]                                     # (H, 3H), gate order [r | z | n]
        bhn = jnp.broadcast_to(bhn_ref[...], (Bb, H))          # hoisted out of the step body

        def step(t, h):
            gx = xp_ref[t].astype(jnp.float32)                 # (Bb, 3H) hoisted input proj
            hh = jnp.dot(h.astype(whh.dtype), whh,
                         preferred_element_type=jnp.float32)   # one MXU push, N = 3H
            r = jax.nn.sigmoid(gx[:, :H] + hh[:, :H])
            z = jax.nn.sigmoid(gx[:, H:2 * H] + hh[:, H:2 * H])
            n = jnp.tanh(gx[:, 2 * H:] + r * (hh[:, 2 * H:] + bhn))
            h_new = (1.0 - z) * n + z * h
            if needs_mask:
                h_new = jnp.where(c * chunk + t < t_valid, h_new, h)
            out_ref[t] = h_new.astype(out_ref.dtype)
            return h_new

        h_last = jax.lax.fori_loop(0, chunk, step, h_ref[...], unroll=unroll)
        h_ref[...] = h_last
        hN_ref[...] = h_last                                   # resident block; flushed at end

    return kernel


def gru_layer_pallas(x_proj, whh, bhn, h0, *, chunk, nb, t_valid, out_dtype):
    """x_proj: (T_pad, B, 3H) hoisted input projection (biases folded, padded to T_pad).
    Returns (out_seq (T_pad, B, H) in out_dtype, h_final (B, H) f32)."""
    T_pad, B, G = x_proj.shape
    H = whh.shape[0]
    Bb = B // nb
    n_chunks = T_pad // chunk
    kernel = _make_gru_kernel(H, chunk, t_valid, needs_mask=(T_pad != t_valid))
    return pl.pallas_call(
        kernel,
        out_shape=(
            jax.ShapeDtypeStruct((T_pad, B, H), out_dtype),
            jax.ShapeDtypeStruct((B, H), jnp.float32),
        ),
        grid_spec=pltpu.PrefetchScalarGridSpec(
            num_scalar_prefetch=0,
            grid=(nb, n_chunks),
            in_specs=[
                pl.BlockSpec((chunk, Bb, G), lambda b, c: (c, b, 0)),
                pl.BlockSpec((H, G), lambda b, c: (0, 0)),
                pl.BlockSpec((1, H), lambda b, c: (0, 0)),
                pl.BlockSpec((Bb, H), lambda b, c: (b, 0)),
            ],
            out_specs=[
                pl.BlockSpec((chunk, Bb, H), lambda b, c: (c, b, 0)),
                pl.BlockSpec((Bb, H), lambda b, c: (b, 0)),
            ],
            scratch_shapes=[pltpu.VMEM((Bb, H), jnp.float32)],
        ),
        compiler_params=pltpu.CompilerParams(
            # batch blocks independent -> parallel; time recurrence sequential -> arbitrary.
            dimension_semantics=("parallel", "arbitrary"),
            vmem_limit_bytes=32 << 20,
        ),
    )(x_proj, whh, bhn, h0)


# ----------------------------------------------------------------------------
# Last GRU layer with the vocab projection fused into the chunk epilogue.
# Emits logits directly in (B, T_pad, V) layout.
# ----------------------------------------------------------------------------
def _make_gru_dense_kernel(H, chunk, t_valid, needs_mask):
    unroll = 8 if chunk % 8 == 0 else True

    def kernel(xp_ref, whh_ref, bhn_ref, h0_ref, wv_ref, bv_ref,
               logits_ref, hN_ref, h_ref, hseq_ref):
        c = pl.program_id(1)
        Bb = h0_ref.shape[0]

        @pl.when(c == 0)
        def _():
            h_ref[...] = h0_ref[...]

        whh = whh_ref[...]
        bhn = jnp.broadcast_to(bhn_ref[...], (Bb, H))

        def step(t, h):
            gx = xp_ref[t].astype(jnp.float32)
            hh = jnp.dot(h.astype(whh.dtype), whh,
                         preferred_element_type=jnp.float32)
            r = jax.nn.sigmoid(gx[:, :H] + hh[:, :H])
            z = jax.nn.sigmoid(gx[:, H:2 * H] + hh[:, H:2 * H])
            n = jnp.tanh(gx[:, 2 * H:] + r * (hh[:, 2 * H:] + bhn))
            h_new = (1.0 - z) * n + z * h
            if needs_mask:
                h_new = jnp.where(c * chunk + t < t_valid, h_new, h)
            hseq_ref[t] = h_new                                 # stays in VMEM for the epilogue
            return h_new

        h_last = jax.lax.fori_loop(0, chunk, step, h_ref[...], unroll=unroll)
        h_ref[...] = h_last
        hN_ref[...] = h_last

        # Chunk epilogue: vocab projection of the whole chunk (larger MXU M = chunk*Bb) and an
        # on-chip (t, b) -> (b, t) relayout via static row stores, so logits land in (B, T, V)
        # without a separate dense kernel or an XLA transpose pass over HBM.
        wv = wv_ref[...]                                        # (H, V)
        hseq = hseq_ref[...].reshape(chunk * Bb, H).astype(wv.dtype)
        logits = jnp.dot(hseq, wv, preferred_element_type=jnp.float32) + bv_ref[...]
        for t in range(chunk):                                  # static indices -> plain stores
            logits_ref[:, t, :] = logits[t * Bb:(t + 1) * Bb, :]

    return kernel


def gru_dense_layer_pallas(x_proj, whh, bhn, h0, wv, bv, *, chunk, nb, t_valid):
    """Returns (logits (B, T_pad, V) f32, h_final (B, H) f32)."""
    T_pad, B, G = x_proj.shape
    H = whh.shape[0]
    V = wv.shape[-1]
    Bb = B // nb
    n_chunks = T_pad // chunk
    kernel = _make_gru_dense_kernel(H, chunk, t_valid, needs_mask=(T_pad != t_valid))
    return pl.pallas_call(
        kernel,
        out_shape=(
            jax.ShapeDtypeStruct((B, T_pad, V), jnp.float32),
            jax.ShapeDtypeStruct((B, H), jnp.float32),
        ),
        grid_spec=pltpu.PrefetchScalarGridSpec(
            num_scalar_prefetch=0,
            grid=(nb, n_chunks),
            in_specs=[
                pl.BlockSpec((chunk, Bb, G), lambda b, c: (c, b, 0)),
                pl.BlockSpec((H, G), lambda b, c: (0, 0)),
                pl.BlockSpec((1, H), lambda b, c: (0, 0)),
                pl.BlockSpec((Bb, H), lambda b, c: (b, 0)),
                pl.BlockSpec((H, V), lambda b, c: (0, 0)),
                pl.BlockSpec((1, V), lambda b, c: (0, 0)),
            ],
            out_specs=[
                pl.BlockSpec((Bb, chunk, V), lambda b, c: (b, c, 0)),
                pl.BlockSpec((Bb, H), lambda b, c: (b, 0)),
            ],
            scratch_shapes=[
                pltpu.VMEM((Bb, H), jnp.float32),
                pltpu.VMEM((chunk, Bb, H), jnp.float32),
            ],
        ),
        compiler_params=pltpu.CompilerParams(
            dimension_semantics=("parallel", "arbitrary"),
            vmem_limit_bytes=32 << 20,
        ),
    )(x_proj, whh, bhn, h0, wv, bv)


# ----------------------------------------------------------------------------
# Decoder forward (matches Seq2SeqDecoder.forward semantics).
# ----------------------------------------------------------------------------
def seq2seq_decoder_forward(X, state, params, *, stream_dtype=jnp.bfloat16,
                            max_chunk=512, vmem_budget_bytes=24 << 20):
    """X: (B, T) int32 token ids; state: (num_layers, B, H).
    Returns (logits (B, T, vocab) f32, new_state (num_layers, B, H) f32)."""
    B, T = X.shape
    H = state.shape[-1]
    V = params["dense_w"].shape[-1]
    n_layers = len(params["gru_layers"])
    sdt = jnp.dtype(stream_dtype)

    chunk, _, T_pad, nb = _choose_tiling(T, B, H, V, sdt.itemsize,
                                         max_chunk, vmem_budget_bytes)

    emb = jnp.take(params["embedding"], X, axis=0)             # (B, T, E)  -- glue
    ctx = state[-1]                                            # (B, H) time-invariant context

    layer_in = None
    logits_pad = None
    finals = []
    for l, layer in enumerate(params["gru_layers"]):
        wih, whh = layer["wih"], layer["whh"]                  # (in, 3H), (H, 3H)
        bih, bhh = layer["bih"], layer["bhh"]                  # (3H,), (3H,)
        # Fold b_ih (all gates) + b_hr, b_hz into the hoisted input projection; keep b_hn
        # separate (it sits inside r * (W_hn h + b_hn)).
        fold = bih + jnp.concatenate([bhh[:2 * H], jnp.zeros((H,), bhh.dtype)])
        if l == 0:
            # concat(emb_t, ctx) @ W_ih == emb_t @ W_ih[:E] + ctx @ W_ih[E:]; the context term
            # is time-invariant so it is computed once.
            E = emb.shape[-1]
            x_proj = jnp.einsum("bte,eg->tbg", emb, wih[:E],
                                preferred_element_type=jnp.float32)
            x_proj = x_proj + (ctx @ wih[E:])[None] + fold
            if T_pad != T:
                x_proj = jnp.pad(x_proj, ((0, T_pad - T), (0, 0), (0, 0)))
        else:
            x_proj = jnp.einsum("tbh,hg->tbg", layer_in, wih.astype(layer_in.dtype),
                                preferred_element_type=jnp.float32) + fold
        x_proj = x_proj.astype(stream_dtype)                   # bf16 stream, f32 recurrence
        whh_s = whh.astype(stream_dtype)
        bhn = bhh[2 * H:].reshape(1, H)

        if l == n_layers - 1:
            logits_pad, h_final = gru_dense_layer_pallas(
                x_proj, whh_s, bhn, state[l],
                params["dense_w"].astype(stream_dtype),
                params["dense_b"].reshape(1, V),
                chunk=chunk, nb=nb, t_valid=T)
        else:
            layer_in, h_final = gru_layer_pallas(
                x_proj, whh_s, bhn, state[l],
                chunk=chunk, nb=nb, t_valid=T, out_dtype=stream_dtype)
        finals.append(h_final)

    new_state = jnp.stack(finals, axis=0)                      # (num_layers, B, H)
    logits = logits_pad if T_pad == T else logits_pad[:, :T, :]
    return logits, new_state


# ----------------------------------------------------------------------------
# Pure-JAX reference (PyTorch GRU semantics) for validation.
# ----------------------------------------------------------------------------
def _gru_layer_ref(x_seq, h0, wih, whh, bih, bhh):
    H = whh.shape[0]

    def step(h, x):
        gi = x @ wih + bih
        gh = h @ whh + bhh
        r = jax.nn.sigmoid(gi[:, :H] + gh[:, :H])
        z = jax.nn.sigmoid(gi[:, H:2 * H] + gh[:, H:2 * H])
        n = jnp.tanh(gi[:, 2 * H:] + r * gh[:, 2 * H:])
        h_new = (1.0 - z) * n + z * h
        return h_new, h_new

    hT, outs = jax.lax.scan(step, h0, x_seq)
    return outs, hT


def seq2seq_decoder_ref(X, state, params):
    emb = jnp.take(params["embedding"], X, axis=0)
    x_seq = jnp.transpose(emb, (1, 0, 2))                      # (T, B, E)
    T = x_seq.shape[0]
    context = jnp.broadcast_to(state[-1], (T,) + state[-1].shape)
    layer_in = jnp.concatenate([x_seq, context], axis=2)       # (T, B, E+H)
    finals = []
    for l, layer in enumerate(params["gru_layers"]):
        outs, hT = _gru_layer_ref(
            layer_in, state[l], layer["wih"], layer["whh"], layer["bih"], layer["bhh"]
        )
        finals.append(hT)
        layer_in = outs
    logits = layer_in @ params["dense_w"] + params["dense_b"]
    return jnp.transpose(logits, (1, 0, 2)), jnp.stack(finals, axis=0)


# ----------------------------------------------------------------------------
# Parameter init (PyTorch-style; weights pre-transposed, gates concatenated [r | z | n]).
# ----------------------------------------------------------------------------
def init_params(key, vocab_size, embed_size, num_hiddens, num_layers):
    keys = jax.random.split(key, 3 + 4 * num_layers)
    H = num_hiddens
    bound = 1.0 / (H ** 0.5)
    params = {
        "embedding": jax.random.normal(keys[0], (vocab_size, embed_size), jnp.float32),
        "gru_layers": [],
        "dense_w": jax.random.uniform(keys[1], (H, vocab_size), jnp.float32, -bound, bound),
        "dense_b": jax.random.uniform(keys[2], (vocab_size,), jnp.float32, -bound, bound),
    }
    for l in range(num_layers):
        in_dim = (embed_size + H) if l == 0 else H
        k = keys[3 + 4 * l: 3 + 4 * (l + 1)]
        params["gru_layers"].append({
            "wih": jax.random.uniform(k[0], (in_dim, 3 * H), jnp.float32, -bound, bound),
            "whh": jax.random.uniform(k[1], (H, 3 * H), jnp.float32, -bound, bound),
            "bih": jax.random.uniform(k[2], (3 * H,), jnp.float32, -bound, bound),
            "bhh": jax.random.uniform(k[3], (3 * H,), jnp.float32, -bound, bound),
        })
    return params


if __name__ == "__main__":
    # Small but (8,128)-aligned shapes: B mult of 8, H / 3H / vocab mult of 128.
    vocab_size, embed_size, num_hiddens, num_layers = 128, 32, 128, 2
    batch = 8

    key = jax.random.PRNGKey(0)
    pkey, xkey, _ = jax.random.split(key, 3)
    params = init_params(pkey, vocab_size, embed_size, num_hiddens, num_layers)

    def run(seq_len, stream_dtype, max_chunk, atol, rtol):
        kx, ks = jax.random.split(jax.random.fold_in(xkey, seq_len))
        X = jax.random.randint(kx, (batch, seq_len), 0, vocab_size, dtype=jnp.int32)
        state = jax.random.normal(ks, (num_layers, batch, num_hiddens), jnp.float32)
        fwd = jax.jit(functools.partial(
            seq2seq_decoder_forward, stream_dtype=stream_dtype, max_chunk=max_chunk))
        out, new_state = fwd(X, state, params)
        out = jax.block_until_ready(out)
        new_state = jax.block_until_ready(new_state)
        assert out.shape == (batch, seq_len, vocab_size), out.shape
        assert new_state.shape == (num_layers, batch, num_hiddens), new_state.shape
        ref_out, ref_state = seq2seq_decoder_ref(X, state, params)
        assert jnp.allclose(out, ref_out, atol=atol, rtol=rtol), float(
            jnp.max(jnp.abs(out - ref_out)))
        assert jnp.allclose(new_state, ref_state, atol=atol, rtol=rtol), float(
            jnp.max(jnp.abs(new_state - ref_state)))

    # Exact-precision streaming path (single chunk, no time padding).
    run(8, jnp.float32, 512, 1e-4, 1e-4)
    # Multi-chunk + time-padding + masking path (T=10 -> chunk=8, T_pad=16, grid of 2 chunks).
    run(10, jnp.float32, 8, 1e-4, 1e-4)
    # bf16 streaming of x_proj / W_hh / inter-layer seq / dense W (recurrence + accum stay f32).
    run(8, jnp.bfloat16, 512, 2e-1, 1e-1)

    print("KERNEL_OK")
</pallas_src>

<mosaic_0001>
module attributes {stable_mosaic.version = 11 : i64} {
  func.func @kernel(%arg0: i32, %arg1: i32, %arg2: memref<8x8x384xf32, #tpu.memory_space<vmem>>, %arg3: memref<128x384xf32, #tpu.memory_space<vmem>>, %arg4: memref<1x128xf32, #tpu.memory_space<vmem>>, %arg5: memref<8x128xf32, #tpu.memory_space<vmem>>, %arg6: memref<8x8x128xf32, #tpu.memory_space<vmem>>, %arg7: memref<8x128xf32, #tpu.memory_space<vmem>>, %arg8: memref<8x128xf32, #tpu.memory_space<vmem>>) attributes {dimension_semantics = [#tpu.dimension_semantics<parallel>, #tpu.dimension_semantics<arbitrary>], iteration_bounds = array<i64: 1, 1>, scalar_prefetch = 0 : i64, scratch_operands = 1 : i64, tpu.core_type = #tpu.core_type<tc>, window_params = [{transform_indices = @transform_0, window_bounds = array<i64: 8, 8, 384>}, {pipeline_mode = #tpu.pipeline_mode<synchronous>, transform_indices = @transform_1, window_bounds = array<i64: 128, 384>}, {pipeline_mode = #tpu.pipeline_mode<synchronous>, transform_indices = @transform_2, window_bounds = array<i64: 1, 128>}, {transform_indices = @transform_3, window_bounds = array<i64: 8, 128>}, {transform_indices = @transform_4, window_bounds = array<i64: 8, 8, 128>}, {transform_indices = @transform_5, window_bounds = array<i64: 8, 128>}]} {
    %c0_i32 = arith.constant 0 : i32
    %0 = arith.cmpi eq, %arg1, %c0_i32 : i32
    %1 = arith.extui %0 : i1 to i32
    %c0_i32_0 = arith.constant 0 : i32
    %2 = arith.cmpi ne, %1, %c0_i32_0 : i32
    scf.if %2 {
      %c0_74 = arith.constant 0 : index
      %c0_75 = arith.constant 0 : index
      %290 = vector.load %arg5[%c0_74, %c0_75] : memref<8x128xf32, #tpu.memory_space<vmem>>, vector<8x128xf32>
      %c0_76 = arith.constant 0 : index
      %c0_77 = arith.constant 0 : index
      %291 = vector.load %arg8[%c0_76, %c0_77] : memref<8x128xf32, #tpu.memory_space<vmem>>, vector<8x128xf32>
      tpu.vector_store %arg8[%c0_76, %c0_77], %290 {strides = array<i32>} : memref<8x128xf32, #tpu.memory_space<vmem>>, vector<8x128xf32>,
    } else {
    }
    %c0 = arith.constant 0 : index
    %c0_1 = arith.constant 0 : index
    %3 = vector.load %arg3[%c0, %c0_1] : memref<128x384xf32, #tpu.memory_space<vmem>>, vector<128x384xf32>
    %c0_2 = arith.constant 0 : index
    %c0_3 = arith.constant 0 : index
    %4 = vector.load %arg4[%c0_2, %c0_3] : memref<1x128xf32, #tpu.memory_space<vmem>>, vector<1x128xf32>
    %5 = vector.shape_cast %4 : vector<1x128xf32> to vector<1x128xf32>
    %6 = vector.broadcast %5 : vector<1x128xf32> to vector<8x128xf32>
    %c0_4 = arith.constant 0 : index
    %c0_5 = arith.constant 0 : index
    %7 = vector.load %arg8[%c0_4, %c0_5] : memref<8x128xf32, #tpu.memory_space<vmem>>, vector<8x128xf32>
    %c0_i32_6 = arith.constant 0 : i32
    %8 = arith.index_cast %c0_i32_6 : i32 to index
    %c0_7 = arith.constant 0 : index
    %c0_8 = arith.constant 0 : index
    %9 = vector.load %arg2[%8, %c0_7, %c0_8] : memref<8x8x384xf32, #tpu.memory_space<vmem>>, vector<1x8x384xf32>
    %10 = vector.shape_cast %9 : vector<1x8x384xf32> to vector<8x384xf32>
    %cst = arith.constant dense<0.000000e+00> : vector<8x384xf32>
    %11 = tpu.matmul %7, %3, %cst {dimension_numbers = #tpu.dot_dimension_numbers<[1], [0], [0], [1], [0, 0, 1, 1], [], []>} : vector<8x128xf32>, vector<128x384xf32>, vector<8x384xf32> -> vector<8x384xf32>
    %12 = vector.extract_strided_slice %10 {offsets = [0, 0], sizes = [8, 128], strides = [1, 1]} : vector<8x384xf32> to vector<8x128xf32>
    %13 = vector.extract_strided_slice %11 {offsets = [0, 0], sizes = [8, 128], strides = [1, 1]} : vector<8x384xf32> to vector<8x128xf32>
    %14 = arith.addf %12, %13 : vector<8x128xf32>
    %15 = arith.negf %14 : vector<8x128xf32>
    %16 = math.exp %15 : vector<8x128xf32>
    %cst_9 = arith.constant 1.000000e+00 : f32
    %17 = vector.broadcast %cst_9 : f32 to vector<8x128xf32>
    %18 = arith.addf %17, %16 : vector<8x128xf32>
    %19 = arith.divf %17, %18 : vector<8x128xf32>
    %20 = vector.extract_strided_slice %10 {offsets = [0, 128], sizes = [8, 128], strides = [1, 1]} : vector<8x384xf32> to vector<8x128xf32>
    %21 = vector.extract_strided_slice %11 {offsets = [0, 128], sizes = [8, 128], strides = [1, 1]} : vector<8x384xf32> to vector<8x128xf32>
    %22 = arith.addf %20, %21 : vector<8x128xf32>
    %23 = arith.negf %22 : vector<8x128xf32>
    %24 = math.exp %23 : vector<8x128xf32>
    %cst_10 = arith.constant 1.000000e+00 : f32
    %25 = vector.broadcast %cst_10 : f32 to vector<8x128xf32>
    %26 = arith.addf %25, %24 : vector<8x128xf32>
    %27 = arith.divf %25, %26 : vector<8x128xf32>
    %28 = vector.extract_strided_slice %10 {offsets = [0, 256], sizes = [8, 128], strides = [1, 1]} : vector<8x384xf32> to vector<8x128xf32>
    %29 = vector.extract_strided_slice %11 {offsets = [0, 256], sizes = [8, 128], strides = [1, 1]} : vector<8x384xf32> to vector<8x128xf32>
    %30 = arith.addf %29, %6 : vector<8x128xf32>
    %31 = arith.mulf %19, %30 : vector<8x128xf32>
    %32 = arith.addf %28, %31 : vector<8x128xf32>
    %33 = math.tanh %32 : vector<8x128xf32>
    %cst_11 = arith.constant 1.000000e+00 : f32
    %34 = vector.broadcast %cst_11 : f32 to vector<8x128xf32>
    %35 = arith.subf %34, %27 : vector<8x128xf32>
    %36 = arith.mulf %35, %33 : vector<8x128xf32>
    %37 = arith.mulf %27, %7 : vector<8x128xf32>
    %38 = arith.addf %36, %37 : vector<8x128xf32>
    %39 = arith.index_cast %c0_i32_6 : i32 to index
    %c0_12 = arith.constant 0 : index
    %c0_13 = arith.constant 0 : index
    %40 = vector.load %arg6[%39, %c0_12, %c0_13] : memref<8x8x128xf32, #tpu.memory_space<vmem>>, vector<1x8x128xf32>
    %41 = vector.shape_cast %40 : vector<1x8x128xf32> to vector<8x128xf32>
    %42 = vector.shape_cast %38 : vector<8x128xf32> to vector<1x8x128xf32>
    tpu.vector_store %arg6[%39, %c0_12, %c0_13], %42 {strides = array<i32>} : memref<8x8x128xf32, #tpu.memory_space<vmem>>, vector<1x8x128xf32>,
    %c1_i32 = arith.constant 1 : i32
    %43 = arith.index_cast %c1_i32 : i32 to index
    %c0_14 = arith.constant 0 : index
    %c0_15 = arith.constant 0 : index
    %44 = vector.load %arg2[%43, %c0_14, %c0_15] : memref<8x8x384xf32, #tpu.memory_space<vmem>>, vector<1x8x384xf32>
    %45 = vector.shape_cast %44 : vector<1x8x384xf32> to vector<8x384xf32>
    %cst_16 = arith.constant dense<0.000000e+00> : vector<8x384xf32>
    %46 = tpu.matmul %38, %3, %cst_16 {dimension_numbers = #tpu.dot_dimension_numbers<[1], [0], [0], [1], [0, 0, 1, 1], [], []>} : vector<8x128xf32>, vector<128x384xf32>, vector<8x384xf32> -> vector<8x384xf32>
    %47 = vector.extract_strided_slice %45 {offsets = [0, 0], sizes = [8, 128], strides = [1, 1]} : vector<8x384xf32> to vector<8x128xf32>
    %48 = vector.extract_strided_slice %46 {offsets = [0, 0], sizes = [8, 128], strides = [1, 1]} : vector<8x384xf32> to vector<8x128xf32>
    %49 = arith.addf %47, %48 : vector<8x128xf32>
    %50 = arith.negf %49 : vector<8x128xf32>
    %51 = math.exp %50 : vector<8x128xf32>
    %cst_17 = arith.constant 1.000000e+00 : f32
    %52 = vector.broadcast %cst_17 : f32 to vector<8x128xf32>
    %53 = arith.addf %52, %51 : vector<8x128xf32>
    %54 = arith.divf %52, %53 : vector<8x128xf32>
    %55 = vector.extract_strided_slice %45 {offsets = [0, 128], sizes = [8, 128], strides = [1, 1]} : vector<8x384xf32> to vector<8x128xf32>
    %56 = vector.extract_strided_slice %46 {offsets = [0, 128], sizes = [8, 128], strides = [1, 1]} : vector<8x384xf32> to vector<8x128xf32>
    %57 = arith.addf %55, %56 : vector<8x128xf32>
    %58 = arith.negf %57 : vector<8x128xf32>
    %59 = math.exp %58 : vector<8x128xf32>
    %cst_18 = arith.constant 1.000000e+00 : f32
    %60 = vector.broadcast %cst_18 : f32 to vector<8x128xf32>
    %61 = arith.addf %60, %59 : vector<8x128xf32>
    %62 = arith.divf %60, %61 : vector<8x128xf32>
    %63 = vector.extract_strided_slice %45 {offsets = [0, 256], sizes = [8, 128], strides = [1, 1]} : vector<8x384xf32> to vector<8x128xf32>
    %64 = vector.extract_strided_slice %46 {offsets = [0, 256], sizes = [8, 128], strides = [1, 1]} : vector<8x384xf32> to vector<8x128xf32>
    %65 = arith.addf %64, %6 : vector<8x128xf32>
    %66 = arith.mulf %54, %65 : vector<8x128xf32>
    %67 = arith.addf %63, %66 : vector<8x128xf32>
    %68 = math.tanh %67 : vector<8x128xf32>
    %cst_19 = arith.constant 1.000000e+00 : f32
    %69 = vector.broadcast %cst_19 : f32 to vector<8x128xf32>
    %70 = arith.subf %69, %62 : vector<8x128xf32>
    %71 = arith.mulf %70, %68 : vector<8x128xf32>
    %72 = arith.mulf %62, %38 : vector<8x128xf32>
    %73 = arith.addf %71, %72 : vector<8x128xf32>
    %74 = arith.index_cast %c1_i32 : i32 to index
    %c0_20 = arith.constant 0 : index
    %c0_21 = arith.constant 0 : index
    %75 = vector.load %arg6[%74, %c0_20, %c0_21] : memref<8x8x128xf32, #tpu.memory_space<vmem>>, vector<1x8x128xf32>
    %76 = vector.shape_cast %75 : vector<1x8x128xf32> to vector<8x128xf32>
    %77 = vector.shape_cast %73 : vector<8x128xf32> to vector<1x8x128xf32>
    tpu.vector_store %arg6[%74, %c0_20, %c0_21], %77 {strides = array<i32>} : memref<8x8x128xf32, #tpu.memory_space<vmem>>, vector<1x8x128xf32>,
    %c2_i32 = arith.constant 2 : i32
    %78 = arith.index_cast %c2_i32 : i32 to index
    %c0_22 = arith.constant 0 : index
    %c0_23 = arith.constant 0 : index
    %79 = vector.load %arg2[%78, %c0_22, %c0_23] : memref<8x8x384xf32, #tpu.memory_space<vmem>>, vector<1x8x384xf32>
    %80 = vector.shape_cast %79 : vector<1x8x384xf32> to vector<8x384xf32>
    %cst_24 = arith.constant dense<0.000000e+00> : vector<8x384xf32>
    %81 = tpu.matmul %73, %3, %cst_24 {dimension_numbers = #tpu.dot_dimension_numbers<[1], [0], [0], [1], [0, 0, 1, 1], [], []>} : vector<8x128xf32>, vector<128x384xf32>, vector<8x384xf32> -> vector<8x384xf32>
    %82 = vector.extract_strided_slice %80 {offsets = [0, 0], sizes = [8, 128], strides = [1, 1]} : vector<8x384xf32> to vector<8x128xf32>
    %83 = vector.extract_strided_slice %81 {offsets = [0, 0], sizes = [8, 128], strides = [1, 1]} : vector<8x384xf32> to vector<8x128xf32>
    %84 = arith.addf %82, %83 : vector<8x128xf32>
    %85 = arith.negf %84 : vector<8x128xf32>
    %86 = math.exp %85 : vector<8x128xf32>
    %cst_25 = arith.constant 1.000000e+00 : f32
    %87 = vector.broadcast %cst_25 : f32 to vector<8x128xf32>
    %88 = arith.addf %87, %86 : vector<8x128xf32>
    %89 = arith.divf %87, %88 : vector<8x128xf32>
    %90 = vector.extract_strided_slice %80 {offsets = [0, 128], sizes = [8, 128], strides = [1, 1]} : vector<8x384xf32> to vector<8x128xf32>
    %91 = vector.extract_strided_slice %81 {offsets = [0, 128], sizes = [8, 128], strides = [1, 1]} : vector<8x384xf32> to vector<8x128xf32>
    %92 = arith.addf %90, %91 : vector<8x128xf32>
    %93 = arith.negf %92 : vector<8x128xf32>
    %94 = math.exp %93 : vector<8x128xf32>
    %cst_26 = arith.constant 1.000000e+00 : f32
    %95 = vector.broadcast %cst_26 : f32 to vector<8x128xf32>
    %96 = arith.addf %95, %94 : vector<8x128xf32>
    %97 = arith.divf %95, %96 : vector<8x128xf32>
    %98 = vector.extract_strided_slice %80 {offsets = [0, 256], sizes = [8, 128], strides = [1, 1]} : vector<8x384xf32> to vector<8x128xf32>
    %99 = vector.extract_strided_slice %81 {offsets = [0, 256], sizes = [8, 128], strides = [1, 1]} : vector<8x384xf32> to vector<8x128xf32>
    %100 = arith.addf %99, %6 : vector<8x128xf32>
    %101 = arith.mulf %89, %100 : vector<8x128xf32>
    %102 = arith.addf %98, %101 : vector<8x128xf32>
    %103 = math.tanh %102 : vector<8x128xf32>
    %cst_27 = arith.constant 1.000000e+00 : f32
    %104 = vector.broadcast %cst_27 : f32 to vector<8x128xf32>
    %105 = arith.subf %104, %97 : vector<8x128xf32>
    %106 = arith.mulf %105, %103 : vector<8x128xf32>
    %107 = arith.mulf %97, %73 : vector<8x128xf32>
    %108 = arith.addf %106, %107 : vector<8x128xf32>
    %109 = arith.index_cast %c2_i32 : i32 to index
    %c0_28 = arith.constant 0 : index
    %c0_29 = arith.constant 0 : index
    %110 = vector.load %arg6[%109, %c0_28, %c0_29] : memref<8x8x128xf32, #tpu.memory_space<vmem>>, vector<1x8x128xf32>
    %111 = vector.shape_cast %110 : vector<1x8x128xf32> to vector<8x128xf32>
    %112 = vector.shape_cast %108 : vector<8x128xf32> to vector<1x8x128xf32>
    tpu.vector_store %arg6[%109, %c0_28, %c0_29], %112 {strides = array<i32>} : memref<8x8x128xf32, #tpu.memory_space<vmem>>, vector<1x8x128xf32>,
    %c3_i32 = arith.constant 3 : i32
    %113 = arith.index_cast %c3_i32 : i32 to index
    %c0_30 = arith.constant 0 : index
    %c0_31 = arith.constant 0 : index
    %114 = vector.load %arg2[%113, %c0_30, %c0_31] : memref<8x8x384xf32, #tpu.memory_space<vmem>>, vector<1x8x384xf32>
    %115 = vector.shape_cast %114 : vector<1x8x384xf32> to vector<8x384xf32>
    %cst_32 = arith.constant dense<0.000000e+00> : vector<8x384xf32>
    %116 = tpu.matmul %108, %3, %cst_32 {dimension_numbers = #tpu.dot_dimension_numbers<[1], [0], [0], [1], [0, 0, 1, 1], [], []>} : vector<8x128xf32>, vector<128x384xf32>, vector<8x384xf32> -> vector<8x384xf32>
    %117 = vector.extract_strided_slice %115 {offsets = [0, 0], sizes = [8, 128], strides = [1, 1]} : vector<8x384xf32> to vector<8x128xf32>
    %118 = vector.extract_strided_slice %116 {offsets = [0, 0], sizes = [8, 128], strides = [1, 1]} : vector<8x384xf32> to vector<8x128xf32>
    %119 = arith.addf %117, %118 : vector<8x128xf32>
    %120 = arith.negf %119 : vector<8x128xf32>
    %121 = math.exp %120 : vector<8x128xf32>
    %cst_33 = arith.constant 1.000000e+00 : f32
    %122 = vector.broadcast %cst_33 : f32 to vector<8x128xf32>
    %123 = arith.addf %122, %121 : vector<8x128xf32>
    %124 = arith.divf %122, %123 : vector<8x128xf32>
    %125 = vector.extract_strided_slice %115 {offsets = [0, 128], sizes = [8, 128], strides = [1, 1]} : vector<8x384xf32> to vector<8x128xf32>
    %126 = vector.extract_strided_slice %116 {offsets = [0, 128], sizes = [8, 128], strides = [1, 1]} : vector<8x384xf32> to vector<8x128xf32>
    %127 = arith.addf %125, %126 : vector<8x128xf32>
    %128 = arith.negf %127 : vector<8x128xf32>
    %129 = math.exp %128 : vector<8x128xf32>
    %cst_34 = arith.constant 1.000000e+00 : f32
    %130 = vector.broadcast %cst_34 : f32 to vector<8x128xf32>
    %131 = arith.addf %130, %129 : vector<8x128xf32>
    %132 = arith.divf %130, %131 : vector<8x128xf32>
    %133 = vector.extract_strided_slice %115 {offsets = [0, 256], sizes = [8, 128], strides = [1, 1]} : vector<8x384xf32> to vector<8x128xf32>
    %134 = vector.extract_strided_slice %116 {offsets = [0, 256], sizes = [8, 128], strides = [1, 1]} : vector<8x384xf32> to vector<8x128xf32>
    %135 = arith.addf %134, %6 : vector<8x128xf32>
    %136 = arith.mulf %124, %135 : vector<8x128xf32>
    %137 = arith.addf %133, %136 : vector<8x128xf32>
    %138 = math.tanh %137 : vector<8x128xf32>
    %cst_35 = arith.constant 1.000000e+00 : f32
    %139 = vector.broadcast %cst_35 : f32 to vector<8x128xf32>
    %140 = arith.subf %139, %132 : vector<8x128xf32>
    %141 = arith.mulf %140, %138 : vector<8x128xf32>
    %142 = arith.mulf %132, %108 : vector<8x128xf32>
    %143 = arith.addf %141, %142 : vector<8x128xf32>
    %144 = arith.index_cast %c3_i32 : i32 to index
    %c0_36 = arith.constant 0 : index
    %c0_37 = arith.constant 0 : index
    %145 = vector.load %arg6[%144, %c0_36, %c0_37] : memref<8x8x128xf32, #tpu.memory_space<vmem>>, vector<1x8x128xf32>
    %146 = vector.shape_cast %145 : vector<1x8x128xf32> to vector<8x128xf32>
    %147 = vector.shape_cast %143 : vector<8x128xf32> to vector<1x8x128xf32>
    tpu.vector_store %arg6[%144, %c0_36, %c0_37], %147 {strides = array<i32>} : memref<8x8x128xf32, #tpu.memory_space<vmem>>, vector<1x8x128xf32>,
    %c4_i32 = arith.constant 4 : i32
    %148 = arith.index_cast %c4_i32 : i32 to index
    %c0_38 = arith.constant 0 : index
    %c0_39 = arith.constant 0 : index
    %149 = vector.load %arg2[%148, %c0_38, %c0_39] : memref<8x8x384xf32, #tpu.memory_space<vmem>>, vector<1x8x384xf32>
    %150 = vector.shape_cast %149 : vector<1x8x384xf32> to vector<8x384xf32>
    %cst_40 = arith.constant dense<0.000000e+00> : vector<8x384xf32>
    %151 = tpu.matmul %143, %3, %cst_40 {dimension_numbers = #tpu.dot_dimension_numbers<[1], [0], [0], [1], [0, 0, 1, 1], [], []>} : vector<8x128xf32>, vector<128x384xf32>, vector<8x384xf32> -> vector<8x384xf32>
    %152 = vector.extract_strided_slice %150 {offsets = [0, 0], sizes = [8, 128], strides = [1, 1]} : vector<8x384xf32> to vector<8x128xf32>
    %153 = vector.extract_strided_slice %151 {offsets = [0, 0], sizes = [8, 128], strides = [1, 1]} : vector<8x384xf32> to vector<8x128xf32>
    %154 = arith.addf %152, %153 : vector<8x128xf32>
    %155 = arith.negf %154 : vector<8x128xf32>
    %156 = math.exp %155 : vector<8x128xf32>
    %cst_41 = arith.constant 1.000000e+00 : f32
    %157 = vector.broadcast %cst_41 : f32 to vector<8x128xf32>
    %158 = arith.addf %157, %156 : vector<8x128xf32>
    %159 = arith.divf %157, %158 : vector<8x128xf32>
    %160 = vector.extract_strided_slice %150 {offsets = [0, 128], sizes = [8, 128], strides = [1, 1]} : vector<8x384xf32> to vector<8x128xf32>
    %161 = vector.extract_strided_slice %151 {offsets = [0, 128], sizes = [8, 128], strides = [1, 1]} : vector<8x384xf32> to vector<8x128xf32>
    %162 = arith.addf %160, %161 : vector<8x128xf32>
    %163 = arith.negf %162 : vector<8x128xf32>
    %164 = math.exp %163 : vector<8x128xf32>
    %cst_42 = arith.constant 1.000000e+00 : f32
    %165 = vector.broadcast %cst_42 : f32 to vector<8x128xf32>
    %166 = arith.addf %165, %164 : vector<8x128xf32>
    %167 = arith.divf %165, %166 : vector<8x128xf32>
    %168 = vector.extract_strided_slice %150 {offsets = [0, 256], sizes = [8, 128], strides = [1, 1]} : vector<8x384xf32> to vector<8x128xf32>
    %169 = vector.extract_strided_slice %151 {offsets = [0, 256], sizes = [8, 128], strides = [1, 1]} : vector<8x384xf32> to vector<8x128xf32>
    %170 = arith.addf %169, %6 : vector<8x128xf32>
    %171 = arith.mulf %159, %170 : vector<8x128xf32>
    %172 = arith.addf %168, %171 : vector<8x128xf32>
    %173 = math.tanh %172 : vector<8x128xf32>
    %cst_43 = arith.constant 1.000000e+00 : f32
    %174 = vector.broadcast %cst_43 : f32 to vector<8x128xf32>
    %175 = arith.subf %174, %167 : vector<8x128xf32>
    %176 = arith.mulf %175, %173 : vector<8x128xf32>
    %177 = arith.mulf %167, %143 : vector<8x128xf32>
    %178 = arith.addf %176, %177 : vector<8x128xf32>
    %179 = arith.index_cast %c4_i32 : i32 to index
    %c0_44 = arith.constant 0 : index
    %c0_45 = arith.constant 0 : index
    %180 = vector.load %arg6[%179, %c0_44, %c0_45] : memref<8x8x128xf32, #tpu.memory_space<vmem>>, vector<1x8x128xf32>
    %181 = vector.shape_cast %180 : vector<1x8x128xf32> to vector<8x128xf32>
    %182 = vector.shape_cast %178 : vector<8x128xf32> to vector<1x8x128xf32>
    tpu.vector_store %arg6[%179, %c0_44, %c0_45], %182 {strides = array<i32>} : memref<8x8x128xf32, #tpu.memory_space<vmem>>, vector<1x8x128xf32>,
    %c5_i32 = arith.constant 5 : i32
    %183 = arith.index_cast %c5_i32 : i32 to index
    %c0_46 = arith.constant 0 : index
    %c0_47 = arith.constant 0 : index
    %184 = vector.load %arg2[%183, %c0_46, %c0_47] : memref<8x8x384xf32, #tpu.memory_space<vmem>>, vector<1x8x384xf32>
    %185 = vector.shape_cast %184 : vector<1x8x384xf32> to vector<8x384xf32>
    %cst_48 = arith.constant dense<0.000000e+00> : vector<8x384xf32>
    %186 = tpu.matmul %178, %3, %cst_48 {dimension_numbers = #tpu.dot_dimension_numbers<[1], [0], [0], [1], [0, 0, 1, 1], [], []>} : vector<8x128xf32>, vector<128x384xf32>, vector<8x384xf32> -> vector<8x384xf32>
    %187 = vector.extract_strided_slice %185 {offsets = [0, 0], sizes = [8, 128], strides = [1, 1]} : vector<8x384xf32> to vector<8x128xf32>
    %188 = vector.extract_strided_slice %186 {offsets = [0, 0], sizes = [8, 128], strides = [1, 1]} : vector<8x384xf32> to vector<8x128xf32>
    %189 = arith.addf %187, %188 : vector<8x128xf32>
    %190 = arith.negf %189 : vector<8x128xf32>
    %191 = math.exp %190 : vector<8x128xf32>
    %cst_49 = arith.constant 1.000000e+00 : f32
    %192 = vector.broadcast %cst_49 : f32 to vector<8x128xf32>
    %193 = arith.addf %192, %191 : vector<8x128xf32>
    %194 = arith.divf %192, %193 : vector<8x128xf32>
    %195 = vector.extract_strided_slice %185 {offsets = [0, 128], sizes = [8, 128], strides = [1, 1]} : vector<8x384xf32> to vector<8x128xf32>
    %196 = vector.extract_strided_slice %186 {offsets = [0, 128], sizes = [8, 128], strides = [1, 1]} : vector<8x384xf32> to vector<8x128xf32>
    %197 = arith.addf %195, %196 : vector<8x128xf32>
    %198 = arith.negf %197 : vector<8x128xf32>
    %199 = math.exp %198 : vector<8x128xf32>
    %cst_50 = arith.constant 1.000000e+00 : f32
    %200 = vector.broadcast %cst_50 : f32 to vector<8x128xf32>
    %201 = arith.addf %200, %199 : vector<8x128xf32>
    %202 = arith.divf %200, %201 : vector<8x128xf32>
    %203 = vector.extract_strided_slice %185 {offsets = [0, 256], sizes = [8, 128], strides = [1, 1]} : vector<8x384xf32> to vector<8x128xf32>
    %204 = vector.extract_strided_slice %186 {offsets = [0, 256], sizes = [8, 128], strides = [1, 1]} : vector<8x384xf32> to vector<8x128xf32>
    %205 = arith.addf %204, %6 : vector<8x128xf32>
    %206 = arith.mulf %194, %205 : vector<8x128xf32>
    %207 = arith.addf %203, %206 : vector<8x128xf32>
    %208 = math.tanh %207 : vector<8x128xf32>
    %cst_51 = arith.constant 1.000000e+00 : f32
    %209 = vector.broadcast %cst_51 : f32 to vector<8x128xf32>
    %210 = arith.subf %209, %202 : vector<8x128xf32>
    %211 = arith.mulf %210, %208 : vector<8x128xf32>
    %212 = arith.mulf %202, %178 : vector<8x128xf32>
    %213 = arith.addf %211, %212 : vector<8x128xf32>
    %214 = arith.index_cast %c5_i32 : i32 to index
    %c0_52 = arith.constant 0 : index
    %c0_53 = arith.constant 0 : index
    %215 = vector.load %arg6[%214, %c0_52, %c0_53] : memref<8x8x128xf32, #tpu.memory_space<vmem>>, vector<1x8x128xf32>
    %216 = vector.shape_cast %215 : vector<1x8x128xf32> to vector<8x128xf32>
    %217 = vector.shape_cast %213 : vector<8x128xf32> to vector<1x8x128xf32>
    tpu.vector_store %arg6[%214, %c0_52, %c0_53], %217 {strides = array<i32>} : memref<8x8x128xf32, #tpu.memory_space<vmem>>, vector<1x8x128xf32>,
    %c6_i32 = arith.constant 6 : i32
    %218 = arith.index_cast %c6_i32 : i32 to index
    %c0_54 = arith.constant 0 : index
    %c0_55 = arith.constant 0 : index
    %219 = vector.load %arg2[%218, %c0_54, %c0_55] : memref<8x8x384xf32, #tpu.memory_space<vmem>>, vector<1x8x384xf32>
    %220 = vector.shape_cast %219 : vector<1x8x384xf32> to vector<8x384xf32>
    %cst_56 = arith.constant dense<0.000000e+00> : vector<8x384xf32>
    %221 = tpu.matmul %213, %3, %cst_56 {dimension_numbers = #tpu.dot_dimension_numbers<[1], [0], [0], [1], [0, 0, 1, 1], [], []>} : vector<8x128xf32>, vector<128x384xf32>, vector<8x384xf32> -> vector<8x384xf32>
    %222 = vector.extract_strided_slice %220 {offsets = [0, 0], sizes = [8, 128], strides = [1, 1]} : vector<8x384xf32> to vector<8x128xf32>
    %223 = vector.extract_strided_slice %221 {offsets = [0, 0], sizes = [8, 128], strides = [1, 1]} : vector<8x384xf32> to vector<8x128xf32>
    %224 = arith.addf %222, %223 : vector<8x128xf32>
    %225 = arith.negf %224 : vector<8x128xf32>
    %226 = math.exp %225 : vector<8x128xf32>
    %cst_57 = arith.constant 1.000000e+00 : f32
    %227 = vector.broadcast %cst_57 : f32 to vector<8x128xf32>
    %228 = arith.addf %227, %226 : vector<8x128xf32>
    %229 = arith.divf %227, %228 : vector<8x128xf32>
    %230 = vector.extract_strided_slice %220 {offsets = [0, 128], sizes = [8, 128], strides = [1, 1]} : vector<8x384xf32> to vector<8x128xf32>
    %231 = vector.extract_strided_slice %221 {offsets = [0, 128], sizes = [8, 128], strides = [1, 1]} : vector<8x384xf32> to vector<8x128xf32>
    %232 = arith.addf %230, %231 : vector<8x128xf32>
    %233 = arith.negf %232 : vector<8x128xf32>
    %234 = math.exp %233 : vector<8x128xf32>
    %cst_58 = arith.constant 1.000000e+00 : f32
    %235 = vector.broadcast %cst_58 : f32 to vector<8x128xf32>
    %236 = arith.addf %235, %234 : vector<8x128xf32>
    %237 = arith.divf %235, %236 : vector<8x128xf32>
    %238 = vector.extract_strided_slice %220 {offsets = [0, 256], sizes = [8, 128], strides = [1, 1]} : vector<8x384xf32> to vector<8x128xf32>
    %239 = vector.extract_strided_slice %221 {offsets = [0, 256], sizes = [8, 128], strides = [1, 1]} : vector<8x384xf32> to vector<8x128xf32>
    %240 = arith.addf %239, %6 : vector<8x128xf32>
    %241 = arith.mulf %229, %240 : vector<8x128xf32>
    %242 = arith.addf %238, %241 : vector<8x128xf32>
    %243 = math.tanh %242 : vector<8x128xf32>
    %cst_59 = arith.constant 1.000000e+00 : f32
    %244 = vector.broadcast %cst_59 : f32 to vector<8x128xf32>
    %245 = arith.subf %244, %237 : vector<8x128xf32>
    %246 = arith.mulf %245, %243 : vector<8x128xf32>
    %247 = arith.mulf %237, %213 : vector<8x128xf32>
    %248 = arith.addf %246, %247 : vector<8x128xf32>
    %249 = arith.index_cast %c6_i32 : i32 to index
    %c0_60 = arith.constant 0 : index
    %c0_61 = arith.constant 0 : index
    %250 = vector.load %arg6[%249, %c0_60, %c0_61] : memref<8x8x128xf32, #tpu.memory_space<vmem>>, vector<1x8x128xf32>
    %251 = vector.shape_cast %250 : vector<1x8x128xf32> to vector<8x128xf32>
    %252 = vector.shape_cast %248 : vector<8x128xf32> to vector<1x8x128xf32>
    tpu.vector_store %arg6[%249, %c0_60, %c0_61], %252 {strides = array<i32>} : memref<8x8x128xf32, #tpu.memory_space<vmem>>, vector<1x8x128xf32>,
    %c7_i32 = arith.constant 7 : i32
    %253 = arith.index_cast %c7_i32 : i32 to index
    %c0_62 = arith.constant 0 : index
    %c0_63 = arith.constant 0 : index
    %254 = vector.load %arg2[%253, %c0_62, %c0_63] : memref<8x8x384xf32, #tpu.memory_space<vmem>>, vector<1x8x384xf32>
    %255 = vector.shape_cast %254 : vector<1x8x384xf32> to vector<8x384xf32>
    %cst_64 = arith.constant dense<0.000000e+00> : vector<8x384xf32>
    %256 = tpu.matmul %248, %3, %cst_64 {dimension_numbers = #tpu.dot_dimension_numbers<[1], [0], [0], [1], [0, 0, 1, 1], [], []>} : vector<8x128xf32>, vector<128x384xf32>, vector<8x384xf32> -> vector<8x384xf32>
    %257 = vector.extract_strided_slice %255 {offsets = [0, 0], sizes = [8, 128], strides = [1, 1]} : vector<8x384xf32> to vector<8x128xf32>
    %258 = vector.extract_strided_slice %256 {offsets = [0, 0], sizes = [8, 128], strides = [1, 1]} : vector<8x384xf32> to vector<8x128xf32>
    %259 = arith.addf %257, %258 : vector<8x128xf32>
    %260 = arith.negf %259 : vector<8x128xf32>
    %261 = math.exp %260 : vector<8x128xf32>
    %cst_65 = arith.constant 1.000000e+00 : f32
    %262 = vector.broadcast %cst_65 : f32 to vector<8x128xf32>
    %263 = arith.addf %262, %261 : vector<8x128xf32>
    %264 = arith.divf %262, %263 : vector<8x128xf32>
    %265 = vector.extract_strided_slice %255 {offsets = [0, 128], sizes = [8, 128], strides = [1, 1]} : vector<8x384xf32> to vector<8x128xf32>
    %266 = vector.extract_strided_slice %256 {offsets = [0, 128], sizes = [8, 128], strides = [1, 1]} : vector<8x384xf32> to vector<8x128xf32>
    %267 = arith.addf %265, %266 : vector<8x128xf32>
    %268 = arith.negf %267 : vector<8x128xf32>
    %269 = math.exp %268 : vector<8x128xf32>
    %cst_66 = arith.constant 1.000000e+00 : f32
    %270 = vector.broadcast %cst_66 : f32 to vector<8x128xf32>
    %271 = arith.addf %270, %269 : vector<8x128xf32>
    %272 = arith.divf %270, %271 : vector<8x128xf32>
    %273 = vector.extract_strided_slice %255 {offsets = [0, 256], sizes = [8, 128], strides = [1, 1]} : vector<8x384xf32> to vector<8x128xf32>
    %274 = vector.extract_strided_slice %256 {offsets = [0, 256], sizes = [8, 128], strides = [1, 1]} : vector<8x384xf32> to vector<8x128xf32>
    %275 = arith.addf %274, %6 : vector<8x128xf32>
    %276 = arith.mulf %264, %275 : vector<8x128xf32>
    %277 = arith.addf %273, %276 : vector<8x128xf32>
    %278 = math.tanh %277 : vector<8x128xf32>
    %cst_67 = arith.constant 1.000000e+00 : f32
    %279 = vector.broadcast %cst_67 : f32 to vector<8x128xf32>
    %280 = arith.subf %279, %272 : vector<8x128xf32>
    %281 = arith.mulf %280, %278 : vector<8x128xf32>
    %282 = arith.mulf %272, %248 : vector<8x128xf32>
    %283 = arith.addf %281, %282 : vector<8x128xf32>
    %284 = arith.index_cast %c7_i32 : i32 to index
    %c0_68 = arith.constant 0 : index
    %c0_69 = arith.constant 0 : index
    %285 = vector.load %arg6[%284, %c0_68, %c0_69] : memref<8x8x128xf32, #tpu.memory_space<vmem>>, vector<1x8x128xf32>
    %286 = vector.shape_cast %285 : vector<1x8x128xf32> to vector<8x128xf32>
    %287 = vector.shape_cast %283 : vector<8x128xf32> to vector<1x8x128xf32>
    tpu.vector_store %arg6[%284, %c0_68, %c0_69], %287 {strides = array<i32>} : memref<8x8x128xf32, #tpu.memory_space<vmem>>, vector<1x8x128xf32>,
    %c8_i32 = arith.constant 8 : i32
    %c0_70 = arith.constant 0 : index
    %c0_71 = arith.constant 0 : index
    %288 = vector.load %arg8[%c0_70, %c0_71] : memref<8x128xf32, #tpu.memory_space<vmem>>, vector<8x128xf32>
    tpu.vector_store %arg8[%c0_70, %c0_71], %283 {strides = array<i32>} : memref<8x128xf32, #tpu.memory_space<vmem>>, vector<8x128xf32>,
    %c0_72 = arith.constant 0 : index
    %c0_73 = arith.constant 0 : index
    %289 = vector.load %arg7[%c0_72, %c0_73] : memref<8x128xf32, #tpu.memory_space<vmem>>, vector<8x128xf32>
    tpu.vector_store %arg7[%c0_72, %c0_73], %283 {strides = array<i32>} : memref<8x128xf32, #tpu.memory_space<vmem>>, vector<8x128xf32>,
    return
  }
  func.func @transform_0(%arg0: i32, %arg1: i32) -> (i32, i32, i32) {
    %c0_i32 = arith.constant 0 : i32
    %c0_i32_0 = arith.constant 0 : i32
    return %arg1, %arg0, %c0_i32 : i32, i32, i32
  }
  func.func @transform_1(%arg0: i32, %arg1: i32) -> (i32, i32) {
    %c0_i32 = arith.constant 0 : i32
    %c0_i32_0 = arith.constant 0 : i32
    %c0_i32_1 = arith.constant 0 : i32
    return %c0_i32, %c0_i32_0 : i32, i32
  }
  func.func @transform_2(%arg0: i32, %arg1: i32) -> (i32, i32) {
    %c0_i32 = arith.constant 0 : i32
    %c0_i32_0 = arith.constant 0 : i32
    %c0_i32_1 = arith.constant 0 : i32
    return %c0_i32, %c0_i32_0 : i32, i32
  }
  func.func @transform_3(%arg0: i32, %arg1: i32) -> (i32, i32) {
    %c0_i32 = arith.constant 0 : i32
    %c0_i32_0 = arith.constant 0 : i32
    return %arg0, %c0_i32 : i32, i32
  }
  func.func @transform_4(%arg0: i32, %arg1: i32) -> (i32, i32, i32) {
    %c0_i32 = arith.constant 0 : i32
    %c0_i32_0 = arith.constant 0 : i32
    return %arg1, %arg0, %c0_i32 : i32, i32, i32
  }
  func.func @transform_5(%arg0: i32, %arg1: i32) -> (i32, i32) {
    %c0_i32 = arith.constant 0 : i32
    %c0_i32_0 = arith.constant 0 : i32
    return %arg0, %c0_i32 : i32, i32
  }
}

module attributes {stable_mosaic.version = 11 : i64} {
  func.func @kernel(%arg0: i32, %arg1: i32, %arg2: memref<8x8x384xf32, #tpu.memory_space<vmem>>, %arg3: memref<128x384xf32, #tpu.memory_space<vmem>>, %arg4: memref<1x128xf32, #tpu.memory_space<vmem>>, %arg5: memref<8x128xf32, #tpu.memory_space<vmem>>, %arg6: memref<128x128xf32, #tpu.memory_space<vmem>>, %arg7: memref<1x128xf32, #tpu.memory_space<vmem>>, %arg8: memref<8x8x128xf32, #tpu.memory_space<vmem>>, %arg9: memref<8x128xf32, #tpu.memory_space<vmem>>, %arg10: memref<8x128xf32, #tpu.memory_space<vmem>>, %arg11: memref<8x8x128xf32, #tpu.memory_space<vmem>>) attributes {dimension_semantics = [#tpu.dimension_semantics<parallel>, #tpu.dimension_semantics<arbitrary>], iteration_bounds = array<i64: 1, 1>, scalar_prefetch = 0 : i64, scratch_operands = 2 : i64, tpu.core_type = #tpu.core_type<tc>, window_params = [{transform_indices = @transform_0, window_bounds = array<i64: 8, 8, 384>}, {pipeline_mode = #tpu.pipeline_mode<synchronous>, transform_indices = @transform_1, window_bounds = array<i64: 128, 384>}, {pipeline_mode = #tpu.pipeline_mode<synchronous>, transform_indices = @transform_2, window_bounds = array<i64: 1, 128>}, {transform_indices = @transform_3, window_bounds = array<i64: 8, 128>}, {pipeline_mode = #tpu.pipeline_mode<synchronous>, transform_indices = @transform_4, window_bounds = array<i64: 128, 128>}, {pipeline_mode = #tpu.pipeline_mode<synchronous>, transform_indices = @transform_5, window_bounds = array<i64: 1, 128>}, {transform_indices = @transform_6, window_bounds = array<i64: 8, 8, 128>}, {transform_indices = @transform_7, window_bounds = array<i64: 8, 128>}]} {
    %c0_i32 = arith.constant 0 : i32
    %0 = arith.cmpi eq, %arg1, %c0_i32 : i32
    %1 = arith.extui %0 : i1 to i32
    %c0_i32_0 = arith.constant 0 : i32
    %2 = arith.cmpi ne, %1, %c0_i32_0 : i32
    scf.if %2 {
      %c0_99 = arith.constant 0 : index
      %c0_100 = arith.constant 0 : index
      %329 = vector.load %arg5[%c0_99, %c0_100] : memref<8x128xf32, #tpu.memory_space<vmem>>, vector<8x128xf32>
      %c0_101 = arith.constant 0 : index
      %c0_102 = arith.constant 0 : index
      %330 = vector.load %arg10[%c0_101, %c0_102] : memref<8x128xf32, #tpu.memory_space<vmem>>, vector<8x128xf32>
      tpu.vector_store %arg10[%c0_101, %c0_102], %329 {strides = array<i32>} : memref<8x128xf32, #tpu.memory_space<vmem>>, vector<8x128xf32>,
    } else {
    }
    %c0 = arith.constant 0 : index
    %c0_1 = arith.constant 0 : index
    %3 = vector.load %arg3[%c0, %c0_1] : memref<128x384xf32, #tpu.memory_space<vmem>>, vector<128x384xf32>
    %c0_2 = arith.constant 0 : index
    %c0_3 = arith.constant 0 : index
    %4 = vector.load %arg4[%c0_2, %c0_3] : memref<1x128xf32, #tpu.memory_space<vmem>>, vector<1x128xf32>
    %5 = vector.shape_cast %4 : vector<1x128xf32> to vector<1x128xf32>
    %6 = vector.broadcast %5 : vector<1x128xf32> to vector<8x128xf32>
    %c0_4 = arith.constant 0 : index
    %c0_5 = arith.constant 0 : index
    %7 = vector.load %arg10[%c0_4, %c0_5] : memref<8x128xf32, #tpu.memory_space<vmem>>, vector<8x128xf32>
    %c0_i32_6 = arith.constant 0 : i32
    %8 = arith.index_cast %c0_i32_6 : i32 to index
    %c0_7 = arith.constant 0 : index
    %c0_8 = arith.constant 0 : index
    %9 = vector.load %arg2[%8, %c0_7, %c0_8] : memref<8x8x384xf32, #tpu.memory_space<vmem>>, vector<1x8x384xf32>
    %10 = vector.shape_cast %9 : vector<1x8x384xf32> to vector<8x384xf32>
    %cst = arith.constant dense<0.000000e+00> : vector<8x384xf32>
    %11 = tpu.matmul %7, %3, %cst {dimension_numbers = #tpu.dot_dimension_numbers<[1], [0], [0], [1], [0, 0, 1, 1], [], []>} : vector<8x128xf32>, vector<128x384xf32>, vector<8x384xf32> -> vector<8x384xf32>
    %12 = vector.extract_strided_slice %10 {offsets = [0, 0], sizes = [8, 128], strides = [1, 1]} : vector<8x384xf32> to vector<8x128xf32>
    %13 = vector.extract_strided_slice %11 {offsets = [0, 0], sizes = [8, 128], strides = [1, 1]} : vector<8x384xf32> to vector<8x128xf32>
    %14 = arith.addf %12, %13 : vector<8x128xf32>
    %15 = arith.negf %14 : vector<8x128xf32>
    %16 = math.exp %15 : vector<8x128xf32>
    %cst_9 = arith.constant 1.000000e+00 : f32
    %17 = vector.broadcast %cst_9 : f32 to vector<8x128xf32>
    %18 = arith.addf %17, %16 : vector<8x128xf32>
    %19 = arith.divf %17, %18 : vector<8x128xf32>
    %20 = vector.extract_strided_slice %10 {offsets = [0, 128], sizes = [8, 128], strides = [1, 1]} : vector<8x384xf32> to vector<8x128xf32>
    %21 = vector.extract_strided_slice %11 {offsets = [0, 128], sizes = [8, 128], strides = [1, 1]} : vector<8x384xf32> to vector<8x128xf32>
    %22 = arith.addf %20, %21 : vector<8x128xf32>
    %23 = arith.negf %22 : vector<8x128xf32>
    %24 = math.exp %23 : vector<8x128xf32>
    %cst_10 = arith.constant 1.000000e+00 : f32
    %25 = vector.broadcast %cst_10 : f32 to vector<8x128xf32>
    %26 = arith.addf %25, %24 : vector<8x128xf32>
    %27 = arith.divf %25, %26 : vector<8x128xf32>
    %28 = vector.extract_strided_slice %10 {offsets = [0, 256], sizes = [8, 128], strides = [1, 1]} : vector<8x384xf32> to vector<8x128xf32>
    %29 = vector.extract_strided_slice %11 {offsets = [0, 256], sizes = [8, 128], strides = [1, 1]} : vector<8x384xf32> to vector<8x128xf32>
    %30 = arith.addf %29, %6 : vector<8x128xf32>
    %31 = arith.mulf %19, %30 : vector<8x128xf32>
    %32 = arith.addf %28, %31 : vector<8x128xf32>
    %33 = math.tanh %32 : vector<8x128xf32>
    %cst_11 = arith.constant 1.000000e+00 : f32
    %34 = vector.broadcast %cst_11 : f32 to vector<8x128xf32>
    %35 = arith.subf %34, %27 : vector<8x128xf32>
    %36 = arith.mulf %35, %33 : vector<8x128xf32>
    %37 = arith.mulf %27, %7 : vector<8x128xf32>
    %38 = arith.addf %36, %37 : vector<8x128xf32>
    %39 = arith.index_cast %c0_i32_6 : i32 to index
    %c0_12 = arith.constant 0 : index
    %c0_13 = arith.constant 0 : index
    %40 = vector.load %arg11[%39, %c0_12, %c0_13] : memref<8x8x128xf32, #tpu.memory_space<vmem>>, vector<1x8x128xf32>
    %41 = vector.shape_cast %40 : vector<1x8x128xf32> to vector<8x128xf32>
    %42 = vector.shape_cast %38 : vector<8x128xf32> to vector<1x8x128xf32>
    tpu.vector_store %arg11[%39, %c0_12, %c0_13], %42 {strides = array<i32>} : memref<8x8x128xf32, #tpu.memory_space<vmem>>, vector<1x8x128xf32>,
    %c1_i32 = arith.constant 1 : i32
    %43 = arith.index_cast %c1_i32 : i32 to index
    %c0_14 = arith.constant 0 : index
    %c0_15 = arith.constant 0 : index
    %44 = vector.load %arg2[%43, %c0_14, %c0_15] : memref<8x8x384xf32, #tpu.memory_space<vmem>>, vector<1x8x384xf32>
    %45 = vector.shape_cast %44 : vector<1x8x384xf32> to vector<8x384xf32>
    %cst_16 = arith.constant dense<0.000000e+00> : vector<8x384xf32>
    %46 = tpu.matmul %38, %3, %cst_16 {dimension_numbers = #tpu.dot_dimension_numbers<[1], [0], [0], [1], [0, 0, 1, 1], [], []>} : vector<8x128xf32>, vector<128x384xf32>, vector<8x384xf32> -> vector<8x384xf32>
    %47 = vector.extract_strided_slice %45 {offsets = [0, 0], sizes = [8, 128], strides = [1, 1]} : vector<8x384xf32> to vector<8x128xf32>
    %48 = vector.extract_strided_slice %46 {offsets = [0, 0], sizes = [8, 128], strides = [1, 1]} : vector<8x384xf32> to vector<8x128xf32>
    %49 = arith.addf %47, %48 : vector<8x128xf32>
    %50 = arith.negf %49 : vector<8x128xf32>
    %51 = math.exp %50 : vector<8x128xf32>
    %cst_17 = arith.constant 1.000000e+00 : f32
    %52 = vector.broadcast %cst_17 : f32 to vector<8x128xf32>
    %53 = arith.addf %52, %51 : vector<8x128xf32>
    %54 = arith.divf %52, %53 : vector<8x128xf32>
    %55 = vector.extract_strided_slice %45 {offsets = [0, 128], sizes = [8, 128], strides = [1, 1]} : vector<8x384xf32> to vector<8x128xf32>
    %56 = vector.extract_strided_slice %46 {offsets = [0, 128], sizes = [8, 128], strides = [1, 1]} : vector<8x384xf32> to vector<8x128xf32>
    %57 = arith.addf %55, %56 : vector<8x128xf32>
    %58 = arith.negf %57 : vector<8x128xf32>
    %59 = math.exp %58 : vector<8x128xf32>
    %cst_18 = arith.constant 1.000000e+00 : f32
    %60 = vector.broadcast %cst_18 : f32 to vector<8x128xf32>
    %61 = arith.addf %60, %59 : vector<8x128xf32>
    %62 = arith.divf %60, %61 : vector<8x128xf32>
    %63 = vector.extract_strided_slice %45 {offsets = [0, 256], sizes = [8, 128], strides = [1, 1]} : vector<8x384xf32> to vector<8x128xf32>
    %64 = vector.extract_strided_slice %46 {offsets = [0, 256], sizes = [8, 128], strides = [1, 1]} : vector<8x384xf32> to vector<8x128xf32>
    %65 = arith.addf %64, %6 : vector<8x128xf32>
    %66 = arith.mulf %54, %65 : vector<8x128xf32>
    %67 = arith.addf %63, %66 : vector<8x128xf32>
    %68 = math.tanh %67 : vector<8x128xf32>
    %cst_19 = arith.constant 1.000000e+00 : f32
    %69 = vector.broadcast %cst_19 : f32 to vector<8x128xf32>
    %70 = arith.subf %69, %62 : vector<8x128xf32>
    %71 = arith.mulf %70, %68 : vector<8x128xf32>
    %72 = arith.mulf %62, %38 : vector<8x128xf32>
    %73 = arith.addf %71, %72 : vector<8x128xf32>
    %74 = arith.index_cast %c1_i32 : i32 to index
    %c0_20 = arith.constant 0 : index
    %c0_21 = arith.constant 0 : index
    %75 = vector.load %arg11[%74, %c0_20, %c0_21] : memref<8x8x128xf32, #tpu.memory_space<vmem>>, vector<1x8x128xf32>
    %76 = vector.shape_cast %75 : vector<1x8x128xf32> to vector<8x128xf32>
    %77 = vector.shape_cast %73 : vector<8x128xf32> to vector<1x8x128xf32>
    tpu.vector_store %arg11[%74, %c0_20, %c0_21], %77 {strides = array<i32>} : memref<8x8x128xf32, #tpu.memory_space<vmem>>, vector<1x8x128xf32>,
    %c2_i32 = arith.constant 2 : i32
    %78 = arith.index_cast %c2_i32 : i32 to index
    %c0_22 = arith.constant 0 : index
    %c0_23 = arith.constant 0 : index
    %79 = vector.load %arg2[%78, %c0_22, %c0_23] : memref<8x8x384xf32, #tpu.memory_space<vmem>>, vector<1x8x384xf32>
    %80 = vector.shape_cast %79 : vector<1x8x384xf32> to vector<8x384xf32>
    %cst_24 = arith.constant dense<0.000000e+00> : vector<8x384xf32>
    %81 = tpu.matmul %73, %3, %cst_24 {dimension_numbers = #tpu.dot_dimension_numbers<[1], [0], [0], [1], [0, 0, 1, 1], [], []>} : vector<8x128xf32>, vector<128x384xf32>, vector<8x384xf32> -> vector<8x384xf32>
    %82 = vector.extract_strided_slice %80 {offsets = [0, 0], sizes = [8, 128], strides = [1, 1]} : vector<8x384xf32> to vector<8x128xf32>
    %83 = vector.extract_strided_slice %81 {offsets = [0, 0], sizes = [8, 128], strides = [1, 1]} : vector<8x384xf32> to vector<8x128xf32>
    %84 = arith.addf %82, %83 : vector<8x128xf32>
    %85 = arith.negf %84 : vector<8x128xf32>
    %86 = math.exp %85 : vector<8x128xf32>
    %cst_25 = arith.constant 1.000000e+00 : f32
    %87 = vector.broadcast %cst_25 : f32 to vector<8x128xf32>
    %88 = arith.addf %87, %86 : vector<8x128xf32>
    %89 = arith.divf %87, %88 : vector<8x128xf32>
    %90 = vector.extract_strided_slice %80 {offsets = [0, 128], sizes = [8, 128], strides = [1, 1]} : vector<8x384xf32> to vector<8x128xf32>
    %91 = vector.extract_strided_slice %81 {offsets = [0, 128], sizes = [8, 128], strides = [1, 1]} : vector<8x384xf32> to vector<8x128xf32>
    %92 = arith.addf %90, %91 : vector<8x128xf32>
    %93 = arith.negf %92 : vector<8x128xf32>
    %94 = math.exp %93 : vector<8x128xf32>
    %cst_26 = arith.constant 1.000000e+00 : f32
    %95 = vector.broadcast %cst_26 : f32 to vector<8x128xf32>
    %96 = arith.addf %95, %94 : vector<8x128xf32>
    %97 = arith.divf %95, %96 : vector<8x128xf32>
    %98 = vector.extract_strided_slice %80 {offsets = [0, 256], sizes = [8, 128], strides = [1, 1]} : vector<8x384xf32> to vector<8x128xf32>
    %99 = vector.extract_strided_slice %81 {offsets = [0, 256], sizes = [8, 128], strides = [1, 1]} : vector<8x384xf32> to vector<8x128xf32>
    %100 = arith.addf %99, %6 : vector<8x128xf32>
    %101 = arith.mulf %89, %100 : vector<8x128xf32>
    %102 = arith.addf %98, %101 : vector<8x128xf32>
    %103 = math.tanh %102 : vector<8x128xf32>
    %cst_27 = arith.constant 1.000000e+00 : f32
    %104 = vector.broadcast %cst_27 : f32 to vector<8x128xf32>
    %105 = arith.subf %104, %97 : vector<8x128xf32>
    %106 = arith.mulf %105, %103 : vector<8x128xf32>
    %107 = arith.mulf %97, %73 : vector<8x128xf32>
    %108 = arith.addf %106, %107 : vector<8x128xf32>
    %109 = arith.index_cast %c2_i32 : i32 to index
    %c0_28 = arith.constant 0 : index
    %c0_29 = arith.constant 0 : index
    %110 = vector.load %arg11[%109, %c0_28, %c0_29] : memref<8x8x128xf32, #tpu.memory_space<vmem>>, vector<1x8x128xf32>
    %111 = vector.shape_cast %110 : vector<1x8x128xf32> to vector<8x128xf32>
    %112 = vector.shape_cast %108 : vector<8x128xf32> to vector<1x8x128xf32>
    tpu.vector_store %arg11[%109, %c0_28, %c0_29], %112 {strides = array<i32>} : memref<8x8x128xf32, #tpu.memory_space<vmem>>, vector<1x8x128xf32>,
    %c3_i32 = arith.constant 3 : i32
    %113 = arith.index_cast %c3_i32 : i32 to index
    %c0_30 = arith.constant 0 : index
    %c0_31 = arith.constant 0 : index
    %114 = vector.load %arg2[%113, %c0_30, %c0_31] : memref<8x8x384xf32, #tpu.memory_space<vmem>>, vector<1x8x384xf32>
    %115 = vector.shape_cast %114 : vector<1x8x384xf32> to vector<8x384xf32>
    %cst_32 = arith.constant dense<0.000000e+00> : vector<8x384xf32>
    %116 = tpu.matmul %108, %3, %cst_32 {dimension_numbers = #tpu.dot_dimension_numbers<[1], [0], [0], [1], [0, 0, 1, 1], [], []>} : vector<8x128xf32>, vector<128x384xf32>, vector<8x384xf32> -> vector<8x384xf32>
    %117 = vector.extract_strided_slice %115 {offsets = [0, 0], sizes = [8, 128], strides = [1, 1]} : vector<8x384xf32> to vector<8x128xf32>
    %118 = vector.extract_strided_slice %116 {offsets = [0, 0], sizes = [8, 128], strides = [1, 1]} : vector<8x384xf32> to vector<8x128xf32>
    %119 = arith.addf %117, %118 : vector<8x128xf32>
    %120 = arith.negf %119 : vector<8x128xf32>
    %121 = math.exp %120 : vector<8x128xf32>
    %cst_33 = arith.constant 1.000000e+00 : f32
    %122 = vector.broadcast %cst_33 : f32 to vector<8x128xf32>
    %123 = arith.addf %122, %121 : vector<8x128xf32>
    %124 = arith.divf %122, %123 : vector<8x128xf32>
    %125 = vector.extract_strided_slice %115 {offsets = [0, 128], sizes = [8, 128], strides = [1, 1]} : vector<8x384xf32> to vector<8x128xf32>
    %126 = vector.extract_strided_slice %116 {offsets = [0, 128], sizes = [8, 128], strides = [1, 1]} : vector<8x384xf32> to vector<8x128xf32>
    %127 = arith.addf %125, %126 : vector<8x128xf32>
    %128 = arith.negf %127 : vector<8x128xf32>
    %129 = math.exp %128 : vector<8x128xf32>
    %cst_34 = arith.constant 1.000000e+00 : f32
    %130 = vector.broadcast %cst_34 : f32 to vector<8x128xf32>
    %131 = arith.addf %130, %129 : vector<8x128xf32>
    %132 = arith.divf %130, %131 : vector<8x128xf32>
    %133 = vector.extract_strided_slice %115 {offsets = [0, 256], sizes = [8, 128], strides = [1, 1]} : vector<8x384xf32> to vector<8x128xf32>
    %134 = vector.extract_strided_slice %116 {offsets = [0, 256], sizes = [8, 128], strides = [1, 1]} : vector<8x384xf32> to vector<8x128xf32>
    %135 = arith.addf %134, %6 : vector<8x128xf32>
    %136 = arith.mulf %124, %135 : vector<8x128xf32>
    %137 = arith.addf %133, %136 : vector<8x128xf32>
    %138 = math.tanh %137 : vector<8x128xf32>
    %cst_35 = arith.constant 1.000000e+00 : f32
    %139 = vector.broadcast %cst_35 : f32 to vector<8x128xf32>
    %140 = arith.subf %139, %132 : vector<8x128xf32>
    %141 = arith.mulf %140, %138 : vector<8x128xf32>
    %142 = arith.mulf %132, %108 : vector<8x128xf32>
    %143 = arith.addf %141, %142 : vector<8x128xf32>
    %144 = arith.index_cast %c3_i32 : i32 to index
    %c0_36 = arith.constant 0 : index
    %c0_37 = arith.constant 0 : index
    %145 = vector.load %arg11[%144, %c0_36, %c0_37] : memref<8x8x128xf32, #tpu.memory_space<vmem>>, vector<1x8x128xf32>
    %146 = vector.shape_cast %145 : vector<1x8x128xf32> to vector<8x128xf32>
    %147 = vector.shape_cast %143 : vector<8x128xf32> to vector<1x8x128xf32>
    tpu.vector_store %arg11[%144, %c0_36, %c0_37], %147 {strides = array<i32>} : memref<8x8x128xf32, #tpu.memory_space<vmem>>, vector<1x8x128xf32>,
    %c4_i32 = arith.constant 4 : i32
    %148 = arith.index_cast %c4_i32 : i32 to index
    %c0_38 = arith.constant 0 : index
    %c0_39 = arith.constant 0 : index
    %149 = vector.load %arg2[%148, %c0_38, %c0_39] : memref<8x8x384xf32, #tpu.memory_space<vmem>>, vector<1x8x384xf32>
    %150 = vector.shape_cast %149 : vector<1x8x384xf32> to vector<8x384xf32>
    %cst_40 = arith.constant dense<0.000000e+00> : vector<8x384xf32>
    %151 = tpu.matmul %143, %3, %cst_40 {dimension_numbers = #tpu.dot_dimension_numbers<[1], [0], [0], [1], [0, 0, 1, 1], [], []>} : vector<8x128xf32>, vector<128x384xf32>, vector<8x384xf32> -> vector<8x384xf32>
    %152 = vector.extract_strided_slice %150 {offsets = [0, 0], sizes = [8, 128], strides = [1, 1]} : vector<8x384xf32> to vector<8x128xf32>
    %153 = vector.extract_strided_slice %151 {offsets = [0, 0], sizes = [8, 128], strides = [1, 1]} : vector<8x384xf32> to vector<8x128xf32>
    %154 = arith.addf %152, %153 : vector<8x128xf32>
    %155 = arith.negf %154 : vector<8x128xf32>
    %156 = math.exp %155 : vector<8x128xf32>
    %cst_41 = arith.constant 1.000000e+00 : f32
    %157 = vector.broadcast %cst_41 : f32 to vector<8x128xf32>
    %158 = arith.addf %157, %156 : vector<8x128xf32>
    %159 = arith.divf %157, %158 : vector<8x128xf32>
    %160 = vector.extract_strided_slice %150 {offsets = [0, 128], sizes = [8, 128], strides = [1, 1]} : vector<8x384xf32> to vector<8x128xf32>
    %161 = vector.extract_strided_slice %151 {offsets = [0, 128], sizes = [8, 128], strides = [1, 1]} : vector<8x384xf32> to vector<8x128xf32>
    %162 = arith.addf %160, %161 : vector<8x128xf32>
    %163 = arith.negf %162 : vector<8x128xf32>
    %164 = math.exp %163 : vector<8x128xf32>
    %cst_42 = arith.constant 1.000000e+00 : f32
    %165 = vector.broadcast %cst_42 : f32 to vector<8x128xf32>
    %166 = arith.addf %165, %164 : vector<8x128xf32>
    %167 = arith.divf %165, %166 : vector<8x128xf32>
    %168 = vector.extract_strided_slice %150 {offsets = [0, 256], sizes = [8, 128], strides = [1, 1]} : vector<8x384xf32> to vector<8x128xf32>
    %169 = vector.extract_strided_slice %151 {offsets = [0, 256], sizes = [8, 128], strides = [1, 1]} : vector<8x384xf32> to vector<8x128xf32>
    %170 = arith.addf %169, %6 : vector<8x128xf32>
    %171 = arith.mulf %159, %170 : vector<8x128xf32>
    %172 = arith.addf %168, %171 : vector<8x128xf32>
    %173 = math.tanh %172 : vector<8x128xf32>
    %cst_43 = arith.constant 1.000000e+00 : f32
    %174 = vector.broadcast %cst_43 : f32 to vector<8x128xf32>
    %175 = arith.subf %174, %167 : vector<8x128xf32>
    %176 = arith.mulf %175, %173 : vector<8x128xf32>
    %177 = arith.mulf %167, %143 : vector<8x128xf32>
    %178 = arith.addf %176, %177 : vector<8x128xf32>
    %179 = arith.index_cast %c4_i32 : i32 to index
    %c0_44 = arith.constant 0 : index
    %c0_45 = arith.constant 0 : index
    %180 = vector.load %arg11[%179, %c0_44, %c0_45] : memref<8x8x128xf32, #tpu.memory_space<vmem>>, vector<1x8x128xf32>
    %181 = vector.shape_cast %180 : vector<1x8x128xf32> to vector<8x128xf32>
    %182 = vector.shape_cast %178 : vector<8x128xf32> to vector<1x8x128xf32>
    tpu.vector_store %arg11[%179, %c0_44, %c0_45], %182 {strides = array<i32>} : memref<8x8x128xf32, #tpu.memory_space<vmem>>, vector<1x8x128xf32>,
    %c5_i32 = arith.constant 5 : i32
    %183 = arith.index_cast %c5_i32 : i32 to index
    %c0_46 = arith.constant 0 : index
    %c0_47 = arith.constant 0 : index
    %184 = vector.load %arg2[%183, %c0_46, %c0_47] : memref<8x8x384xf32, #tpu.memory_space<vmem>>, vector<1x8x384xf32>
    %185 = vector.shape_cast %184 : vector<1x8x384xf32> to vector<8x384xf32>
    %cst_48 = arith.constant dense<0.000000e+00> : vector<8x384xf32>
    %186 = tpu.matmul %178, %3, %cst_48 {dimension_numbers = #tpu.dot_dimension_numbers<[1], [0], [0], [1], [0, 0, 1, 1], [], []>} : vector<8x128xf32>, vector<128x384xf32>, vector<8x384xf32> -> vector<8x384xf32>
    %187 = vector.extract_strided_slice %185 {offsets = [0, 0], sizes = [8, 128], strides = [1, 1]} : vector<8x384xf32> to vector<8x128xf32>
    %188 = vector.extract_strided_slice %186 {offsets = [0, 0], sizes = [8, 128], strides = [1, 1]} : vector<8x384xf32> to vector<8x128xf32>
    %189 = arith.addf %187, %188 : vector<8x128xf32>
    %190 = arith.negf %189 : vector<8x128xf32>
    %191 = math.exp %190 : vector<8x128xf32>
    %cst_49 = arith.constant 1.000000e+00 : f32
    %192 = vector.broadcast %cst_49 : f32 to vector<8x128xf32>
    %193 = arith.addf %192, %191 : vector<8x128xf32>
    %194 = arith.divf %192, %193 : vector<8x128xf32>
    %195 = vector.extract_strided_slice %185 {offsets = [0, 128], sizes = [8, 128], strides = [1, 1]} : vector<8x384xf32> to vector<8x128xf32>
    %196 = vector.extract_strided_slice %186 {offsets = [0, 128], sizes = [8, 128], strides = [1, 1]} : vector<8x384xf32> to vector<8x128xf32>
    %197 = arith.addf %195, %196 : vector<8x128xf32>
    %198 = arith.negf %197 : vector<8x128xf32>
    %199 = math.exp %198 : vector<8x128xf32>
    %cst_50 = arith.constant 1.000000e+00 : f32
    %200 = vector.broadcast %cst_50 : f32 to vector<8x128xf32>
    %201 = arith.addf %200, %199 : vector<8x128xf32>
    %202 = arith.divf %200, %201 : vector<8x128xf32>
    %203 = vector.extract_strided_slice %185 {offsets = [0, 256], sizes = [8, 128], strides = [1, 1]} : vector<8x384xf32> to vector<8x128xf32>
    %204 = vector.extract_strided_slice %186 {offsets = [0, 256], sizes = [8, 128], strides = [1, 1]} : vector<8x384xf32> to vector<8x128xf32>
    %205 = arith.addf %204, %6 : vector<8x128xf32>
    %206 = arith.mulf %194, %205 : vector<8x128xf32>
    %207 = arith.addf %203, %206 : vector<8x128xf32>
    %208 = math.tanh %207 : vector<8x128xf32>
    %cst_51 = arith.constant 1.000000e+00 : f32
    %209 = vector.broadcast %cst_51 : f32 to vector<8x128xf32>
    %210 = arith.subf %209, %202 : vector<8x128xf32>
    %211 = arith.mulf %210, %208 : vector<8x128xf32>
    %212 = arith.mulf %202, %178 : vector<8x128xf32>
    %213 = arith.addf %211, %212 : vector<8x128xf32>
    %214 = arith.index_cast %c5_i32 : i32 to index
    %c0_52 = arith.constant 0 : index
    %c0_53 = arith.constant 0 : index
    %215 = vector.load %arg11[%214, %c0_52, %c0_53] : memref<8x8x128xf32, #tpu.memory_space<vmem>>, vector<1x8x128xf32>
    %216 = vector.shape_cast %215 : vector<1x8x128xf32> to vector<8x128xf32>
    %217 = vector.shape_cast %213 : vector<8x128xf32> to vector<1x8x128xf32>
    tpu.vector_store %arg11[%214, %c0_52, %c0_53], %217 {strides = array<i32>} : memref<8x8x128xf32, #tpu.memory_space<vmem>>, vector<1x8x128xf32>,
    %c6_i32 = arith.constant 6 : i32
    %218 = arith.index_cast %c6_i32 : i32 to index
    %c0_54 = arith.constant 0 : index
    %c0_55 = arith.constant 0 : index
    %219 = vector.load %arg2[%218, %c0_54, %c0_55] : memref<8x8x384xf32, #tpu.memory_space<vmem>>, vector<1x8x384xf32>
    %220 = vector.shape_cast %219 : vector<1x8x384xf32> to vector<8x384xf32>
    %cst_56 = arith.constant dense<0.000000e+00> : vector<8x384xf32>
    %221 = tpu.matmul %213, %3, %cst_56 {dimension_numbers = #tpu.dot_dimension_numbers<[1], [0], [0], [1], [0, 0, 1, 1], [], []>} : vector<8x128xf32>, vector<128x384xf32>, vector<8x384xf32> -> vector<8x384xf32>
    %222 = vector.extract_strided_slice %220 {offsets = [0, 0], sizes = [8, 128], strides = [1, 1]} : vector<8x384xf32> to vector<8x128xf32>
    %223 = vector.extract_strided_slice %221 {offsets = [0, 0], sizes = [8, 128], strides = [1, 1]} : vector<8x384xf32> to vector<8x128xf32>
    %224 = arith.addf %222, %223 : vector<8x128xf32>
    %225 = arith.negf %224 : vector<8x128xf32>
    %226 = math.exp %225 : vector<8x128xf32>
    %cst_57 = arith.constant 1.000000e+00 : f32
    %227 = vector.broadcast %cst_57 : f32 to vector<8x128xf32>
    %228 = arith.addf %227, %226 : vector<8x128xf32>
    %229 = arith.divf %227, %228 : vector<8x128xf32>
    %230 = vector.extract_strided_slice %220 {offsets = [0, 128], sizes = [8, 128], strides = [1, 1]} : vector<8x384xf32> to vector<8x128xf32>
    %231 = vector.extract_strided_slice %221 {offsets = [0, 128], sizes = [8, 128], strides = [1, 1]} : vector<8x384xf32> to vector<8x128xf32>
    %232 = arith.addf %230, %231 : vector<8x128xf32>
    %233 = arith.negf %232 : vector<8x128xf32>
    %234 = math.exp %233 : vector<8x128xf32>
    %cst_58 = arith.constant 1.000000e+00 : f32
    %235 = vector.broadcast %cst_58 : f32 to vector<8x128xf32>
    %236 = arith.addf %235, %234 : vector<8x128xf32>
    %237 = arith.divf %235, %236 : vector<8x128xf32>
    %238 = vector.extract_strided_slice %220 {offsets = [0, 256], sizes = [8, 128], strides = [1, 1]} : vector<8x384xf32> to vector<8x128xf32>
    %239 = vector.extract_strided_slice %221 {offsets = [0, 256], sizes = [8, 128], strides = [1, 1]} : vector<8x384xf32> to vector<8x128xf32>
    %240 = arith.addf %239, %6 : vector<8x128xf32>
    %241 = arith.mulf %229, %240 : vector<8x128xf32>
    %242 = arith.addf %238, %241 : vector<8x128xf32>
    %243 = math.tanh %242 : vector<8x128xf32>
    %cst_59 = arith.constant 1.000000e+00 : f32
    %244 = vector.broadcast %cst_59 : f32 to vector<8x128xf32>
    %245 = arith.subf %244, %237 : vector<8x128xf32>
    %246 = arith.mulf %245, %243 : vector<8x128xf32>
    %247 = arith.mulf %237, %213 : vector<8x128xf32>
    %248 = arith.addf %246, %247 : vector<8x128xf32>
    %249 = arith.index_cast %c6_i32 : i32 to index
    %c0_60 = arith.constant 0 : index
    %c0_61 = arith.constant 0 : index
    %250 = vector.load %arg11[%249, %c0_60, %c0_61] : memref<8x8x128xf32, #tpu.memory_space<vmem>>, vector<1x8x128xf32>
    %251 = vector.shape_cast %250 : vector<1x8x128xf32> to vector<8x128xf32>
    %252 = vector.shape_cast %248 : vector<8x128xf32> to vector<1x8x128xf32>
    tpu.vector_store %arg11[%249, %c0_60, %c0_61], %252 {strides = array<i32>} : memref<8x8x128xf32, #tpu.memory_space<vmem>>, vector<1x8x128xf32>,
    %c7_i32 = arith.constant 7 : i32
    %253 = arith.index_cast %c7_i32 : i32 to index
    %c0_62 = arith.constant 0 : index
    %c0_63 = arith.constant 0 : index
    %254 = vector.load %arg2[%253, %c0_62, %c0_63] : memref<8x8x384xf32, #tpu.memory_space<vmem>>, vector<1x8x384xf32>
    %255 = vector.shape_cast %254 : vector<1x8x384xf32> to vector<8x384xf32>
    %cst_64 = arith.constant dense<0.000000e+00> : vector<8x384xf32>
    %256 = tpu.matmul %248, %3, %cst_64 {dimension_numbers = #tpu.dot_dimension_numbers<[1], [0], [0], [1], [0, 0, 1, 1], [], []>} : vector<8x128xf32>, vector<128x384xf32>, vector<8x384xf32> -> vector<8x384xf32>
    %257 = vector.extract_strided_slice %255 {offsets = [0, 0], sizes = [8, 128], strides = [1, 1]} : vector<8x384xf32> to vector<8x128xf32>
    %258 = vector.extract_strided_slice %256 {offsets = [0, 0], sizes = [8, 128], strides = [1, 1]} : vector<8x384xf32> to vector<8x128xf32>
    %259 = arith.addf %257, %258 : vector<8x128xf32>
    %260 = arith.negf %259 : vector<8x128xf32>
    %261 = math.exp %260 : vector<8x128xf32>
    %cst_65 = arith.constant 1.000000e+00 : f32
    %262 = vector.broadcast %cst_65 : f32 to vector<8x128xf32>
    %263 = arith.addf %262, %261 : vector<8x128xf32>
    %264 = arith.divf %262, %263 : vector<8x128xf32>
    %265 = vector.extract_strided_slice %255 {offsets = [0, 128], sizes = [8, 128], strides = [1, 1]} : vector<8x384xf32> to vector<8x128xf32>
    %266 = vector.extract_strided_slice %256 {offsets = [0, 128], sizes = [8, 128], strides = [1, 1]} : vector<8x384xf32> to vector<8x128xf32>
    %267 = arith.addf %265, %266 : vector<8x128xf32>
    %268 = arith.negf %267 : vector<8x128xf32>
    %269 = math.exp %268 : vector<8x128xf32>
    %cst_66 = arith.constant 1.000000e+00 : f32
    %270 = vector.broadcast %cst_66 : f32 to vector<8x128xf32>
    %271 = arith.addf %270, %269 : vector<8x128xf32>
    %272 = arith.divf %270, %271 : vector<8x128xf32>
    %273 = vector.extract_strided_slice %255 {offsets = [0, 256], sizes = [8, 128], strides = [1, 1]} : vector<8x384xf32> to vector<8x128xf32>
    %274 = vector.extract_strided_slice %256 {offsets = [0, 256], sizes = [8, 128], strides = [1, 1]} : vector<8x384xf32> to vector<8x128xf32>
    %275 = arith.addf %274, %6 : vector<8x128xf32>
    %276 = arith.mulf %264, %275 : vector<8x128xf32>
    %277 = arith.addf %273, %276 : vector<8x128xf32>
    %278 = math.tanh %277 : vector<8x128xf32>
    %cst_67 = arith.constant 1.000000e+00 : f32
    %279 = vector.broadcast %cst_67 : f32 to vector<8x128xf32>
    %280 = arith.subf %279, %272 : vector<8x128xf32>
    %281 = arith.mulf %280, %278 : vector<8x128xf32>
    %282 = arith.mulf %272, %248 : vector<8x128xf32>
    %283 = arith.addf %281, %282 : vector<8x128xf32>
    %284 = arith.index_cast %c7_i32 : i32 to index
    %c0_68 = arith.constant 0 : index
    %c0_69 = arith.constant 0 : index
    %285 = vector.load %arg11[%284, %c0_68, %c0_69] : memref<8x8x128xf32, #tpu.memory_space<vmem>>, vector<1x8x128xf32>
    %286 = vector.shape_cast %285 : vector<1x8x128xf32> to vector<8x128xf32>
    %287 = vector.shape_cast %283 : vector<8x128xf32> to vector<1x8x128xf32>
    tpu.vector_store %arg11[%284, %c0_68, %c0_69], %287 {strides = array<i32>} : memref<8x8x128xf32, #tpu.memory_space<vmem>>, vector<1x8x128xf32>,
    %c8_i32 = arith.constant 8 : i32
    %c0_70 = arith.constant 0 : index
    %c0_71 = arith.constant 0 : index
    %288 = vector.load %arg10[%c0_70, %c0_71] : memref<8x128xf32, #tpu.memory_space<vmem>>, vector<8x128xf32>
    tpu.vector_store %arg10[%c0_70, %c0_71], %283 {strides = array<i32>} : memref<8x128xf32, #tpu.memory_space<vmem>>, vector<8x128xf32>,
    %c0_72 = arith.constant 0 : index
    %c0_73 = arith.constant 0 : index
    %289 = vector.load %arg9[%c0_72, %c0_73] : memref<8x128xf32, #tpu.memory_space<vmem>>, vector<8x128xf32>
    tpu.vector_store %arg9[%c0_72, %c0_73], %283 {strides = array<i32>} : memref<8x128xf32, #tpu.memory_space<vmem>>, vector<8x128xf32>,
    %c0_74 = arith.constant 0 : index
    %c0_75 = arith.constant 0 : index
    %290 = vector.load %arg6[%c0_74, %c0_75] : memref<128x128xf32, #tpu.memory_space<vmem>>, vector<128x128xf32>
    %c0_76 = arith.constant 0 : index
    %c0_77 = arith.constant 0 : index
    %c0_78 = arith.constant 0 : index
    %291 = vector.load %arg11[%c0_76, %c0_77, %c0_78] : memref<8x8x128xf32, #tpu.memory_space<vmem>>, vector<8x8x128xf32>
    %292 = vector.shape_cast %291 : vector<8x8x128xf32> to vector<64x128xf32>
    %cst_79 = arith.constant dense<0.000000e+00> : vector<64x128xf32>
    %293 = tpu.matmul %292, %290, %cst_79 {dimension_numbers = #tpu.dot_dimension_numbers<[1], [0], [0], [1], [0, 0, 1, 1], [], []>} : vector<64x128xf32>, vector<128x128xf32>, vector<64x128xf32> -> vector<64x128xf32>
    %c0_80 = arith.constant 0 : index
    %c0_81 = arith.constant 0 : index
    %294 = vector.load %arg7[%c0_80, %c0_81] : memref<1x128xf32, #tpu.memory_space<vmem>>, vector<1x128xf32>
    %295 = vector.broadcast %294 : vector<1x128xf32> to vector<64x128xf32>
    %296 = arith.addf %293, %295 : vector<64x128xf32>
    %297 = vector.extract_strided_slice %296 {offsets = [0, 0], sizes = [8, 128], strides = [1, 1]} : vector<64x128xf32> to vector<8x128xf32>
    %c0_82 = arith.constant 0 : index
    %c0_83 = arith.constant 0 : index
    %c0_84 = arith.constant 0 : index
    %298 = vector.load %arg8[%c0_82, %c0_83, %c0_84] : memref<8x8x128xf32, #tpu.memory_space<vmem>>, vector<8x1x128xf32>
    %299 = vector.shape_cast %298 : vector<8x1x128xf32> to vector<8x128xf32>
    %300 = vector.shape_cast %297 : vector<8x128xf32> to vector<8x1x128xf32>
    tpu.vector_store %arg8[%c0_82, %c0_83, %c0_84], %300 {strides = array<i32>} : memref<8x8x128xf32, #tpu.memory_space<vmem>>, vector<8x1x128xf32>,
    %301 = vector.extract_strided_slice %296 {offsets = [8, 0], sizes = [8, 128], strides = [1, 1]} : vector<64x128xf32> to vector<8x128xf32>
    %c0_85 = arith.constant 0 : index
    %c1 = arith.constant 1 : index
    %c0_86 = arith.constant 0 : index
    %302 = vector.load %arg8[%c0_85, %c1, %c0_86] : memref<8x8x128xf32, #tpu.memory_space<vmem>>, vector<8x1x128xf32>
    %303 = vector.shape_cast %302 : vector<8x1x128xf32> to vector<8x128xf32>
    %304 = vector.shape_cast %301 : vector<8x128xf32> to vector<8x1x128xf32>
    tpu.vector_store %arg8[%c0_85, %c1, %c0_86], %304 {strides = array<i32>} : memref<8x8x128xf32, #tpu.memory_space<vmem>>, vector<8x1x128xf32>,
    %305 = vector.extract_strided_slice %296 {offsets = [16, 0], sizes = [8, 128], strides = [1, 1]} : vector<64x128xf32> to vector<8x128xf32>
    %c0_87 = arith.constant 0 : index
    %c2 = arith.constant 2 : index
    %c0_88 = arith.constant 0 : index
    %306 = vector.load %arg8[%c0_87, %c2, %c0_88] : memref<8x8x128xf32, #tpu.memory_space<vmem>>, vector<8x1x128xf32>
    %307 = vector.shape_cast %306 : vector<8x1x128xf32> to vector<8x128xf32>
    %308 = vector.shape_cast %305 : vector<8x128xf32> to vector<8x1x128xf32>
    tpu.vector_store %arg8[%c0_87, %c2, %c0_88], %308 {strides = array<i32>} : memref<8x8x128xf32, #tpu.memory_space<vmem>>, vector<8x1x128xf32>,
    %309 = vector.extract_strided_slice %296 {offsets = [24, 0], sizes = [8, 128], strides = [1, 1]} : vector<64x128xf32> to vector<8x128xf32>
    %c0_89 = arith.constant 0 : index
    %c3 = arith.constant 3 : index
    %c0_90 = arith.constant 0 : index
    %310 = vector.load %arg8[%c0_89, %c3, %c0_90] : memref<8x8x128xf32, #tpu.memory_space<vmem>>, vector<8x1x128xf32>
    %311 = vector.shape_cast %310 : vector<8x1x128xf32> to vector<8x128xf32>
    %312 = vector.shape_cast %309 : vector<8x128xf32> to vector<8x1x128xf32>
    tpu.vector_store %arg8[%c0_89, %c3, %c0_90], %312 {strides = array<i32>} : memref<8x8x128xf32, #tpu.memory_space<vmem>>, vector<8x1x128xf32>,
    %313 = vector.extract_strided_slice %296 {offsets = [32, 0], sizes = [8, 128], strides = [1, 1]} : vector<64x128xf32> to vector<8x128xf32>
    %c0_91 = arith.constant 0 : index
    %c4 = arith.constant 4 : index
    %c0_92 = arith.constant 0 : index
    %314 = vector.load %arg8[%c0_91, %c4, %c0_92] : memref<8x8x128xf32, #tpu.memory_space<vmem>>, vector<8x1x128xf32>
    %315 = vector.shape_cast %314 : vector<8x1x128xf32> to vector<8x128xf32>
    %316 = vector.shape_cast %313 : vector<8x128xf32> to vector<8x1x128xf32>
    tpu.vector_store %arg8[%c0_91, %c4, %c0_92], %316 {strides = array<i32>} : memref<8x8x128xf32, #tpu.memory_space<vmem>>, vector<8x1x128xf32>,
    %317 = vector.extract_strided_slice %296 {offsets = [40, 0], sizes = [8, 128], strides = [1, 1]} : vector<64x128xf32> to vector<8x128xf32>
    %c0_93 = arith.constant 0 : index
    %c5 = arith.constant 5 : index
    %c0_94 = arith.constant 0 : index
    %318 = vector.load %arg8[%c0_93, %c5, %c0_94] : memref<8x8x128xf32, #tpu.memory_space<vmem>>, vector<8x1x128xf32>
    %319 = vector.shape_cast %318 : vector<8x1x128xf32> to vector<8x128xf32>
    %320 = vector.shape_cast %317 : vector<8x128xf32> to vector<8x1x128xf32>
    tpu.vector_store %arg8[%c0_93, %c5, %c0_94], %320 {strides = array<i32>} : memref<8x8x128xf32, #tpu.memory_space<vmem>>, vector<8x1x128xf32>,
    %321 = vector.extract_strided_slice %296 {offsets = [48, 0], sizes = [8, 128], strides = [1, 1]} : vector<64x128xf32> to vector<8x128xf32>
    %c0_95 = arith.constant 0 : index
    %c6 = arith.constant 6 : index
    %c0_96 = arith.constant 0 : index
    %322 = vector.load %arg8[%c0_95, %c6, %c0_96] : memref<8x8x128xf32, #tpu.memory_space<vmem>>, vector<8x1x128xf32>
    %323 = vector.shape_cast %322 : vector<8x1x128xf32> to vector<8x128xf32>
    %324 = vector.shape_cast %321 : vector<8x128xf32> to vector<8x1x128xf32>
    tpu.vector_store %arg8[%c0_95, %c6, %c0_96], %324 {strides = array<i32>} : memref<8x8x128xf32, #tpu.memory_space<vmem>>, vector<8x1x128xf32>,
    %325 = vector.extract_strided_slice %296 {offsets = [56, 0], sizes = [8, 128], strides = [1, 1]} : vector<64x128xf32> to vector<8x128xf32>
    %c0_97 = arith.constant 0 : index
    %c7 = arith.constant 7 : index
    %c0_98 = arith.constant 0 : index
    %326 = vector.load %arg8[%c0_97, %c7, %c0_98] : memref<8x8x128xf32, #tpu.memory_space<vmem>>, vector<8x1x128xf32>
    %327 = vector.shape_cast %326 : vector<8x1x128xf32> to vector<8x128xf32>
    %328 = vector.shape_cast %325 : vector<8x128xf32> to vector<8x1x128xf32>
    tpu.vector_store %arg8[%c0_97, %c7, %c0_98], %328 {strides = array<i32>} : memref<8x8x128xf32, #tpu.memory_space<vmem>>, vector<8x1x128xf32>,
    return
  }
  func.func @transform_0(%arg0: i32, %arg1: i32) -> (i32, i32, i32) {
    %c0_i32 = arith.constant 0 : i32
    %c0_i32_0 = arith.constant 0 : i32
    return %arg1, %arg0, %c0_i32 : i32, i32, i32
  }
  func.func @transform_1(%arg0: i32, %arg1: i32) -> (i32, i32) {
    %c0_i32 = arith.constant 0 : i32
    %c0_i32_0 = arith.constant 0 : i32
    %c0_i32_1 = arith.constant 0 : i32
    return %c0_i32, %c0_i32_0 : i32, i32
  }
  func.func @transform_2(%arg0: i32, %arg1: i32) -> (i32, i32) {
    %c0_i32 = arith.constant 0 : i32
    %c0_i32_0 = arith.constant 0 : i32
    %c0_i32_1 = arith.constant 0 : i32
    return %c0_i32, %c0_i32_0 : i32, i32
  }
  func.func @transform_3(%arg0: i32, %arg1: i32) -> (i32, i32) {
    %c0_i32 = arith.constant 0 : i32
    %c0_i32_0 = arith.constant 0 : i32
    return %arg0, %c0_i32 : i32, i32
  }
  func.func @transform_4(%arg0: i32, %arg1: i32) -> (i32, i32) {
    %c0_i32 = arith.constant 0 : i32
    %c0_i32_0 = arith.constant 0 : i32
    %c0_i32_1 = arith.constant 0 : i32
    return %c0_i32, %c0_i32_0 : i32, i32
  }
  func.func @transform_5(%arg0: i32, %arg1: i32) -> (i32, i32) {
    %c0_i32 = arith.constant 0 : i32
    %c0_i32_0 = arith.constant 0 : i32
    %c0_i32_1 = arith.constant 0 : i32
    return %c0_i32, %c0_i32_0 : i32, i32
  }
  func.func @transform_6(%arg0: i32, %arg1: i32) -> (i32, i32, i32) {
    %c0_i32 = arith.constant 0 : i32
    %c0_i32_0 = arith.constant 0 : i32
    return %arg0, %arg1, %c0_i32 : i32, i32, i32
  }
  func.func @transform_7(%arg0: i32, %arg1: i32) -> (i32, i32) {
    %c0_i32 = arith.constant 0 : i32
    %c0_i32_0 = arith.constant 0 : i32
    return %arg0, %c0_i32 : i32, i32
  }
}

</mosaic_0001>

<llo_original>
// kernel: seq2seq_decoder_forward.2
$region0: #{seq2seq_decoder_forward.2}
  #allocation0 [shape = 'u32[]', space=smem, size = 0x4, offset = 0x4, fixed_abs, tag = 'smem constant byte address 0x4 - core index']
  #allocation1 [shape = 'u32[144,128]{1,0:T(1,128)}', space=vmem, size = 0x12000, scoped, tag = 'internal scratch']
  #allocation2 [shape = 'f32[8,128]{1,0:T(8,128)}', space=vmem, size = 0x1000, scoped, tag = 'scratch operand']
  %s0 = inlined_call_operand.vmem [shape: f32[8,8,384], index: 0, kind: input, shape index: {}]
  %s1 = inlined_call_operand.vmem [shape: f32[128,384], index: 1, kind: input, shape index: {}]
  %s2 = inlined_call_operand.vmem [shape: f32[1,128], index: 2, kind: input, shape index: {}]
  %s3 = inlined_call_operand.vmem [shape: f32[8,128], index: 3, kind: input, shape index: {}]
  %s4 = inlined_call_operand.vmem [shape: f32[8,8,128], index: 4, kind: output, shape index: {0}]
  %s5 = inlined_call_operand.vmem [shape: f32[8,128], index: 5, kind: output, shape index: {1}]
  %6 = xla_tuple %s4, %s5
  %s7 = sld [smem:[#allocation0]]
  $region38: #{seq2seq_decoder_forward.2} parent=0
    _
  %s9 = ssub.s32 1, %s7
  %s10 = scalar_select 0, %s9, %s7
  // Predicated region
  $region2: #{seq2seq_decoder_forward.2} parent=0 // pred_check
    _
  $region3: #{seq2seq_decoder_forward.2} parent=0 // pred_check_branch
    %12 = sbr.rel (0) target = $region5
  $region4: #{seq2seq_decoder_forward.2} parent=0 // pred_region
    _
  $region5: #{seq2seq_decoder_forward.2} parent=0 // pred_fallthru
    _
  // Predicated region
  $region6: #{seq2seq_decoder_forward.2} parent=0 // pred_check
    _
  $region7: #{seq2seq_decoder_forward.2} parent=0 // pred_check_branch
    %14 = sbr.rel (0) target = $region9
  $region8: #{seq2seq_decoder_forward.2} parent=0 // pred_region
    _
  $region9: #{seq2seq_decoder_forward.2} parent=0 // pred_fallthru
    _
  // Predicated region
  $region10: #{seq2seq_decoder_forward.2} parent=0 // pred_check
    _
  $region11: #{seq2seq_decoder_forward.2} parent=0 // pred_check_branch
    %16 = sbr.rel (0) target = $region13
  $region12: #{seq2seq_decoder_forward.2} parent=0 // pred_region
    _
  $region13: #{seq2seq_decoder_forward.2} parent=0 // pred_fallthru
    _
  // Predicated region
  $region14: #{seq2seq_decoder_forward.2} parent=0 // pred_check
    _
  $region15: #{seq2seq_decoder_forward.2} parent=0 // pred_check_branch
    %18 = sbr.rel (0) target = $region17
  $region16: #{seq2seq_decoder_forward.2} parent=0 // pred_region
    _
  $region17: #{seq2seq_decoder_forward.2} parent=0 // pred_fallthru
    _
  %p19 = scmp.eq.s32.totalorder 0, 0
  // Predicated region
  $region18: #{seq2seq_decoder_forward.2} parent=0 // pred_check
    %p20 = pneg %p19
  $region19: #{seq2seq_decoder_forward.2} parent=0 // pred_check_branch
    %22 = sbr.rel (%p20) target = $region21
  $region20: #{seq2seq_decoder_forward.2} parent=0 // pred_region
    %v23 = vld [vmem:[%s3] sm:$0xff]
    %24 = vst [vmem:[#allocation2] sm:$0xff] %v23
  $region21: #{seq2seq_decoder_forward.2} parent=0 // pred_fallthru
    _
  %v25 = vld [vmem:[%s1] sm:$0xff]
  %v26 = vld [vmem:[%s1 + $0x8] sm:$0xff]
  %v27 = vld [vmem:[%s1 + $0x10] sm:$0xff]
  %v28 = vld [vmem:[%s1 + $0x18] sm:$0xff]
  %v29 = vld [vmem:[%s1 + $0x20] sm:$0xff]
  %v30 = vld [vmem:[%s1 + $0x28] sm:$0xff]
  %v31 = vld [vmem:[%s1 + $0x30] sm:$0xff]
  %v32 = vld [vmem:[%s1 + $0x38] sm:$0xff]
  %v33 = vld [vmem:[%s1 + $0x40] sm:$0xff]
  %v34 = vld [vmem:[%s1 + $0x48] sm:$0xff]
  %v35 = vld [vmem:[%s1 + $0x50] sm:$0xff]
  %v36 = vld [vmem:[%s1 + $0x58] sm:$0xff]
  %v37 = vld [vmem:[%s1 + $0x60] sm:$0xff]
  %v38 = vld [vmem:[%s1 + $0x68] sm:$0xff]
  %v39 = vld [vmem:[%s1 + $0x70] sm:$0xff]
  %v40 = vld [vmem:[%s1 + $0x78] sm:$0xff]
  %v41 = vld [vmem:[%s1 + $0x80] sm:$0xff]
  %v42 = vld [vmem:[%s1 + $0x88] sm:$0xff]
  %v43 = vld [vmem:[%s1 + $0x90] sm:$0xff]
  %v44 = vld [vmem:[%s1 + $0x98] sm:$0xff]
  %v45 = vld [vmem:[%s1 + $0xa0] sm:$0xff]
  %v46 = vld [vmem:[%s1 + $0xa8] sm:$0xff]
  %v47 = vld [vmem:[%s1 + $0xb0] sm:$0xff]
  %v48 = vld [vmem:[%s1 + $0xb8] sm:$0xff]
  %v49 = vld [vmem:[%s1 + $0xc0] sm:$0xff]
  %v50 = vld [vmem:[%s1 + $0xc8] sm:$0xff]
  %v51 = vld [vmem:[%s1 + $0xd0] sm:$0xff]
  %v52 = vld [vmem:[%s1 + $0xd8] sm:$0xff]
  %v53 = vld [vmem:[%s1 + $0xe0] sm:$0xff]
  %v54 = vld [vmem:[%s1 + $0xe8] sm:$0xff]
  %v55 = vld [vmem:[%s1 + $0xf0] sm:$0xff]
  %v56 = vld [vmem:[%s1 + $0xf8] sm:$0xff]
  %v57 = vld [vmem:[%s1 + $0x100] sm:$0xff]
  %v58 = vld [vmem:[%s1 + $0x108] sm:$0xff]
  %v59 = vld [vmem:[%s1 + $0x110] sm:$0xff]
  %v60 = vld [vmem:[%s1 + $0x118] sm:$0xff]
  %v61 = vld [vmem:[%s1 + $0x120] sm:$0xff]
  %v62 = vld [vmem:[%s1 + $0x128] sm:$0xff]
  %v63 = vld [vmem:[%s1 + $0x130] sm:$0xff]
  %v64 = vld [vmem:[%s1 + $0x138] sm:$0xff]
  %v65 = vld [vmem:[%s1 + $0x140] sm:$0xff]
  %v66 = vld [vmem:[%s1 + $0x148] sm:$0xff]
  %v67 = vld [vmem:[%s1 + $0x150] sm:$0xff]
  %v68 = vld [vmem:[%s1 + $0x158] sm:$0xff]
  %v69 = vld [vmem:[%s1 + $0x160] sm:$0xff]
  %v70 = vld [vmem:[%s1 + $0x168] sm:$0xff]
  %v71 = vld [vmem:[%s1 + $0x170] sm:$0xff]
  %v72 = vld [vmem:[%s1 + $0x178] sm:$0xff]
  %v73 = vld [vmem:[%s2] sm:$0x1]
  %v75 = vlaneseq
  %v76 = vshrl.u32 %v75, 7
  %v77 = vsub.s32 0, %v76
  %v78 = vrot.slane %v73, %v77
  %v80 = vld [vmem:[#allocation2] sm:$0xff]
  %v81 = vld [vmem:[%s0] sm:$0xff]
  %v82 = vld [vmem:[%s0 + $0x8] sm:$0xff]
  %v83 = vld [vmem:[%s0 + $0x10] sm:$0xff]
  %84 = vmatprep.subr.mxu0 %v26
  %85 = vmatpush1.msra.mxu0 %v25
  %86 = vmatprep.subr.mxu0 %v29
  %87 = vmatpush1.msra.mxu0 %v28
  %88 = vmatprep.subr.mxu0 %v32
  %89 = vmatpush1.msra.mxu0 %v31
  %90 = vmatprep.subr.mxu0 %v35
  %91 = vmatpush1.msra.mxu0 %v34
  %92 = vmatprep.subr.mxu0 %v38
  %93 = vmatpush1.msra.mxu0 %v37
  %94 = vmatprep.subr.mxu0 %v41
  %95 = vmatpush1.msra.mxu0 %v40
  %96 = vmatprep.subr.mxu0 %v44
  %97 = vmatpush1.msra.mxu0 %v43
  %98 = vmatprep.subr.mxu0 %v47
  %99 = vmatpush1.msra.mxu0 %v46
  %100 = vmatprep.subr.mxu0 %v50
  %101 = vmatpush1.msra.mxu0 %v49
  %102 = vmatprep.subr.mxu0 %v53
  %103 = vmatpush1.msra.mxu0 %v52
  %104 = vmatprep.subr.mxu0 %v56
  %105 = vmatpush1.msra.mxu0 %v55
  %106 = vmatprep.subr.mxu0 %v59
  %107 = vmatpush1.msra.mxu0 %v58
  %108 = vmatprep.subr.mxu0 %v62
  %109 = vmatpush1.msra.mxu0 %v61
  %110 = vmatprep.subr.mxu0 %v65
  %111 = vmatpush1.msra.mxu0 %v64
  %112 = vmatprep.subr.mxu0 %v68
  %113 = vmatpush1.msra.mxu0 %v67
  %114 = vmatprep.subr.mxu0 %v71
  %115 = vmatpush1.msra.mxu0 %v70
  %116 = vmatprep.subr.mxu0 0.0
  %117 = vmatpush1.msra.mxu0 0.0
  %118 = vmatprep.subr.mxu0 0.0
  %119 = vmatpush1.msra.mxu0 0.0
  %120 = vmatprep.subr.mxu0 0.0
  %121 = vmatpush1.msra.mxu0 0.0
  %122 = vmatprep.subr.mxu0 0.0
  %123 = vmatpush1.msra.mxu0 0.0
  %124 = vmatprep.subr.mxu0 0.0
  %125 = vmatpush1.msra.mxu0 0.0
  %126 = vmatprep.subr.mxu0 0.0
  %127 = vmatpush1.msra.mxu0 0.0
  %128 = vmatprep.subr.mxu0 0.0
  %129 = vmatpush1.msra.mxu0 0.0
  %130 = vmatprep.subr.mxu0 0.0
  %131 = vmatpush1.msra.mxu0 0.0
  %132 = vmatprep.subr.mxu0 0.0
  %133 = vmatpush1.msra.mxu0 0.0
  %134 = vmatprep.subr.mxu0 0.0
  %135 = vmatpush1.msra.mxu0 0.0
  %136 = vmatprep.subr.mxu0 0.0
  %137 = vmatpush1.msra.mxu0 0.0
  %138 = vmatprep.subr.mxu0 0.0
  %139 = vmatpush1.msra.mxu0 0.0
  %140 = vmatprep.subr.mxu0 0.0
  %141 = vmatpush1.msra.mxu0 0.0
  %142 = vmatprep.subr.mxu0 0.0
  %143 = vmatpush1.msra.mxu0 0.0
  %144 = vmatprep.subr.mxu0 0.0
  %145 = vmatpush1.msra.mxu0 0.0
  %146 = vmatprep.subr.mxu0 0.0
  %147 = vmatpush1.msra.mxu0 0.0
  %148 = vmatprep.mubr.f32.mxu0 0.0
  %149 = vmatmul.mubr.f32.gmra.mrb[0].mxu0 %v80
  %v150 = vpop.f32.mrb[0].mxu0
  %v151 = vadd.f32 0.0, %v150
  %v152 = vpop.f32.mrb[0].mxu0
  %v153 = vadd.f32 0.0, %v152
  %154 = vdwg.mxu0
  %155 = vmatprep.subr.mxu0 0.0
  %156 = vmatpush1.msra.mxu0 %v27
  %157 = vmatprep.subr.mxu0 0.0
  %158 = vmatpush1.msra.mxu0 %v30
  %159 = vmatprep.subr.mxu0 0.0
  %160 = vmatpush1.msra.mxu0 %v33
  %161 = vmatprep.subr.mxu0 0.0
  %162 = vmatpush1.msra.mxu0 %v36
  %163 = vmatprep.subr.mxu0 0.0
  %164 = vmatpush1.msra.mxu0 %v39
  %165 = vmatprep.subr.mxu0 0.0
  %166 = vmatpush1.msra.mxu0 %v42
  %167 = vmatprep.subr.mxu0 0.0
  %168 = vmatpush1.msra.mxu0 %v45
  %169 = vmatprep.subr.mxu0 0.0
  %170 = vmatpush1.msra.mxu0 %v48
  %171 = vmatprep.subr.mxu0 0.0
  %172 = vmatpush1.msra.mxu0 %v51
  %173 = vmatprep.subr.mxu0 0.0
  %174 = vmatpush1.msra.mxu0 %v54
  %175 = vmatprep.subr.mxu0 0.0
  %176 = vmatpush1.msra.mxu0 %v57
  %177 = vmatprep.subr.mxu0 0.0
  %178 = vmatpush1.msra.mxu0 %v60
  %179 = vmatprep.subr.mxu0 0.0
  %180 = vmatpush1.msra.mxu0 %v63
  %181 = vmatprep.subr.mxu0 0.0
  %182 = vmatpush1.msra.mxu0 %v66
  %183 = vmatprep.subr.mxu0 0.0
  %184 = vmatpush1.msra.mxu0 %v69
  %185 = vmatprep.subr.mxu0 0.0
  %186 = vmatpush1.msra.mxu0 %v72
  %187 = vmatprep.subr.mxu0 0.0
  %188 = vmatpush1.msra.mxu0 0.0
  %189 = vmatprep.subr.mxu0 0.0
  %190 = vmatpush1.msra.mxu0 0.0
  %191 = vmatprep.subr.mxu0 0.0
  %192 = vmatpush1.msra.mxu0 0.0
  %193 = vmatprep.subr.mxu0 0.0
  %194 = vmatpush1.msra.mxu0 0.0
  %195 = vmatprep.subr.mxu0 0.0
  %196 = vmatpush1.msra.mxu0 0.0
  %197 = vmatprep.subr.mxu0 0.0
  %198 = vmatpush1.msra.mxu0 0.0
  %199 = vmatprep.subr.mxu0 0.0
  %200 = vmatpush1.msra.mxu0 0.0
  %201 = vmatprep.subr.mxu0 0.0
  %202 = vmatpush1.msra.mxu0 0.0
  %203 = vmatprep.subr.mxu0 0.0
  %204 = vmatpush1.msra.mxu0 0.0
  %205 = vmatprep.subr.mxu0 0.0
  %206 = vmatpush1.msra.mxu0 0.0
  %207 = vmatprep.subr.mxu0 0.0
  %208 = vmatpush1.msra.mxu0 0.0
  %209 = vmatprep.subr.mxu0 0.0
  %210 = vmatpush1.msra.mxu0 0.0
  %211 = vmatprep.subr.mxu0 0.0
  %212 = vmatpush1.msra.mxu0 0.0
  %213 = vmatprep.subr.mxu0 0.0
  %214 = vmatpush1.msra.mxu0 0.0
  %215 = vmatprep.subr.mxu0 0.0
  %216 = vmatpush1.msra.mxu0 0.0
  %217 = vmatprep.subr.mxu0 0.0
  %218 = vmatpush1.msra.mxu0 0.0
  %219 = vmatprep.mubr.f32.mxu0 0.0
  %220 = vmatmul.mubr.f32.gmra.mrb[0].mxu0 %v80
  %v221 = vpop.f32.mrb[0].mxu0
  %v222 = vadd.f32 0.0, %v221
  %v223 = vpop.f32.mrb[0].mxu0
  %224 = vdwg.mxu0
  %v225 = vadd.f32 %v81, %v151
  %v226 = vxor.u32 %v225, 2147483648
  %v227 = vmul.f32 %v226, 1.442695
  %v228 = vpow.pop %v227
  %v229 = vadd.f32 %v228, 1.0
  %v230 = vrcp.pop %v229
  %v231 = vmul.f32 1.0, %v230
  %v232 = vadd.f32 %v82, %v153
  %v233 = vxor.u32 %v232, 2147483648
  %v234 = vmul.f32 %v233, 1.442695
  %v235 = vpow.pop %v234
  %v236 = vadd.f32 %v235, 1.0
  %v237 = vrcp.pop %v236
  %v238 = vmul.f32 1.0, %v237
  %v239 = vadd.f32 %v222, %v78
  %v240 = vmul.f32 %v231, %v239
  %v241 = vadd.f32 %v83, %v240
  %v242 = vtanh.pop %v241
  %v243 = vsub.f32 1.0, %v238
  %v244 = vmul.f32 %v243, %v242
  %v245 = vmul.f32 %v238, %v80
  %v246 = vadd.f32 %v244, %v245
  %247 = vst [vmem:[%s4] sm:$0xff] %v246
  %s248 = scalar_lea.vmem %s0, 24
  %v249 = vld [vmem:[%s248] sm:$0xff]
  %v250 = vld [vmem:[%s248 + $0x8] sm:$0xff]
  %v251 = vld [vmem:[%s248 + $0x10] sm:$0xff]
  %252 = vmatprep.subr.mxu0 %v26
  %253 = vmatpush1.msra.mxu0 %v25
  %254 = vmatprep.subr.mxu0 %v29
  %255 = vmatpush1.msra.mxu0 %v28
  %256 = vmatprep.subr.mxu0 %v32
  %257 = vmatpush1.msra.mxu0 %v31
  %258 = vmatprep.subr.mxu0 %v35
  %259 = vmatpush1.msra.mxu0 %v34
  %260 = vmatprep.subr.mxu0 %v38
  %261 = vmatpush1.msra.mxu0 %v37
  %262 = vmatprep.subr.mxu0 %v41
  %263 = vmatpush1.msra.mxu0 %v40
  %264 = vmatprep.subr.mxu0 %v44
  %265 = vmatpush1.msra.mxu0 %v43
  %266 = vmatprep.subr.mxu0 %v47
  %267 = vmatpush1.msra.mxu0 %v46
  %268 = vmatprep.subr.mxu0 %v50
  %269 = vmatpush1.msra.mxu0 %v49
  %270 = vmatprep.subr.mxu0 %v53
  %271 = vmatpush1.msra.mxu0 %v52
  %272 = vmatprep.subr.mxu0 %v56
  %273 = vmatpush1.msra.mxu0 %v55
  %274 = vmatprep.subr.mxu0 %v59
  %275 = vmatpush1.msra.mxu0 %v58
  %276 = vmatprep.subr.mxu0 %v62
  %277 = vmatpush1.msra.mxu0 %v61
  %278 = vmatprep.subr.mxu0 %v65
  %279 = vmatpush1.msra.mxu0 %v64
  %280 = vmatprep.subr.mxu0 %v68
  %281 = vmatpush1.msra.mxu0 %v67
  %282 = vmatprep.subr.mxu0 %v71
  %283 = vmatpush1.msra.mxu0 %v70
  %284 = vmatprep.subr.mxu0 0.0
  %285 = vmatpush1.msra.mxu0 0.0
  %286 = vmatprep.subr.mxu0 0.0
  %287 = vmatpush1.msra.mxu0 0.0
  %288 = vmatprep.subr.mxu0 0.0
  %289 = vmatpush1.msra.mxu0 0.0
  %290 = vmatprep.subr.mxu0 0.0
  %291 = vmatpush1.msra.mxu0 0.0
  %292 = vmatprep.subr.mxu0 0.0
  %293 = vmatpush1.msra.mxu0 0.0
  %294 = vmatprep.subr.mxu0 0.0
  %295 = vmatpush1.msra.mxu0 0.0
  %296 = vmatprep.subr.mxu0 0.0
  %297 = vmatpush1.msra.mxu0 0.0
  %298 = vmatprep.subr.mxu0 0.0
  %299 = vmatpush1.msra.mxu0 0.0
  %300 = vmatprep.subr.mxu0 0.0
  %301 = vmatpush1.msra.mxu0 0.0
  %302 = vmatprep.subr.mxu0 0.0
  %303 = vmatpush1.msra.mxu0 0.0
  %304 = vmatprep.subr.mxu0 0.0
  %305 = vmatpush1.msra.mxu0 0.0
  %306 = vmatprep.subr.mxu0 0.0
  %307 = vmatpush1.msra.mxu0 0.0
  %308 = vmatprep.subr.mxu0 0.0
  %309 = vmatpush1.msra.mxu0 0.0
  %310 = vmatprep.subr.mxu0 0.0
  %311 = vmatpush1.msra.mxu0 0.0
  %312 = vmatprep.subr.mxu0 0.0
  %313 = vmatpush1.msra.mxu0 0.0
  %314 = vmatprep.subr.mxu0 0.0
  %315 = vmatpush1.msra.mxu0 0.0
  %316 = vmatprep.mubr.f32.mxu0 0.0
  %317 = vmatmul.mubr.f32.gmra.mrb[0].mxu0 %v246
  %v318 = vpop.f32.mrb[0].mxu0
  %v319 = vadd.f32 0.0, %v318
  %v320 = vpop.f32.mrb[0].mxu0
  %v321 = vadd.f32 0.0, %v320
  %322 = vdwg.mxu0
  %323 = vmatprep.subr.mxu0 0.0
  %324 = vmatpush1.msra.mxu0 %v27
  %325 = vmatprep.subr.mxu0 0.0
  %326 = vmatpush1.msra.mxu0 %v30
  %327 = vmatprep.subr.mxu0 0.0
  %328 = vmatpush1.msra.mxu0 %v33
  %329 = vmatprep.subr.mxu0 0.0
  %330 = vmatpush1.msra.mxu0 %v36
  %331 = vmatprep.subr.mxu0 0.0
  %332 = vmatpush1.msra.mxu0 %v39
  %333 = vmatprep.subr.mxu0 0.0
  %334 = vmatpush1.msra.mxu0 %v42
  %335 = vmatprep.subr.mxu0 0.0
  %336 = vmatpush1.msra.mxu0 %v45
  %337 = vmatprep.subr.mxu0 0.0
  %338 = vmatpush1.msra.mxu0 %v48
  %339 = vmatprep.subr.mxu0 0.0
  %340 = vmatpush1.msra.mxu0 %v51
  %341 = vmatprep.subr.mxu0 0.0
  %342 = vmatpush1.msra.mxu0 %v54
  %343 = vmatprep.subr.mxu0 0.0
  %344 = vmatpush1.msra.mxu0 %v57
  %345 = vmatprep.subr.mxu0 0.0
  %346 = vmatpush1.msra.mxu0 %v60
  %347 = vmatprep.subr.mxu0 0.0
  %348 = vmatpush1.msra.mxu0 %v63
  %349 = vmatprep.subr.mxu0 0.0
  %350 = vmatpush1.msra.mxu0 %v66
  %351 = vmatprep.subr.mxu0 0.0
  %352 = vmatpush1.msra.mxu0 %v69
  %353 = vmatprep.subr.mxu0 0.0
  %354 = vmatpush1.msra.mxu0 %v72
  %355 = vmatprep.subr.mxu0 0.0
  %356 = vmatpush1.msra.mxu0 0.0
  %357 = vmatprep.subr.mxu0 0.0
  %358 = vmatpush1.msra.mxu0 0.0
  %359 = vmatprep.subr.mxu0 0.0
  %360 = vmatpush1.msra.mxu0 0.0
  %361 = vmatprep.subr.mxu0 0.0
  %362 = vmatpush1.msra.mxu0 0.0
  %363 = vmatprep.subr.mxu0 0.0
  %364 = vmatpush1.msra.mxu0 0.0
  %365 = vmatprep.subr.mxu0 0.0
  %366 = vmatpush1.msra.mxu0 0.0
  %367 = vmatprep.subr.mxu0 0.0
  %368 = vmatpush1.msra.mxu0 0.0
  %369 = vmatprep.subr.mxu0 0.0
  %370 = vmatpush1.msra.mxu0 0.0
  %371 = vmatprep.subr.mxu0 0.0
  %372 = vmatpush1.msra.mxu0 0.0
  %373 = vmatprep.subr.mxu0 0.0
  %374 = vmatpush1.msra.mxu0 0.0
  %375 = vmatprep.subr.mxu0 0.0
  %376 = vmatpush1.msra.mxu0 0.0
  %377 = vmatprep.subr.mxu0 0.0
  %378 = vmatpush1.msra.mxu0 0.0
  %379 = vmatprep.subr.mxu0 0.0
  %380 = vmatpush1.msra.mxu0 0.0
  %381 = vmatprep.subr.mxu0 0.0
  %382 = vmatpush1.msra.mxu0 0.0
  %383 = vmatprep.subr.mxu0 0.0
  %384 = vmatpush1.msra.mxu0 0.0
  %385 = vmatprep.subr.mxu0 0.0
  %386 = vmatpush1.msra.mxu0 0.0
  %387 = vmatprep.mubr.f32.mxu0 0.0
  %388 = vmatmul.mubr.f32.gmra.mrb[0].mxu0 %v246
  %v389 = vpop.f32.mrb[0].mxu0
  %v390 = vadd.f32 0.0, %v389
  %v391 = vpop.f32.mrb[0].mxu0
  %392 = vdwg.mxu0
  %v393 = vadd.f32 %v249, %v319
  %v394 = vxor.u32 %v393, 2147483648
  %v395 = vmul.f32 %v394, 1.442695
  %v396 = vpow.pop %v395
  %v397 = vadd.f32 %v396, 1.0
  %v398 = vrcp.pop %v397
  %v399 = vmul.f32 1.0, %v398
  %v400 = vadd.f32 %v250, %v321
  %v401 = vxor.u32 %v400, 2147483648
  %v402 = vmul.f32 %v401, 1.442695
  %v403 = vpow.pop %v402
  %v404 = vadd.f32 %v403, 1.0
  %v405 = vrcp.pop %v404
  %v406 = vmul.f32 1.0, %v405
  %v407 = vadd.f32 %v390, %v78
  %v408 = vmul.f32 %v399, %v407
  %v409 = vadd.f32 %v251, %v408
  %v410 = vtanh.pop %v409
  %v411 = vsub.f32 1.0, %v406
  %v412 = vmul.f32 %v411, %v410
  %v413 = vmul.f32 %v406, %v246
  %v414 = vadd.f32 %v412, %v413
  %s415 = scalar_lea.vmem %s4, 8
  %416 = vst [vmem:[%s415] sm:$0xff] %v414
  %s417 = scalar_lea.vmem %s0, 48
  %v418 = vld [vmem:[%s417] sm:$0xff]
  %v419 = vld [vmem:[%s417 + $0x8] sm:$0xff]
  %v420 = vld [vmem:[%s417 + $0x10] sm:$0xff]
  %421 = vmatprep.subr.mxu0 %v26
  %422 = vmatpush1.msra.mxu0 %v25
  %423 = vmatprep.subr.mxu0 %v29
  %424 = vmatpush1.msra.mxu0 %v28
  %425 = vmatprep.subr.mxu0 %v32
  %426 = vmatpush1.msra.mxu0 %v31
  %427 = vmatprep.subr.mxu0 %v35
  %428 = vmatpush1.msra.mxu0 %v34
  %429 = vmatprep.subr.mxu0 %v38
  %430 = vmatpush1.msra.mxu0 %v37
  %431 = vmatprep.subr.mxu0 %v41
  %432 = vmatpush1.msra.mxu0 %v40
  %433 = vmatprep.subr.mxu0 %v44
  %434 = vmatpush1.msra.mxu0 %v43
  %435 = vmatprep.subr.mxu0 %v47
  %436 = vmatpush1.msra.mxu0 %v46
  %437 = vmatprep.subr.mxu0 %v50
  %438 = vmatpush1.msra.mxu0 %v49
  %439 = vmatprep.subr.mxu0 %v53
  %440 = vmatpush1.msra.mxu0 %v52
  %441 = vmatprep.subr.mxu0 %v56
  %442 = vmatpush1.msra.mxu0 %v55
  %443 = vmatprep.subr.mxu0 %v59
  %444 = vmatpush1.msra.mxu0 %v58
  %445 = vmatprep.subr.mxu0 %v62
  %446 = vmatpush1.msra.mxu0 %v61
  %447 = vmatprep.subr.mxu0 %v65
  %448 = vmatpush1.msra.mxu0 %v64
  %449 = vmatprep.subr.mxu0 %v68
  %450 = vmatpush1.msra.mxu0 %v67
  %451 = vmatprep.subr.mxu0 %v71
  %452 = vmatpush1.msra.mxu0 %v70
  %453 = vmatprep.subr.mxu0 0.0
  %454 = vmatpush1.msra.mxu0 0.0
  %455 = vmatprep.subr.mxu0 0.0
  %456 = vmatpush1.msra.mxu0 0.0
  %457 = vmatprep.subr.mxu0 0.0
  %458 = vmatpush1.msra.mxu0 0.0
  %459 = vmatprep.subr.mxu0 0.0
  %460 = vmatpush1.msra.mxu0 0.0
  %461 = vmatprep.subr.mxu0 0.0
  %462 = vmatpush1.msra.mxu0 0.0
  %463 = vmatprep.subr.mxu0 0.0
  %464 = vmatpush1.msra.mxu0 0.0
  %465 = vmatprep.subr.mxu0 0.0
  %466 = vmatpush1.msra.mxu0 0.0
  %467 = vmatprep.subr.mxu0 0.0
  %468 = vmatpush1.msra.mxu0 0.0
  %469 = vmatprep.subr.mxu0 0.0
  %470 = vmatpush1.msra.mxu0 0.0
  %471 = vmatprep.subr.mxu0 0.0
  %472 = vmatpush1.msra.mxu0 0.0
  %473 = vmatprep.subr.mxu0 0.0
  %474 = vmatpush1.msra.mxu0 0.0
  %475 = vmatprep.subr.mxu0 0.0
  %476 = vmatpush1.msra.mxu0 0.0
  %477 = vmatprep.subr.mxu0 0.0
  %478 = vmatpush1.msra.mxu0 0.0
  %479 = vmatprep.subr.mxu0 0.0
  %480 = vmatpush1.msra.mxu0 0.0
  %481 = vmatprep.subr.mxu0 0.0
  %482 = vmatpush1.msra.mxu0 0.0
  %483 = vmatprep.subr.mxu0 0.0
  %484 = vmatpush1.msra.mxu0 0.0
  %485 = vmatprep.mubr.f32.mxu0 0.0
  %486 = vmatmul.mubr.f32.gmra.mrb[0].mxu0 %v414
  %v487 = vpop.f32.mrb[0].mxu0
  %v488 = vadd.f32 0.0, %v487
  %v489 = vpop.f32.mrb[0].mxu0
  %v490 = vadd.f32 0.0, %v489
  %491 = vdwg.mxu0
  %492 = vmatprep.subr.mxu0 0.0
  %493 = vmatpush1.msra.mxu0 %v27
  %494 = vmatprep.subr.mxu0 0.0
  %495 = vmatpush1.msra.mxu0 %v30
  %496 = vmatprep.subr.mxu0 0.0
  %497 = vmatpush1.msra.mxu0 %v33
  %498 = vmatprep.subr.mxu0 0.0
  %499 = vmatpush1.msra.mxu0 %v36
  %500 = vmatprep.subr.mxu0 0.0
  %501 = vmatpush1.msra.mxu0 %v39
  %502 = vmatprep.subr.mxu0 0.0
  %503 = vmatpush1.msra.mxu0 %v42
  %504 = vmatprep.subr.mxu0 0.0
  %505 = vmatpush1.msra.mxu0 %v45
  %506 = vmatprep.subr.mxu0 0.0
  %507 = vmatpush1.msra.mxu0 %v48
  %508 = vmatprep.subr.mxu0 0.0
  %509 = vmatpush1.msra.mxu0 %v51
  %510 = vmatprep.subr.mxu0 0.0
  %511 = vmatpush1.msra.mxu0 %v54
  %512 = vmatprep.subr.mxu0 0.0
  %513 = vmatpush1.msra.mxu0 %v57
  %514 = vmatprep.subr.mxu0 0.0
  %515 = vmatpush1.msra.mxu0 %v60
  %516 = vmatprep.subr.mxu0 0.0
  %517 = vmatpush1.msra.mxu0 %v63
  %518 = vmatprep.subr.mxu0 0.0
  %519 = vmatpush1.msra.mxu0 %v66
  %520 = vmatprep.subr.mxu0 0.0
  %521 = vmatpush1.msra.mxu0 %v69
  %522 = vmatprep.subr.mxu0 0.0
  %523 = vmatpush1.msra.mxu0 %v72
  %524 = vmatprep.subr.mxu0 0.0
  %525 = vmatpush1.msra.mxu0 0.0
  %526 = vmatprep.subr.mxu0 0.0
  %527 = vmatpush1.msra.mxu0 0.0
  %528 = vmatprep.subr.mxu0 0.0
  %529 = vmatpush1.msra.mxu0 0.0
  %530 = vmatprep.subr.mxu0 0.0
  %531 = vmatpush1.msra.mxu0 0.0
  %532 = vmatprep.subr.mxu0 0.0
  %533 = vmatpush1.msra.mxu0 0.0
  %534 = vmatprep.subr.mxu0 0.0
  %535 = vmatpush1.msra.mxu0 0.0
  %536 = vmatprep.subr.mxu0 0.0
  %537 = vmatpush1.msra.mxu0 0.0
  %538 = vmatprep.subr.mxu0 0.0
  %539 = vmatpush1.msra.mxu0 0.0
  %540 = vmatprep.subr.mxu0 0.0
  %541 = vmatpush1.msra.mxu0 0.0
  %542 = vmatprep.subr.mxu0 0.0
  %543 = vmatpush1.msra.mxu0 0.0
  %544 = vmatprep.subr.mxu0 0.0
  %545 = vmatpush1.msra.mxu0 0.0
  %546 = vmatprep.subr.mxu0 0.0
  %547 = vmatpush1.msra.mxu0 0.0
  %548 = vmatprep.subr.mxu0 0.0
  %549 = vmatpush1.msra.mxu0 0.0
  %550 = vmatprep.subr.mxu0 0.0
  %551 = vmatpush1.msra.mxu0 0.0
  %552 = vmatprep.subr.mxu0 0.0
  %553 = vmatpush1.msra.mxu0 0.0
  %554 = vmatprep.subr.mxu0 0.0
  %555 = vmatpush1.msra.mxu0 0.0
  %556 = vmatprep.mubr.f32.mxu0 0.0
  %557 = vmatmul.mubr.f32.gmra.mrb[0].mxu0 %v414
  %v558 = vpop.f32.mrb[0].mxu0
  %v559 = vadd.f32 0.0, %v558
  %v560 = vpop.f32.mrb[0].mxu0
  %561 = vdwg.mxu0
  %v562 = vadd.f32 %v418, %v488
  %v563 = vxor.u32 %v562, 2147483648
  %v564 = vmul.f32 %v563, 1.442695
  %v565 = vpow.pop %v564
  %v566 = vadd.f32 %v565, 1.0
  %v567 = vrcp.pop %v566
  %v568 = vmul.f32 1.0, %v567
  %v569 = vadd.f32 %v419, %v490
  %v570 = vxor.u32 %v569, 2147483648
  %v571 = vmul.f32 %v570, 1.442695
  %v572 = vpow.pop %v571
  %v573 = vadd.f32 %v572, 1.0
  %v574 = vrcp.pop %v573
  %v575 = vmul.f32 1.0, %v574
  %v576 = vadd.f32 %v559, %v78
  %v577 = vmul.f32 %v568, %v576
  %v578 = vadd.f32 %v420, %v577
  %v579 = vtanh.pop %v578
  %v580 = vsub.f32 1.0, %v575
  %v581 = vmul.f32 %v580, %v579
  %v582 = vmul.f32 %v575, %v414
  %v583 = vadd.f32 %v581, %v582
  %s584 = scalar_lea.vmem %s4, 16
  %585 = vst [vmem:[%s584] sm:$0xff] %v583
  %s586 = scalar_lea.vmem %s0, 72
  %v587 = vld [vmem:[%s586] sm:$0xff]
  %v588 = vld [vmem:[%s586 + $0x8] sm:$0xff]
  %v589 = vld [vmem:[%s586 + $0x10] sm:$0xff]
  %590 = vmatprep.subr.mxu0 %v26
  %591 = vmatpush1.msra.mxu0 %v25
  %592 = vmatprep.subr.mxu0 %v29
  %593 = vmatpush1.msra.mxu0 %v28
  %594 = vmatprep.subr.mxu0 %v32
  %595 = vmatpush1.msra.mxu0 %v31
  %596 = vmatprep.subr.mxu0 %v35
  %597 = vmatpush1.msra.mxu0 %v34
  %598 = vmatprep.subr.mxu0 %v38
  %599 = vmatpush1.msra.mxu0 %v37
  %600 = vmatprep.subr.mxu0 %v41
  %601 = vmatpush1.msra.mxu0 %v40
  %602 = vmatprep.subr.mxu0 %v44
  %603 = vmatpush1.msra.mxu0 %v43
  %604 = vmatprep.subr.mxu0 %v47
  %605 = vmatpush1.msra.mxu0 %v46
  %606 = vmatprep.subr.mxu0 %v50
  %607 = vmatpush1.msra.mxu0 %v49
  %608 = vmatprep.subr.mxu0 %v53
  %609 = vmatpush1.msra.mxu0 %v52
  %610 = vmatprep.subr.mxu0 %v56
  %611 = vmatpush1.msra.mxu0 %v55
  %612 = vmatprep.subr.mxu0 %v59
  %613 = vmatpush1.msra.mxu0 %v58
  %614 = vmatprep.subr.mxu0 %v62
  %615 = vmatpush1.msra.mxu0 %v61
  %616 = vmatprep.subr.mxu0 %v65
  %617 = vmatpush1.msra.mxu0 %v64
  %618 = vmatprep.subr.mxu0 %v68
  %619 = vmatpush1.msra.mxu0 %v67
  %620 = vmatprep.subr.mxu0 %v71
  %621 = vmatpush1.msra.mxu0 %v70
  %622 = vmatprep.subr.mxu0 0.0
  %623 = vmatpush1.msra.mxu0 0.0
  %624 = vmatprep.subr.mxu0 0.0
  %625 = vmatpush1.msra.mxu0 0.0
  %626 = vmatprep.subr.mxu0 0.0
  %627 = vmatpush1.msra.mxu0 0.0
  %628 = vmatprep.subr.mxu0 0.0
  %629 = vmatpush1.msra.mxu0 0.0
  %630 = vmatprep.subr.mxu0 0.0
  %631 = vmatpush1.msra.mxu0 0.0
  %632 = vmatprep.subr.mxu0 0.0
  %633 = vmatpush1.msra.mxu0 0.0
  %634 = vmatprep.subr.mxu0 0.0
  %635 = vmatpush1.msra.mxu0 0.0
  %636 = vmatprep.subr.mxu0 0.0
  %637 = vmatpush1.msra.mxu0 0.0
  %638 = vmatprep.subr.mxu0 0.0
  %639 = vmatpush1.msra.mxu0 0.0
  %640 = vmatprep.subr.mxu0 0.0
  %641 = vmatpush1.msra.mxu0 0.0
  %642 = vmatprep.subr.mxu0 0.0
  %643 = vmatpush1.msra.mxu0 0.0
  %644 = vmatprep.subr.mxu0 0.0
  %645 = vmatpush1.msra.mxu0 0.0
  %646 = vmatprep.subr.mxu0 0.0
  %647 = vmatpush1.msra.mxu0 0.0
  %648 = vmatprep.subr.mxu0 0.0
  %649 = vmatpush1.msra.mxu0 0.0
  %650 = vmatprep.subr.mxu0 0.0
  %651 = vmatpush1.msra.mxu0 0.0
  %652 = vmatprep.subr.mxu0 0.0
  %653 = vmatpush1.msra.mxu0 0.0
  %654 = vmatprep.mubr.f32.mxu0 0.0
  %655 = vmatmul.mubr.f32.gmra.mrb[0].mxu0 %v583
  %v656 = vpop.f32.mrb[0].mxu0
  %v657 = vadd.f32 0.0, %v656
  %v658 = vpop.f32.mrb[0].mxu0
  %v659 = vadd.f32 0.0, %v658
  %660 = vdwg.mxu0
  %661 = vmatprep.subr.mxu0 0.0
  %662 = vmatpush1.msra.mxu0 %v27
  %663 = vmatprep.subr.mxu0 0.0
  %664 = vmatpush1.msra.mxu0 %v30
  %665 = vmatprep.subr.mxu0 0.0
  %666 = vmatpush1.msra.mxu0 %v33
  %667 = vmatprep.subr.mxu0 0.0
  %668 = vmatpush1.msra.mxu0 %v36
  %669 = vmatprep.subr.mxu0 0.0
  %670 = vmatpush1.msra.mxu0 %v39
  %671 = vmatprep.subr.mxu0 0.0
  %672 = vmatpush1.msra.mxu0 %v42
  %673 = vmatprep.subr.mxu0 0.0
  %674 = vmatpush1.msra.mxu0 %v45
  %675 = vmatprep.subr.mxu0 0.0
  %676 = vmatpush1.msra.mxu0 %v48
  %677 = vmatprep.subr.mxu0 0.0
  %678 = vmatpush1.msra.mxu0 %v51
  %679 = vmatprep.subr.mxu0 0.0
  %680 = vmatpush1.msra.mxu0 %v54
  %681 = vmatprep.subr.mxu0 0.0
  %682 = vmatpush1.msra.mxu0 %v57
  %683 = vmatprep.subr.mxu0 0.0
  %684 = vmatpush1.msra.mxu0 %v60
  %685 = vmatprep.subr.mxu0 0.0
  %686 = vmatpush1.msra.mxu0 %v63
  %687 = vmatprep.subr.mxu0 0.0
  %688 = vmatpush1.msra.mxu0 %v66
  %689 = vmatprep.subr.mxu0 0.0
  %690 = vmatpush1.msra.mxu0 %v69
  %691 = vmatprep.subr.mxu0 0.0
  %692 = vmatpush1.msra.mxu0 %v72
  %693 = vmatprep.subr.mxu0 0.0
  %694 = vmatpush1.msra.mxu0 0.0
  %695 = vmatprep.subr.mxu0 0.0
  %696 = vmatpush1.msra.mxu0 0.0
  %697 = vmatprep.subr.mxu0 0.0
  %698 = vmatpush1.msra.mxu0 0.0
  %699 = vmatprep.subr.mxu0 0.0
  %700 = vmatpush1.msra.mxu0 0.0
  %701 = vmatprep.subr.mxu0 0.0
  %702 = vmatpush1.msra.mxu0 0.0
  %703 = vmatprep.subr.mxu0 0.0
  %704 = vmatpush1.msra.mxu0 0.0
  %705 = vmatprep.subr.mxu0 0.0
  %706 = vmatpush1.msra.mxu0 0.0
  %707 = vmatprep.subr.mxu0 0.0
  %708 = vmatpush1.msra.mxu0 0.0
  %709 = vmatprep.subr.mxu0 0.0
  %710 = vmatpush1.msra.mxu0 0.0
  %711 = vmatprep.subr.mxu0 0.0
  %712 = vmatpush1.msra.mxu0 0.0
  %713 = vmatprep.subr.mxu0 0.0
  %714 = vmatpush1.msra.mxu0 0.0
  %715 = vmatprep.subr.mxu0 0.0
  %716 = vmatpush1.msra.mxu0 0.0
  %717 = vmatprep.subr.mxu0 0.0
  %718 = vmatpush1.msra.mxu0 0.0
  %719 = vmatprep.subr.mxu0 0.0
  %720 = vmatpush1.msra.mxu0 0.0
  %721 = vmatprep.subr.mxu0 0.0
  %722 = vmatpush1.msra.mxu0 0.0
  %723 = vmatprep.subr.mxu0 0.0
  %724 = vmatpush1.msra.mxu0 0.0
  %725 = vmatprep.mubr.f32.mxu0 0.0
  %726 = vmatmul.mubr.f32.gmra.mrb[0].mxu0 %v583
  %v727 = vpop.f32.mrb[0].mxu0
  %v728 = vadd.f32 0.0, %v727
  %v729 = vpop.f32.mrb[0].mxu0
  %730 = vdwg.mxu0
  %v731 = vadd.f32 %v587, %v657
  %v732 = vxor.u32 %v731, 2147483648
  %v733 = vmul.f32 %v732, 1.442695
  %v734 = vpow.pop %v733
  %v735 = vadd.f32 %v734, 1.0
  %v736 = vrcp.pop %v735
  %v737 = vmul.f32 1.0, %v736
  %v738 = vadd.f32 %v588, %v659
  %v739 = vxor.u32 %v738, 2147483648
  %v740 = vmul.f32 %v739, 1.442695
  %v741 = vpow.pop %v740
  %v742 = vadd.f32 %v741, 1.0
  %v743 = vrcp.pop %v742
  %v744 = vmul.f32 1.0, %v743
  %v745 = vadd.f32 %v728, %v78
  %v746 = vmul.f32 %v737, %v745
  %v747 = vadd.f32 %v589, %v746
  %v748 = vtanh.pop %v747
  %v749 = vsub.f32 1.0, %v744
  %v750 = vmul.f32 %v749, %v748
  %v751 = vmul.f32 %v744, %v583
  %v752 = vadd.f32 %v750, %v751
  %s753 = scalar_lea.vmem %s4, 24
  %754 = vst [vmem:[%s753] sm:$0xff] %v752
  %s755 = scalar_lea.vmem %s0, 96
  %v756 = vld [vmem:[%s755] sm:$0xff]
  %v757 = vld [vmem:[%s755 + $0x8] sm:$0xff]
  %v758 = vld [vmem:[%s755 + $0x10] sm:$0xff]
  %759 = vmatprep.subr.mxu0 %v26
  %760 = vmatpush1.msra.mxu0 %v25
  %761 = vmatprep.subr.mxu0 %v29
  %762 = vmatpush1.msra.mxu0 %v28
  %763 = vmatprep.subr.mxu0 %v32
  %764 = vmatpush1.msra.mxu0 %v31
  %765 = vmatprep.subr.mxu0 %v35
  %766 = vmatpush1.msra.mxu0 %v34
  %767 = vmatprep.subr.mxu0 %v38
  %768 = vmatpush1.msra.mxu0 %v37
  %769 = vmatprep.subr.mxu0 %v41
  %770 = vmatpush1.msra.mxu0 %v40
  %771 = vmatprep.subr.mxu0 %v44
  %772 = vmatpush1.msra.mxu0 %v43
  %773 = vmatprep.subr.mxu0 %v47
  %774 = vmatpush1.msra.mxu0 %v46
  %775 = vmatprep.subr.mxu0 %v50
  %776 = vmatpush1.msra.mxu0 %v49
  %777 = vmatprep.subr.mxu0 %v53
  %778 = vmatpush1.msra.mxu0 %v52
  %779 = vmatprep.subr.mxu0 %v56
  %780 = vmatpush1.msra.mxu0 %v55
  %781 = vmatprep.subr.mxu0 %v59
  %782 = vmatpush1.msra.mxu0 %v58
  %783 = vmatprep.subr.mxu0 %v62
  %784 = vmatpush1.msra.mxu0 %v61
  %785 = vmatprep.subr.mxu0 %v65
  %786 = vmatpush1.msra.mxu0 %v64
  %787 = vmatprep.subr.mxu0 %v68
  %788 = vmatpush1.msra.mxu0 %v67
  %789 = vmatprep.subr.mxu0 %v71
  %790 = vmatpush1.msra.mxu0 %v70
  %791 = vmatprep.subr.mxu0 0.0
  %792 = vmatpush1.msra.mxu0 0.0
  %793 = vmatprep.subr.mxu0 0.0
  %794 = vmatpush1.msra.mxu0 0.0
  %795 = vmatprep.subr.mxu0 0.0
  %796 = vmatpush1.msra.mxu0 0.0
  %797 = vmatprep.subr.mxu0 0.0
  %798 = vmatpush1.msra.mxu0 0.0
  %799 = vmatprep.subr.mxu0 0.0
  %800 = vmatpush1.msra.mxu0 0.0
  %801 = vmatprep.subr.mxu0 0.0
  %802 = vmatpush1.msra.mxu0 0.0
  %803 = vmatprep.subr.mxu0 0.0
  %804 = vmatpush1.msra.mxu0 0.0
  %805 = vmatprep.subr.mxu0 0.0
  %806 = vmatpush1.msra.mxu0 0.0
  %807 = vmatprep.subr.mxu0 0.0
  %808 = vmatpush1.msra.mxu0 0.0
  %809 = vmatprep.subr.mxu0 0.0
  %810 = vmatpush1.msra.mxu0 0.0
  %811 = vmatprep.subr.mxu0 0.0
  %812 = vmatpush1.msra.mxu0 0.0
  %813 = vmatprep.subr.mxu0 0.0
  %814 = vmatpush1.msra.mxu0 0.0
  %815 = vmatprep.subr.mxu0 0.0
  %816 = vmatpush1.msra.mxu0 0.0
  %817 = vmatprep.subr.mxu0 0.0
  %818 = vmatpush1.msra.mxu0 0.0
  %819 = vmatprep.subr.mxu0 0.0
  %820 = vmatpush1.msra.mxu0 0.0
  %821 = vmatprep.subr.mxu0 0.0
  %822 = vmatpush1.msra.mxu0 0.0
  %823 = vmatprep.mubr.f32.mxu0 0.0
  %824 = vmatmul.mubr.f32.gmra.mrb[0].mxu0 %v752
  %v825 = vpop.f32.mrb[0].mxu0
  %v826 = vadd.f32 0.0, %v825
  %v827 = vpop.f32.mrb[0].mxu0
  %v828 = vadd.f32 0.0, %v827
  %829 = vdwg.mxu0
  %830 = vmatprep.subr.mxu0 0.0
  %831 = vmatpush1.msra.mxu0 %v27
  %832 = vmatprep.subr.mxu0 0.0
  %833 = vmatpush1.msra.mxu0 %v30
  %834 = vmatprep.subr.mxu0 0.0
  %835 = vmatpush1.msra.mxu0 %v33
  %836 = vmatprep.subr.mxu0 0.0
  %837 = vmatpush1.msra.mxu0 %v36
  %838 = vmatprep.subr.mxu0 0.0
  %839 = vmatpush1.msra.mxu0 %v39
  %840 = vmatprep.subr.mxu0 0.0
  %841 = vmatpush1.msra.mxu0 %v42
  %842 = vmatprep.subr.mxu0 0.0
  %843 = vmatpush1.msra.mxu0 %v45
  %844 = vmatprep.subr.mxu0 0.0
  %845 = vmatpush1.msra.mxu0 %v48
  %846 = vmatprep.subr.mxu0 0.0
  %847 = vmatpush1.msra.mxu0 %v51
  %848 = vmatprep.subr.mxu0 0.0
  %849 = vmatpush1.msra.mxu0 %v54
  %850 = vmatprep.subr.mxu0 0.0
  %851 = vmatpush1.msra.mxu0 %v57
  %852 = vmatprep.subr.mxu0 0.0
  %853 = vmatpush1.msra.mxu0 %v60
  %854 = vmatprep.subr.mxu0 0.0
  %855 = vmatpush1.msra.mxu0 %v63
  %856 = vmatprep.subr.mxu0 0.0
  %857 = vmatpush1.msra.mxu0 %v66
  %858 = vmatprep.subr.mxu0 0.0
  %859 = vmatpush1.msra.mxu0 %v69
  %860 = vmatprep.subr.mxu0 0.0
  %861 = vmatpush1.msra.mxu0 %v72
  %862 = vmatprep.subr.mxu0 0.0
  %863 = vmatpush1.msra.mxu0 0.0
  %864 = vmatprep.subr.mxu0 0.0
  %865 = vmatpush1.msra.mxu0 0.0
  %866 = vmatprep.subr.mxu0 0.0
  %867 = vmatpush1.msra.mxu0 0.0
  %868 = vmatprep.subr.mxu0 0.0
  %869 = vmatpush1.msra.mxu0 0.0
  %870 = vmatprep.subr.mxu0 0.0
  %871 = vmatpush1.msra.mxu0 0.0
  %872 = vmatprep.subr.mxu0 0.0
  %873 = vmatpush1.msra.mxu0 0.0
  %874 = vmatprep.subr.mxu0 0.0
  %875 = vmatpush1.msra.mxu0 0.0
  %876 = vmatprep.subr.mxu0 0.0
  %877 = vmatpush1.msra.mxu0 0.0
  %878 = vmatprep.subr.mxu0 0.0
  %879 = vmatpush1.msra.mxu0 0.0
  %880 = vmatprep.subr.mxu0 0.0
  %881 = vmatpush1.msra.mxu0 0.0
  %882 = vmatprep.subr.mxu0 0.0
  %883 = vmatpush1.msra.mxu0 0.0
  %884 = vmatprep.subr.mxu0 0.0
  %885 = vmatpush1.msra.mxu0 0.0
  %886 = vmatprep.subr.mxu0 0.0
  %887 = vmatpush1.msra.mxu0 0.0
  %888 = vmatprep.subr.mxu0 0.0
  %889 = vmatpush1.msra.mxu0 0.0
  %890 = vmatprep.subr.mxu0 0.0
  %891 = vmatpush1.msra.mxu0 0.0
  %892 = vmatprep.subr.mxu0 0.0
  %893 = vmatpush1.msra.mxu0 0.0
  %894 = vmatprep.mubr.f32.mxu0 0.0
  %895 = vmatmul.mubr.f32.gmra.mrb[0].mxu0 %v752
  %v896 = vpop.f32.mrb[0].mxu0
  %v897 = vadd.f32 0.0, %v896
  %v898 = vpop.f32.mrb[0].mxu0
  %899 = vdwg.mxu0
  %v900 = vadd.f32 %v756, %v826
  %v901 = vxor.u32 %v900, 2147483648
  %v902 = vmul.f32 %v901, 1.442695
  %v903 = vpow.pop %v902
  %v904 = vadd.f32 %v903, 1.0
  %v905 = vrcp.pop %v904
  %v906 = vmul.f32 1.0, %v905
  %v907 = vadd.f32 %v757, %v828
  %v908 = vxor.u32 %v907, 2147483648
  %v909 = vmul.f32 %v908, 1.442695
  %v910 = vpow.pop %v909
  %v911 = vadd.f32 %v910, 1.0
  %v912 = vrcp.pop %v911
  %v913 = vmul.f32 1.0, %v912
  %v914 = vadd.f32 %v897, %v78
  %v915 = vmul.f32 %v906, %v914
  %v916 = vadd.f32 %v758, %v915
  %v917 = vtanh.pop %v916
  %v918 = vsub.f32 1.0, %v913
  %v919 = vmul.f32 %v918, %v917
  %v920 = vmul.f32 %v913, %v752
  %v921 = vadd.f32 %v919, %v920
  %s922 = scalar_lea.vmem %s4, 32
  %923 = vst [vmem:[%s922] sm:$0xff] %v921
  %s924 = scalar_lea.vmem %s0, 120
  %v925 = vld [vmem:[%s924] sm:$0xff]
  %v926 = vld [vmem:[%s924 + $0x8] sm:$0xff]
  %v927 = vld [vmem:[%s924 + $0x10] sm:$0xff]
  %928 = vmatprep.subr.mxu0 %v26
  %929 = vmatpush1.msra.mxu0 %v25
  %930 = vmatprep.subr.mxu0 %v29
  %931 = vmatpush1.msra.mxu0 %v28
  %932 = vmatprep.subr.mxu0 %v32
  %933 = vmatpush1.msra.mxu0 %v31
  %934 = vmatprep.subr.mxu0 %v35
  %935 = vmatpush1.msra.mxu0 %v34
  %936 = vmatprep.subr.mxu0 %v38
  %937 = vmatpush1.msra.mxu0 %v37
  %938 = vmatprep.subr.mxu0 %v41
  %939 = vmatpush1.msra.mxu0 %v40
  %940 = vmatprep.subr.mxu0 %v44
  %941 = vmatpush1.msra.mxu0 %v43
  %942 = vmatprep.subr.mxu0 %v47
  %943 = vmatpush1.msra.mxu0 %v46
  %944 = vmatprep.subr.mxu0 %v50
  %945 = vmatpush1.msra.mxu0 %v49
  %946 = vmatprep.subr.mxu0 %v53
  %947 = vmatpush1.msra.mxu0 %v52
  %948 = vmatprep.subr.mxu0 %v56
  %949 = vmatpush1.msra.mxu0 %v55
  %950 = vmatprep.subr.mxu0 %v59
  %951 = vmatpush1.msra.mxu0 %v58
  %952 = vmatprep.subr.mxu0 %v62
  %953 = vmatpush1.msra.mxu0 %v61
  %954 = vmatprep.subr.mxu0 %v65
  %955 = vmatpush1.msra.mxu0 %v64
  %956 = vmatprep.subr.mxu0 %v68
  %957 = vmatpush1.msra.mxu0 %v67
  %958 = vmatprep.subr.mxu0 %v71
  %959 = vmatpush1.msra.mxu0 %v70
  %960 = vmatprep.subr.mxu0 0.0
  %961 = vmatpush1.msra.mxu0 0.0
  %962 = vmatprep.subr.mxu0 0.0
  %963 = vmatpush1.msra.mxu0 0.0
  %964 = vmatprep.subr.mxu0 0.0
  %965 = vmatpush1.msra.mxu0 0.0
  %966 = vmatprep.subr.mxu0 0.0
  %967 = vmatpush1.msra.mxu0 0.0
  %968 = vmatprep.subr.mxu0 0.0
  %969 = vmatpush1.msra.mxu0 0.0
  %970 = vmatprep.subr.mxu0 0.0
  %971 = vmatpush1.msra.mxu0 0.0
  %972 = vmatprep.subr.mxu0 0.0
  %973 = vmatpush1.msra.mxu0 0.0
  %974 = vmatprep.subr.mxu0 0.0
  %975 = vmatpush1.msra.mxu0 0.0
  %976 = vmatprep.subr.mxu0 0.0
  %977 = vmatpush1.msra.mxu0 0.0
  %978 = vmatprep.subr.mxu0 0.0
  %979 = vmatpush1.msra.mxu0 0.0
  %980 = vmatprep.subr.mxu0 0.0
  %981 = vmatpush1.msra.mxu0 0.0
  %982 = vmatprep.subr.mxu0 0.0
  %983 = vmatpush1.msra.mxu0 0.0
  %984 = vmatprep.subr.mxu0 0.0
  %985 = vmatpush1.msra.mxu0 0.0
  %986 = vmatprep.subr.mxu0 0.0
  %987 = vmatpush1.msra.mxu0 0.0
  %988 = vmatprep.subr.mxu0 0.0
  %989 = vmatpush1.msra.mxu0 0.0
  %990 = vmatprep.subr.mxu0 0.0
  %991 = vmatpush1.msra.mxu0 0.0
  %992 = vmatprep.mubr.f32.mxu0 0.0
  %993 = vmatmul.mubr.f32.gmra.mrb[0].mxu0 %v921
  %v994 = vpop.f32.mrb[0].mxu0
  %v995 = vadd.f32 0.0, %v994
  %v996 = vpop.f32.mrb[0].mxu0
  %v997 = vadd.f32 0.0, %v996
  %998 = vdwg.mxu0
  %999 = vmatprep.subr.mxu0 0.0
  %1000 = vmatpush1.msra.mxu0 %v27
  %1001 = vmatprep.subr.mxu0 0.0
  %1002 = vmatpush1.msra.mxu0 %v30
  %1003 = vmatprep.subr.mxu0 0.0
  %1004 = vmatpush1.msra.mxu0 %v33
  %1005 = vmatprep.subr.mxu0 0.0
  %1006 = vmatpush1.msra.mxu0 %v36
  %1007 = vmatprep.subr.mxu0 0.0
  %1008 = vmatpush1.msra.mxu0 %v39
  %1009 = vmatprep.subr.mxu0 0.0
  %1010 = vmatpush1.msra.mxu0 %v42
  %1011 = vmatprep.subr.mxu0 0.0
  %1012 = vmatpush1.msra.mxu0 %v45
  %1013 = vmatprep.subr.mxu0 0.0
  %1014 = vmatpush1.msra.mxu0 %v48
  %1015 = vmatprep.subr.mxu0 0.0
  %1016 = vmatpush1.msra.mxu0 %v51
  %1017 = vmatprep.subr.mxu0 0.0
  %1018 = vmatpush1.msra.mxu0 %v54
  %1019 = vmatprep.subr.mxu0 0.0
  %1020 = vmatpush1.msra.mxu0 %v57
  %1021 = vmatprep.subr.mxu0 0.0
  %1022 = vmatpush1.msra.mxu0 %v60
  %1023 = vmatprep.subr.mxu0 0.0
  %1024 = vmatpush1.msra.mxu0 %v63
  %1025 = vmatprep.subr.mxu0 0.0
  %1026 = vmatpush1.msra.mxu0 %v66
  %1027 = vmatprep.subr.mxu0 0.0
  %1028 = vmatpush1.msra.mxu0 %v69
  %1029 = vmatprep.subr.mxu0 0.0
  %1030 = vmatpush1.msra.mxu0 %v72
  %1031 = vmatprep.subr.mxu0 0.0
  %1032 = vmatpush1.msra.mxu0 0.0
  %1033 = vmatprep.subr.mxu0 0.0
  %1034 = vmatpush1.msra.mxu0 0.0
  %1035 = vmatprep.subr.mxu0 0.0
  %1036 = vmatpush1.msra.mxu0 0.0
  %1037 = vmatprep.subr.mxu0 0.0
  %1038 = vmatpush1.msra.mxu0 0.0
  %1039 = vmatprep.subr.mxu0 0.0
  %1040 = vmatpush1.msra.mxu0 0.0
  %1041 = vmatprep.subr.mxu0 0.0
  %1042 = vmatpush1.msra.mxu0 0.0
  %1043 = vmatprep.subr.mxu0 0.0
  %1044 = vmatpush1.msra.mxu0 0.0
  %1045 = vmatprep.subr.mxu0 0.0
  %1046 = vmatpush1.msra.mxu0 0.0
  %1047 = vmatprep.subr.mxu0 0.0
  %1048 = vmatpush1.msra.mxu0 0.0
  %1049 = vmatprep.subr.mxu0 0.0
  %1050 = vmatpush1.msra.mxu0 0.0
  %1051 = vmatprep.subr.mxu0 0.0
  %1052 = vmatpush1.msra.mxu0 0.0
  %1053 = vmatprep.subr.mxu0 0.0
  %1054 = vmatpush1.msra.mxu0 0.0
  %1055 = vmatprep.subr.mxu0 0.0
  %1056 = vmatpush1.msra.mxu0 0.0
  %1057 = vmatprep.subr.mxu0 0.0
  %1058 = vmatpush1.msra.mxu0 0.0
  %1059 = vmatprep.subr.mxu0 0.0
  %1060 = vmatpush1.msra.mxu0 0.0
  %1061 = vmatprep.subr.mxu0 0.0
  %1062 = vmatpush1.msra.mxu0 0.0
  %1063 = vmatprep.mubr.f32.mxu0 0.0
  %1064 = vmatmul.mubr.f32.gmra.mrb[0].mxu0 %v921
  %v1065 = vpop.f32.mrb[0].mxu0
  %v1066 = vadd.f32 0.0, %v1065
  %v1067 = vpop.f32.mrb[0].mxu0
  %1068 = vdwg.mxu0
  %v1069 = vadd.f32 %v925, %v995
  %v1070 = vxor.u32 %v1069, 2147483648
  %v1071 = vmul.f32 %v1070, 1.442695
  %v1072 = vpow.pop %v1071
  %v1073 = vadd.f32 %v1072, 1.0
  %v1074 = vrcp.pop %v1073
  %v1075 = vmul.f32 1.0, %v1074
  %v1076 = vadd.f32 %v926, %v997
  %v1077 = vxor.u32 %v1076, 2147483648
  %v1078 = vmul.f32 %v1077, 1.442695
  %v1079 = vpow.pop %v1078
  %v1080 = vadd.f32 %v1079, 1.0
  %v1081 = vrcp.pop %v1080
  %v1082 = vmul.f32 1.0, %v1081
  %v1083 = vadd.f32 %v1066, %v78
  %v1084 = vmul.f32 %v1075, %v1083
  %v1085 = vadd.f32 %v927, %v1084
  %v1086 = vtanh.pop %v1085
  %v1087 = vsub.f32 1.0, %v1082
  %v1088 = vmul.f32 %v1087, %v1086
  %v1089 = vmul.f32 %v1082, %v921
  %v1090 = vadd.f32 %v1088, %v1089
  %s1091 = scalar_lea.vmem %s4, 40
  %1092 = vst [vmem:[%s1091] sm:$0xff] %v1090
  %s1093 = scalar_lea.vmem %s0, 144
  %v1094 = vld [vmem:[%s1093] sm:$0xff]
  %v1095 = vld [vmem:[%s1093 + $0x8] sm:$0xff]
  %v1096 = vld [vmem:[%s1093 + $0x10] sm:$0xff]
  %1097 = vmatprep.subr.mxu0 %v26
  %1098 = vmatpush1.msra.mxu0 %v25
  %1099 = vmatprep.subr.mxu0 %v29
  %1100 = vmatpush1.msra.mxu0 %v28
  %1101 = vmatprep.subr.mxu0 %v32
  %1102 = vmatpush1.msra.mxu0 %v31
  %1103 = vmatprep.subr.mxu0 %v35
  %1104 = vmatpush1.msra.mxu0 %v34
  %1105 = vmatprep.subr.mxu0 %v38
  %1106 = vmatpush1.msra.mxu0 %v37
  %1107 = vmatprep.subr.mxu0 %v41
  %1108 = vmatpush1.msra.mxu0 %v40
  %1109 = vmatprep.subr.mxu0 %v44
  %1110 = vmatpush1.msra.mxu0 %v43
  %1111 = vmatprep.subr.mxu0 %v47
  %1112 = vmatpush1.msra.mxu0 %v46
  %1113 = vmatprep.subr.mxu0 %v50
  %1114 = vmatpush1.msra.mxu0 %v49
  %1115 = vmatprep.subr.mxu0 %v53
  %1116 = vmatpush1.msra.mxu0 %v52
  %1117 = vmatprep.subr.mxu0 %v56
  %1118 = vmatpush1.msra.mxu0 %v55
  %1119 = vmatprep.subr.mxu0 %v59
  %1120 = vmatpush1.msra.mxu0 %v58
  %1121 = vmatprep.subr.mxu0 %v62
  %1122 = vmatpush1.msra.mxu0 %v61
  %1123 = vmatprep.subr.mxu0 %v65
  %1124 = vmatpush1.msra.mxu0 %v64
  %1125 = vmatprep.subr.mxu0 %v68
  %1126 = vmatpush1.msra.mxu0 %v67
  %1127 = vmatprep.subr.mxu0 %v71
  %1128 = vmatpush1.msra.mxu0 %v70
  %1129 = vmatprep.subr.mxu0 0.0
  %1130 = vmatpush1.msra.mxu0 0.0
  %1131 = vmatprep.subr.mxu0 0.0
  %1132 = vmatpush1.msra.mxu0 0.0
  %1133 = vmatprep.subr.mxu0 0.0
  %1134 = vmatpush1.msra.mxu0 0.0
  %1135 = vmatprep.subr.mxu0 0.0
  %1136 = vmatpush1.msra.mxu0 0.0
  %1137 = vmatprep.subr.mxu0 0.0
  %1138 = vmatpush1.msra.mxu0 0.0
  %1139 = vmatprep.subr.mxu0 0.0
  %1140 = vmatpush1.msra.mxu0 0.0
  %1141 = vmatprep.subr.mxu0 0.0
  %1142 = vmatpush1.msra.mxu0 0.0
  %1143 = vmatprep.subr.mxu0 0.0
  %1144 = vmatpush1.msra.mxu0 0.0
  %1145 = vmatprep.subr.mxu0 0.0
  %1146 = vmatpush1.msra.mxu0 0.0
  %1147 = vmatprep.subr.mxu0 0.0
  %1148 = vmatpush1.msra.mxu0 0.0
  %1149 = vmatprep.subr.mxu0 0.0
  %1150 = vmatpush1.msra.mxu0 0.0
  %1151 = vmatprep.subr.mxu0 0.0
  %1152 = vmatpush1.msra.mxu0 0.0
  %1153 = vmatprep.subr.mxu0 0.0
  %1154 = vmatpush1.msra.mxu0 0.0
  %1155 = vmatprep.subr.mxu0 0.0
  %1156 = vmatpush1.msra.mxu0 0.0
  %1157 = vmatprep.subr.mxu0 0.0
  %1158 = vmatpush1.msra.mxu0 0.0
  %1159 = vmatprep.subr.mxu0 0.0
  %1160 = vmatpush1.msra.mxu0 0.0
  %1161 = vmatprep.mubr.f32.mxu0 0.0
  %1162 = vmatmul.mubr.f32.gmra.mrb[0].mxu0 %v1090
  %v1163 = vpop.f32.mrb[0].mxu0
  %v1164 = vadd.f32 0.0, %v1163
  %v1165 = vpop.f32.mrb[0].mxu0
  %v1166 = vadd.f32 0.0, %v1165
  %1167 = vdwg.mxu0
  %1168 = vmatprep.subr.mxu0 0.0
  %1169 = vmatpush1.msra.mxu0 %v27
  %1170 = vmatprep.subr.mxu0 0.0
  %1171 = vmatpush1.msra.mxu0 %v30
  %1172 = vmatprep.subr.mxu0 0.0
  %1173 = vmatpush1.msra.mxu0 %v33
  %1174 = vmatprep.subr.mxu0 0.0
  %1175 = vmatpush1.msra.mxu0 %v36
  %1176 = vmatprep.subr.mxu0 0.0
  %1177 = vmatpush1.msra.mxu0 %v39
  %1178 = vmatprep.subr.mxu0 0.0
  %1179 = vmatpush1.msra.mxu0 %v42
  %1180 = vmatprep.subr.mxu0 0.0
  %1181 = vmatpush1.msra.mxu0 %v45
  %1182 = vmatprep.subr.mxu0 0.0
  %1183 = vmatpush1.msra.mxu0 %v48
  %1184 = vmatprep.subr.mxu0 0.0
  %1185 = vmatpush1.msra.mxu0 %v51
  %1186 = vmatprep.subr.mxu0 0.0
  %1187 = vmatpush1.msra.mxu0 %v54
  %1188 = vmatprep.subr.mxu0 0.0
  %1189 = vmatpush1.msra.mxu0 %v57
  %1190 = vmatprep.subr.mxu0 0.0
  %1191 = vmatpush1.msra.mxu0 %v60
  %1192 = vmatprep.subr.mxu0 0.0
  %1193 = vmatpush1.msra.mxu0 %v63
  %1194 = vmatprep.subr.mxu0 0.0
  %1195 = vmatpush1.msra.mxu0 %v66
  %1196 = vmatprep.subr.mxu0 0.0
  %1197 = vmatpush1.msra.mxu0 %v69
  %1198 = vmatprep.subr.mxu0 0.0
  %1199 = vmatpush1.msra.mxu0 %v72
  %1200 = vmatprep.subr.mxu0 0.0
  %1201 = vmatpush1.msra.mxu0 0.0
  %1202 = vmatprep.subr.mxu0 0.0
  %1203 = vmatpush1.msra.mxu0 0.0
  %1204 = vmatprep.subr.mxu0 0.0
  %1205 = vmatpush1.msra.mxu0 0.0
  %1206 = vmatprep.subr.mxu0 0.0
  %1207 = vmatpush1.msra.mxu0 0.0
  %1208 = vmatprep.subr.mxu0 0.0
  %1209 = vmatpush1.msra.mxu0 0.0
  %1210 = vmatprep.subr.mxu0 0.0
  %1211 = vmatpush1.msra.mxu0 0.0
  %1212 = vmatprep.subr.mxu0 0.0
  %1213 = vmatpush1.msra.mxu0 0.0
  %1214 = vmatprep.subr.mxu0 0.0
  %1215 = vmatpush1.msra.mxu0 0.0
  %1216 = vmatprep.subr.mxu0 0.0
  %1217 = vmatpush1.msra.mxu0 0.0
  %1218 = vmatprep.subr.mxu0 0.0
  %1219 = vmatpush1.msra.mxu0 0.0
  %1220 = vmatprep.subr.mxu0 0.0
  %1221 = vmatpush1.msra.mxu0 0.0
  %1222 = vmatprep.subr.mxu0 0.0
  %1223 = vmatpush1.msra.mxu0 0.0
  %1224 = vmatprep.subr.mxu0 0.0
  %1225 = vmatpush1.msra.mxu0 0.0
  %1226 = vmatprep.subr.mxu0 0.0
  %1227 = vmatpush1.msra.mxu0 0.0
  %1228 = vmatprep.subr.mxu0 0.0
  %1229 = vmatpush1.msra.mxu0 0.0
  %1230 = vmatprep.subr.mxu0 0.0
  %1231 = vmatpush1.msra.mxu0 0.0
  %1232 = vmatprep.mubr.f32.mxu0 0.0
  %1233 = vmatmul.mubr.f32.gmra.mrb[0].mxu0 %v1090
  %v1234 = vpop.f32.mrb[0].mxu0
  %v1235 = vadd.f32 0.0, %v1234
  %v1236 = vpop.f32.mrb[0].mxu0
  %1237 = vdwg.mxu0
  %v1238 = vadd.f32 %v1094, %v1164
  %v1239 = vxor.u32 %v1238, 2147483648
  %v1240 = vmul.f32 %v1239, 1.442695
  %v1241 = vpow.pop %v1240
  %v1242 = vadd.f32 %v1241, 1.0
  %v1243 = vrcp.pop %v1242
  %v1244 = vmul.f32 1.0, %v1243
  %v1245 = vadd.f32 %v1095, %v1166
  %v1246 = vxor.u32 %v1245, 2147483648
  %v1247 = vmul.f32 %v1246, 1.442695
  %v1248 = vpow.pop %v1247
  %v1249 = vadd.f32 %v1248, 1.0
  %v1250 = vrcp.pop %v1249
  %v1251 = vmul.f32 1.0, %v1250
  %v1252 = vadd.f32 %v1235, %v78
  %v1253 = vmul.f32 %v1244, %v1252
  %v1254 = vadd.f32 %v1096, %v1253
  %v1255 = vtanh.pop %v1254
  %v1256 = vsub.f32 1.0, %v1251
  %v1257 = vmul.f32 %v1256, %v1255
  %v1258 = vmul.f32 %v1251, %v1090
  %v1259 = vadd.f32 %v1257, %v1258
  %s1260 = scalar_lea.vmem %s4, 48
  %1261 = vst [vmem:[%s1260] sm:$0xff] %v1259
  %s1262 = scalar_lea.vmem %s0, 168
  %v1263 = vld [vmem:[%s1262] sm:$0xff]
  %v1264 = vld [vmem:[%s1262 + $0x8] sm:$0xff]
  %v1265 = vld [vmem:[%s1262 + $0x10] sm:$0xff]
  %1266 = vmatprep.subr.mxu0 %v26
  %1267 = vmatpush1.msra.mxu0 %v25
  %1268 = vmatprep.subr.mxu0 %v29
  %1269 = vmatpush1.msra.mxu0 %v28
  %1270 = vmatprep.subr.mxu0 %v32
  %1271 = vmatpush1.msra.mxu0 %v31
  %1272 = vmatprep.subr.mxu0 %v35
  %1273 = vmatpush1.msra.mxu0 %v34
  %1274 = vmatprep.subr.mxu0 %v38
  %1275 = vmatpush1.msra.mxu0 %v37
  %1276 = vmatprep.subr.mxu0 %v41
  %1277 = vmatpush1.msra.mxu0 %v40
  %1278 = vmatprep.subr.mxu0 %v44
  %1279 = vmatpush1.msra.mxu0 %v43
  %1280 = vmatprep.subr.mxu0 %v47
  %1281 = vmatpush1.msra.mxu0 %v46
  %1282 = vmatprep.subr.mxu0 %v50
  %1283 = vmatpush1.msra.mxu0 %v49
  %1284 = vmatprep.subr.mxu0 %v53
  %1285 = vmatpush1.msra.mxu0 %v52
  %1286 = vmatprep.subr.mxu0 %v56
  %1287 = vmatpush1.msra.mxu0 %v55
  %1288 = vmatprep.subr.mxu0 %v59
  %1289 = vmatpush1.msra.mxu0 %v58
  %1290 = vmatprep.subr.mxu0 %v62
  %1291 = vmatpush1.msra.mxu0 %v61
  %1292 = vmatprep.subr.mxu0 %v65
  %1293 = vmatpush1.msra.mxu0 %v64
  %1294 = vmatprep.subr.mxu0 %v68
  %1295 = vmatpush1.msra.mxu0 %v67
  %1296 = vmatprep.subr.mxu0 %v71
  %1297 = vmatpush1.msra.mxu0 %v70
  %1298 = vmatprep.subr.mxu0 0.0
  %1299 = vmatpush1.msra.mxu0 0.0
  %1300 = vmatprep.subr.mxu0 0.0
  %1301 = vmatpush1.msra.mxu0 0.0
  %1302 = vmatprep.subr.mxu0 0.0
  %1303 = vmatpush1.msra.mxu0 0.0
  %1304 = vmatprep.subr.mxu0 0.0
  %1305 = vmatpush1.msra.mxu0 0.0
  %1306 = vmatprep.subr.mxu0 0.0
  %1307 = vmatpush1.msra.mxu0 0.0
  %1308 = vmatprep.subr.mxu0 0.0
  %1309 = vmatpush1.msra.mxu0 0.0
  %1310 = vmatprep.subr.mxu0 0.0
  %1311 = vmatpush1.msra.mxu0 0.0
  %1312 = vmatprep.subr.mxu0 0.0
  %1313 = vmatpush1.msra.mxu0 0.0
  %1314 = vmatprep.subr.mxu0 0.0
  %1315 = vmatpush1.msra.mxu0 0.0
  %1316 = vmatprep.subr.mxu0 0.0
  %1317 = vmatpush1.msra.mxu0 0.0
  %1318 = vmatprep.subr.mxu0 0.0
  %1319 = vmatpush1.msra.mxu0 0.0
  %1320 = vmatprep.subr.mxu0 0.0
  %1321 = vmatpush1.msra.mxu0 0.0
  %1322 = vmatprep.subr.mxu0 0.0
  %1323 = vmatpush1.msra.mxu0 0.0
  %1324 = vmatprep.subr.mxu0 0.0
  %1325 = vmatpush1.msra.mxu0 0.0
  %1326 = vmatprep.subr.mxu0 0.0
  %1327 = vmatpush1.msra.mxu0 0.0
  %1328 = vmatprep.subr.mxu0 0.0
  %1329 = vmatpush1.msra.mxu0 0.0
  %1330 = vmatprep.mubr.f32.mxu0 0.0
  %1331 = vmatmul.mubr.f32.gmra.mrb[0].mxu0 %v1259
  %v1332 = vpop.f32.mrb[0].mxu0
  %v1333 = vadd.f32 0.0, %v1332
  %v1334 = vpop.f32.mrb[0].mxu0
  %v1335 = vadd.f32 0.0, %v1334
  %1336 = vdwg.mxu0
  %1337 = vmatprep.subr.mxu0 0.0
  %1338 = vmatpush1.msra.mxu0 %v27
  %1339 = vmatprep.subr.mxu0 0.0
  %1340 = vmatpush1.msra.mxu0 %v30
  %1341 = vmatprep.subr.mxu0 0.0
  %1342 = vmatpush1.msra.mxu0 %v33
  %1343 = vmatprep.subr.mxu0 0.0
  %1344 = vmatpush1.msra.mxu0 %v36
  %1345 = vmatprep.subr.mxu0 0.0
  %1346 = vmatpush1.msra.mxu0 %v39
  %1347 = vmatprep.subr.mxu0 0.0
  %1348 = vmatpush1.msra.mxu0 %v42
  %1349 = vmatprep.subr.mxu0 0.0
  %1350 = vmatpush1.msra.mxu0 %v45
  %1351 = vmatprep.subr.mxu0 0.0
  %1352 = vmatpush1.msra.mxu0 %v48
  %1353 = vmatprep.subr.mxu0 0.0
  %1354 = vmatpush1.msra.mxu0 %v51
  %1355 = vmatprep.subr.mxu0 0.0
  %1356 = vmatpush1.msra.mxu0 %v54
  %1357 = vmatprep.subr.mxu0 0.0
  %1358 = vmatpush1.msra.mxu0 %v57
  %1359 = vmatprep.subr.mxu0 0.0
  %1360 = vmatpush1.msra.mxu0 %v60
  %1361 = vmatprep.subr.mxu0 0.0
  %1362 = vmatpush1.msra.mxu0 %v63
  %1363 = vmatprep.subr.mxu0 0.0
  %1364 = vmatpush1.msra.mxu0 %v66
  %1365 = vmatprep.subr.mxu0 0.0
  %1366 = vmatpush1.msra.mxu0 %v69
  %1367 = vmatprep.subr.mxu0 0.0
  %1368 = vmatpush1.msra.mxu0 %v72
  %1369 = vmatprep.subr.mxu0 0.0
  %1370 = vmatpush1.msra.mxu0 0.0
  %1371 = vmatprep.subr.mxu0 0.0
  %1372 = vmatpush1.msra.mxu0 0.0
  %1373 = vmatprep.subr.mxu0 0.0
  %1374 = vmatpush1.msra.mxu0 0.0
  %1375 = vmatprep.subr.mxu0 0.0
  %1376 = vmatpush1.msra.mxu0 0.0
  %1377 = vmatprep.subr.mxu0 0.0
  %1378 = vmatpush1.msra.mxu0 0.0
  %1379 = vmatprep.subr.mxu0 0.0
  %1380 = vmatpush1.msra.mxu0 0.0
  %1381 = vmatprep.subr.mxu0 0.0
  %1382 = vmatpush1.msra.mxu0 0.0
  %1383 = vmatprep.subr.mxu0 0.0
  %1384 = vmatpush1.msra.mxu0 0.0
  %1385 = vmatprep.subr.mxu0 0.0
  %1386 = vmatpush1.msra.mxu0 0.0
  %1387 = vmatprep.subr.mxu0 0.0
  %1388 = vmatpush1.msra.mxu0 0.0
  %1389 = vmatprep.subr.mxu0 0.0
  %1390 = vmatpush1.msra.mxu0 0.0
  %1391 = vmatprep.subr.mxu0 0.0
  %1392 = vmatpush1.msra.mxu0 0.0
  %1393 = vmatprep.subr.mxu0 0.0
  %1394 = vmatpush1.msra.mxu0 0.0
  %1395 = vmatprep.subr.mxu0 0.0
  %1396 = vmatpush1.msra.mxu0 0.0
  %1397 = vmatprep.subr.mxu0 0.0
  %1398 = vmatpush1.msra.mxu0 0.0
  %1399 = vmatprep.subr.mxu0 0.0
  %1400 = vmatpush1.msra.mxu0 0.0
  %1401 = vmatprep.mubr.f32.mxu0 0.0
  %1402 = vmatmul.mubr.f32.gmra.mrb[0].mxu0 %v1259
  %v1403 = vpop.f32.mrb[0].mxu0
  %v1404 = vadd.f32 0.0, %v1403
  %v1405 = vpop.f32.mrb[0].mxu0
  %1406 = vdwg.mxu0
  %v1407 = vadd.f32 %v1263, %v1333
  %v1408 = vxor.u32 %v1407, 2147483648
  %v1409 = vmul.f32 %v1408, 1.442695
  %v1410 = vpow.pop %v1409
  %v1411 = vadd.f32 %v1410, 1.0
  %v1412 = vrcp.pop %v1411
  %v1413 = vmul.f32 1.0, %v1412
  %v1414 = vadd.f32 %v1264, %v1335
  %v1415 = vxor.u32 %v1414, 2147483648
  %v1416 = vmul.f32 %v1415, 1.442695
  %v1417 = vpow.pop %v1416
  %v1418 = vadd.f32 %v1417, 1.0
  %v1419 = vrcp.pop %v1418
  %v1420 = vmul.f32 1.0, %v1419
  %v1421 = vadd.f32 %v1404, %v78
  %v1422 = vmul.f32 %v1413, %v1421
  %v1423 = vadd.f32 %v1265, %v1422
  %v1424 = vtanh.pop %v1423
  %v1425 = vsub.f32 1.0, %v1420
  %v1426 = vmul.f32 %v1425, %v1424
  %v1427 = vmul.f32 %v1420, %v1259
  %v1428 = vadd.f32 %v1426, %v1427
  %s1429 = scalar_lea.vmem %s4, 56
  %1430 = vst [vmem:[%s1429] sm:$0xff] %v1428
  %1431 = vst [vmem:[#allocation2] sm:$0xff] %v1428
  %1432 = vst [vmem:[%s5] sm:$0xff] %v1428
  // Predicated region
  $region22: #{seq2seq_decoder_forward.2} parent=0 // pred_check
    _
  $region23: #{seq2seq_decoder_forward.2} parent=0 // pred_check_branch
    %1434 = sbr.rel (0) target = $region25
  $region24: #{seq2seq_decoder_forward.2} parent=0 // pred_region
    _
  $region25: #{seq2seq_decoder_forward.2} parent=0 // pred_fallthru
    _
  // Predicated region
  $region26: #{seq2seq_decoder_forward.2} parent=0 // pred_check
    _
  $region27: #{seq2seq_decoder_forward.2} parent=0 // pred_check_branch
    %1436 = sbr.rel (0) target = $region29
  $region28: #{seq2seq_decoder_forward.2} parent=0 // pred_region
    _
  $region29: #{seq2seq_decoder_forward.2} parent=0 // pred_fallthru
    _
  // Predicated region
  $region30: #{seq2seq_decoder_forward.2} parent=0 // pred_check
    _
  $region31: #{seq2seq_decoder_forward.2} parent=0 // pred_check_branch
    %1438 = sbr.rel (0) target = $region33
  $region32: #{seq2seq_decoder_forward.2} parent=0 // pred_region
    _
  $region33: #{seq2seq_decoder_forward.2} parent=0 // pred_fallthru
    _
  // Predicated region
  $region34: #{seq2seq_decoder_forward.2} parent=0 // pred_check
    _
  $region35: #{seq2seq_decoder_forward.2} parent=0 // pred_check_branch
    %1440 = sbr.rel (0) target = $region37
  $region36: #{seq2seq_decoder_forward.2} parent=0 // pred_region
    _
  $region37: #{seq2seq_decoder_forward.2} parent=0 // pred_fallthru
    _

// kernel: seq2seq_decoder_forward.3
$region0: #{seq2seq_decoder_forward.3}
  #allocation0 [shape = 'u32[]', space=smem, size = 0x4, offset = 0x4, fixed_abs, tag = 'smem constant byte address 0x4 - core index']
  #allocation1 [shape = 'u32[144,128]{1,0:T(1,128)}', space=vmem, size = 0x12000, scoped, tag = 'internal scratch']
  #allocation2 [shape = 'f32[8,128]{1,0:T(8,128)}', space=vmem, size = 0x1000, scoped, tag = 'scratch operand']
  #allocation3 [shape = 'f32[8,8,128]{2,1,0:T(8,128)}', space=vmem, size = 0x8000, scoped, tag = 'scratch operand']
  %s0 = inlined_call_operand.vmem [shape: f32[8,8,384], index: 0, kind: input, shape index: {}]
  %s1 = inlined_call_operand.vmem [shape: f32[128,384], index: 1, kind: input, shape index: {}]
  %s2 = inlined_call_operand.vmem [shape: f32[1,128], index: 2, kind: input, shape index: {}]
  %s3 = inlined_call_operand.vmem [shape: f32[8,128], index: 3, kind: input, shape index: {}]
  %s4 = inlined_call_operand.vmem [shape: f32[128,128], index: 4, kind: input, shape index: {}]
  %s5 = inlined_call_operand.vmem [shape: f32[1,128], index: 5, kind: input, shape index: {}]
  %s6 = inlined_call_operand.hbm [shape: f32[8,8,128], index: 6, kind: output, shape index: {0}]
  %s7 = inlined_call_operand.vmem [shape: f32[8,128], index: 7, kind: output, shape index: {1}]
  %8 = xla_tuple %s6, %s7
  %s9 = sld [smem:[#allocation0]]
  $region46: #{seq2seq_decoder_forward.3} parent=0
    _
  %s11 = ssub.s32 1, %s9
  %s12 = scalar_select 0, %s11, %s9
  $region1: #{seq2seq_decoder_forward.3} parent=0
    #allocation4 [shape = 'u8[32768]{0}', space=vmem, size = 0x8000, scoped, tag = 'output window, operand 0, single buffered']
    #allocation5 [shape = 's32[1]{0}', space=sflag, size = 0x4, scoped, tag = 'scoped memory for seq2seq_decoder_forward.3']
    %13 = vsyncpa [#allocation5], 0
    // Predicated region
    $region2: #{seq2seq_decoder_forward.3} parent=1 // pred_check
      _
    $region3: #{seq2seq_decoder_forward.3} parent=1 // pred_check_branch
      %15 = sbr.rel (0) target = $region5
    $region4: #{seq2seq_decoder_forward.3} parent=1 // pred_region
      _
    $region5: #{seq2seq_decoder_forward.3} parent=1 // pred_fallthru
      _
    // Predicated region
    $region6: #{seq2seq_decoder_forward.3} parent=1 // pred_check
      _
    $region7: #{seq2seq_decoder_forward.3} parent=1 // pred_check_branch
      %17 = sbr.rel (0) target = $region9
    $region8: #{seq2seq_decoder_forward.3} parent=1 // pred_region
      _
    $region9: #{seq2seq_decoder_forward.3} parent=1 // pred_fallthru
      _
    // Predicated region
    $region10: #{seq2seq_decoder_forward.3} parent=1 // pred_check
      _
    $region11: #{seq2seq_decoder_forward.3} parent=1 // pred_check_branch
      %19 = sbr.rel (0) target = $region13
    $region12: #{seq2seq_decoder_forward.3} parent=1 // pred_region
      _
    $region13: #{seq2seq_decoder_forward.3} parent=1 // pred_fallthru
      _
    // Predicated region
    $region14: #{seq2seq_decoder_forward.3} parent=1 // pred_check
      _
    $region15: #{seq2seq_decoder_forward.3} parent=1 // pred_check_branch
      %21 = sbr.rel (0) target = $region17
    $region16: #{seq2seq_decoder_forward.3} parent=1 // pred_region
      _
    $region17: #{seq2seq_decoder_forward.3} parent=1 // pred_fallthru
      _
    // Predicated region
    $region18: #{seq2seq_decoder_forward.3} parent=1 // pred_check
      _
    $region19: #{seq2seq_decoder_forward.3} parent=1 // pred_check_branch
      %23 = sbr.rel (0) target = $region21
    $region20: #{seq2seq_decoder_forward.3} parent=1 // pred_region
      _
    $region21: #{seq2seq_decoder_forward.3} parent=1 // pred_fallthru
      _
    // Predicated region
    $region22: #{seq2seq_decoder_forward.3} parent=1 // pred_check
      _
    $region23: #{seq2seq_decoder_forward.3} parent=1 // pred_check_branch
      %25 = sbr.rel (0) target = $region25
    $region24: #{seq2seq_decoder_forward.3} parent=1 // pred_region
      _
    $region25: #{seq2seq_decoder_forward.3} parent=1 // pred_fallthru
      _
    %p26 = scmp.eq.s32.totalorder 0, 0
    // Predicated region
    $region26: #{seq2seq_decoder_forward.3} parent=1 // pred_check
      %p27 = pneg %p26
    $region27: #{seq2seq_decoder_forward.3} parent=1 // pred_check_branch
      %29 = sbr.rel (%p27) target = $region29
    $region28: #{seq2seq_decoder_forward.3} parent=1 // pred_region
      %v30 = vld [vmem:[%s3] sm:$0xff]
      %31 = vst [vmem:[#allocation2] sm:$0xff] %v30
    $region29: #{seq2seq_decoder_forward.3} parent=1 // pred_fallthru
      _
    %v32 = vld [vmem:[%s1] sm:$0xff]
    %v33 = vld [vmem:[%s1 + $0x8] sm:$0xff]
    %v34 = vld [vmem:[%s1 + $0x10] sm:$0xff]
    %v35 = vld [vmem:[%s1 + $0x18] sm:$0xff]
    %v36 = vld [vmem:[%s1 + $0x20] sm:$0xff]
    %v37 = vld [vmem:[%s1 + $0x28] sm:$0xff]
    %v38 = vld [vmem:[%s1 + $0x30] sm:$0xff]
    %v39 = vld [vmem:[%s1 + $0x38] sm:$0xff]
    %v40 = vld [vmem:[%s1 + $0x40] sm:$0xff]
    %v41 = vld [vmem:[%s1 + $0x48] sm:$0xff]
    %v42 = vld [vmem:[%s1 + $0x50] sm:$0xff]
    %v43 = vld [vmem:[%s1 + $0x58] sm:$0xff]
    %v44 = vld [vmem:[%s1 + $0x60] sm:$0xff]
    %v45 = vld [vmem:[%s1 + $0x68] sm:$0xff]
    %v46 = vld [vmem:[%s1 + $0x70] sm:$0xff]
    %v47 = vld [vmem:[%s1 + $0x78] sm:$0xff]
    %v48 = vld [vmem:[%s1 + $0x80] sm:$0xff]
    %v49 = vld [vmem:[%s1 + $0x88] sm:$0xff]
    %v50 = vld [vmem:[%s1 + $0x90] sm:$0xff]
    %v51 = vld [vmem:[%s1 + $0x98] sm:$0xff]
    %v52 = vld [vmem:[%s1 + $0xa0] sm:$0xff]
    %v53 = vld [vmem:[%s1 + $0xa8] sm:$0xff]
    %v54 = vld [vmem:[%s1 + $0xb0] sm:$0xff]
    %v55 = vld [vmem:[%s1 + $0xb8] sm:$0xff]
    %v56 = vld [vmem:[%s1 + $0xc0] sm:$0xff]
    %v57 = vld [vmem:[%s1 + $0xc8] sm:$0xff]
    %v58 = vld [vmem:[%s1 + $0xd0] sm:$0xff]
    %v59 = vld [vmem:[%s1 + $0xd8] sm:$0xff]
    %v60 = vld [vmem:[%s1 + $0xe0] sm:$0xff]
    %v61 = vld [vmem:[%s1 + $0xe8] sm:$0xff]
    %v62 = vld [vmem:[%s1 + $0xf0] sm:$0xff]
    %v63 = vld [vmem:[%s1 + $0xf8] sm:$0xff]
    %v64 = vld [vmem:[%s1 + $0x100] sm:$0xff]
    %v65 = vld [vmem:[%s1 + $0x108] sm:$0xff]
    %v66 = vld [vmem:[%s1 + $0x110] sm:$0xff]
    %v67 = vld [vmem:[%s1 + $0x118] sm:$0xff]
    %v68 = vld [vmem:[%s1 + $0x120] sm:$0xff]
    %v69 = vld [vmem:[%s1 + $0x128] sm:$0xff]
    %v70 = vld [vmem:[%s1 + $0x130] sm:$0xff]
    %v71 = vld [vmem:[%s1 + $0x138] sm:$0xff]
    %v72 = vld [vmem:[%s1 + $0x140] sm:$0xff]
    %v73 = vld [vmem:[%s1 + $0x148] sm:$0xff]
    %v74 = vld [vmem:[%s1 + $0x150] sm:$0xff]
    %v75 = vld [vmem:[%s1 + $0x158] sm:$0xff]
    %v76 = vld [vmem:[%s1 + $0x160] sm:$0xff]
    %v77 = vld [vmem:[%s1 + $0x168] sm:$0xff]
    %v78 = vld [vmem:[%s1 + $0x170] sm:$0xff]
    %v79 = vld [vmem:[%s1 + $0x178] sm:$0xff]
    %v80 = vld [vmem:[%s2] sm:$0x1]
    %v82 = vlaneseq
    %v83 = vshrl.u32 %v82, 7
    %v84 = vsub.s32 0, %v83
    %v85 = vrot.slane %v80, %v84
    %v87 = vld [vmem:[#allocation2] sm:$0xff]
    %v88 = vld [vmem:[%s0] sm:$0xff]
    %v89 = vld [vmem:[%s0 + $0x8] sm:$0xff]
    %v90 = vld [vmem:[%s0 + $0x10] sm:$0xff]
    %91 = vmatprep.subr.mxu0 %v33
    %92 = vmatpush1.msra.mxu0 %v32
    %93 = vmatprep.subr.mxu0 %v36
    %94 = vmatpush1.msra.mxu0 %v35
    %95 = vmatprep.subr.mxu0 %v39
    %96 = vmatpush1.msra.mxu0 %v38
    %97 = vmatprep.subr.mxu0 %v42
    %98 = vmatpush1.msra.mxu0 %v41
    %99 = vmatprep.subr.mxu0 %v45
    %100 = vmatpush1.msra.mxu0 %v44
    %101 = vmatprep.subr.mxu0 %v48
    %102 = vmatpush1.msra.mxu0 %v47
    %103 = vmatprep.subr.mxu0 %v51
    %104 = vmatpush1.msra.mxu0 %v50
    %105 = vmatprep.subr.mxu0 %v54
    %106 = vmatpush1.msra.mxu0 %v53
    %107 = vmatprep.subr.mxu0 %v57
    %108 = vmatpush1.msra.mxu0 %v56
    %109 = vmatprep.subr.mxu0 %v60
    %110 = vmatpush1.msra.mxu0 %v59
    %111 = vmatprep.subr.mxu0 %v63
    %112 = vmatpush1.msra.mxu0 %v62
    %113 = vmatprep.subr.mxu0 %v66
    %114 = vmatpush1.msra.mxu0 %v65
    %115 = vmatprep.subr.mxu0 %v69
    %116 = vmatpush1.msra.mxu0 %v68
    %117 = vmatprep.subr.mxu0 %v72
    %118 = vmatpush1.msra.mxu0 %v71
    %119 = vmatprep.subr.mxu0 %v75
    %120 = vmatpush1.msra.mxu0 %v74
    %121 = vmatprep.subr.mxu0 %v78
    %122 = vmatpush1.msra.mxu0 %v77
    %123 = vmatprep.subr.mxu0 0.0
    %124 = vmatpush1.msra.mxu0 0.0
    %125 = vmatprep.subr.mxu0 0.0
    %126 = vmatpush1.msra.mxu0 0.0
    %127 = vmatprep.subr.mxu0 0.0
    %128 = vmatpush1.msra.mxu0 0.0
    %129 = vmatprep.subr.mxu0 0.0
    %130 = vmatpush1.msra.mxu0 0.0
    %131 = vmatprep.subr.mxu0 0.0
    %132 = vmatpush1.msra.mxu0 0.0
    %133 = vmatprep.subr.mxu0 0.0
    %134 = vmatpush1.msra.mxu0 0.0
    %135 = vmatprep.subr.mxu0 0.0
    %136 = vmatpush1.msra.mxu0 0.0
    %137 = vmatprep.subr.mxu0 0.0
    %138 = vmatpush1.msra.mxu0 0.0
    %139 = vmatprep.subr.mxu0 0.0
    %140 = vmatpush1.msra.mxu0 0.0
    %141 = vmatprep.subr.mxu0 0.0
    %142 = vmatpush1.msra.mxu0 0.0
    %143 = vmatprep.subr.mxu0 0.0
    %144 = vmatpush1.msra.mxu0 0.0
    %145 = vmatprep.subr.mxu0 0.0
    %146 = vmatpush1.msra.mxu0 0.0
    %147 = vmatprep.subr.mxu0 0.0
    %148 = vmatpush1.msra.mxu0 0.0
    %149 = vmatprep.subr.mxu0 0.0
    %150 = vmatpush1.msra.mxu0 0.0
    %151 = vmatprep.subr.mxu0 0.0
    %152 = vmatpush1.msra.mxu0 0.0
    %153 = vmatprep.subr.mxu0 0.0
    %154 = vmatpush1.msra.mxu0 0.0
    %155 = vmatprep.mubr.f32.mxu0 0.0
    %156 = vmatmul.mubr.f32.gmra.mrb[0].mxu0 %v87
    %v157 = vpop.f32.mrb[0].mxu0
    %v158 = vadd.f32 0.0, %v157
    %v159 = vpop.f32.mrb[0].mxu0
    %v160 = vadd.f32 0.0, %v159
    %161 = vdwg.mxu0
    %162 = vmatprep.subr.mxu0 0.0
    %163 = vmatpush1.msra.mxu0 %v34
    %164 = vmatprep.subr.mxu0 0.0
    %165 = vmatpush1.msra.mxu0 %v37
    %166 = vmatprep.subr.mxu0 0.0
    %167 = vmatpush1.msra.mxu0 %v40
    %168 = vmatprep.subr.mxu0 0.0
    %169 = vmatpush1.msra.mxu0 %v43
    %170 = vmatprep.subr.mxu0 0.0
    %171 = vmatpush1.msra.mxu0 %v46
    %172 = vmatprep.subr.mxu0 0.0
    %173 = vmatpush1.msra.mxu0 %v49
    %174 = vmatprep.subr.mxu0 0.0
    %175 = vmatpush1.msra.mxu0 %v52
    %176 = vmatprep.subr.mxu0 0.0
    %177 = vmatpush1.msra.mxu0 %v55
    %178 = vmatprep.subr.mxu0 0.0
    %179 = vmatpush1.msra.mxu0 %v58
    %180 = vmatprep.subr.mxu0 0.0
    %181 = vmatpush1.msra.mxu0 %v61
    %182 = vmatprep.subr.mxu0 0.0
    %183 = vmatpush1.msra.mxu0 %v64
    %184 = vmatprep.subr.mxu0 0.0
    %185 = vmatpush1.msra.mxu0 %v67
    %186 = vmatprep.subr.mxu0 0.0
    %187 = vmatpush1.msra.mxu0 %v70
    %188 = vmatprep.subr.mxu0 0.0
    %189 = vmatpush1.msra.mxu0 %v73
    %190 = vmatprep.subr.mxu0 0.0
    %191 = vmatpush1.msra.mxu0 %v76
    %192 = vmatprep.subr.mxu0 0.0
    %193 = vmatpush1.msra.mxu0 %v79
    %194 = vmatprep.subr.mxu0 0.0
    %195 = vmatpush1.msra.mxu0 0.0
    %196 = vmatprep.subr.mxu0 0.0
    %197 = vmatpush1.msra.mxu0 0.0
    %198 = vmatprep.subr.mxu0 0.0
    %199 = vmatpush1.msra.mxu0 0.0
    %200 = vmatprep.subr.mxu0 0.0
    %201 = vmatpush1.msra.mxu0 0.0
    %202 = vmatprep.subr.mxu0 0.0
    %203 = vmatpush1.msra.mxu0 0.0
    %204 = vmatprep.subr.mxu0 0.0
    %205 = vmatpush1.msra.mxu0 0.0
    %206 = vmatprep.subr.mxu0 0.0
    %207 = vmatpush1.msra.mxu0 0.0
    %208 = vmatprep.subr.mxu0 0.0
    %209 = vmatpush1.msra.mxu0 0.0
    %210 = vmatprep.subr.mxu0 0.0
    %211 = vmatpush1.msra.mxu0 0.0
    %212 = vmatprep.subr.mxu0 0.0
    %213 = vmatpush1.msra.mxu0 0.0
    %214 = vmatprep.subr.mxu0 0.0
    %215 = vmatpush1.msra.mxu0 0.0
    %216 = vmatprep.subr.mxu0 0.0
    %217 = vmatpush1.msra.mxu0 0.0
    %218 = vmatprep.subr.mxu0 0.0
    %219 = vmatpush1.msra.mxu0 0.0
    %220 = vmatprep.subr.mxu0 0.0
    %221 = vmatpush1.msra.mxu0 0.0
    %222 = vmatprep.subr.mxu0 0.0
    %223 = vmatpush1.msra.mxu0 0.0
    %224 = vmatprep.subr.mxu0 0.0
    %225 = vmatpush1.msra.mxu0 0.0
    %226 = vmatprep.mubr.f32.mxu0 0.0
    %227 = vmatmul.mubr.f32.gmra.mrb[0].mxu0 %v87
    %v228 = vpop.f32.mrb[0].mxu0
    %v229 = vadd.f32 0.0, %v228
    %v230 = vpop.f32.mrb[0].mxu0
    %231 = vdwg.mxu0
    %v232 = vadd.f32 %v88, %v158
    %v233 = vxor.u32 %v232, 2147483648
    %v234 = vmul.f32 %v233, 1.442695
    %v235 = vpow.pop %v234
    %v236 = vadd.f32 %v235, 1.0
    %v237 = vrcp.pop %v236
    %v238 = vmul.f32 1.0, %v237
    %v239 = vadd.f32 %v89, %v160
    %v240 = vxor.u32 %v239, 2147483648
    %v241 = vmul.f32 %v240, 1.442695
    %v242 = vpow.pop %v241
    %v243 = vadd.f32 %v242, 1.0
    %v244 = vrcp.pop %v243
    %v245 = vmul.f32 1.0, %v244
    %v246 = vadd.f32 %v229, %v85
    %v247 = vmul.f32 %v238, %v246
    %v248 = vadd.f32 %v90, %v247
    %v249 = vtanh.pop %v248
    %v250 = vsub.f32 1.0, %v245
    %v251 = vmul.f32 %v250, %v249
    %v252 = vmul.f32 %v245, %v87
    %v253 = vadd.f32 %v251, %v252
    %254 = vst [vmem:[#allocation3] sm:$0xff] %v253
    %s255 = scalar_lea.vmem %s0, 24
    %v256 = vld [vmem:[%s255] sm:$0xff]
    %v257 = vld [vmem:[%s255 + $0x8] sm:$0xff]
    %v258 = vld [vmem:[%s255 + $0x10] sm:$0xff]
    %259 = vmatprep.subr.mxu0 %v33
    %260 = vmatpush1.msra.mxu0 %v32
    %261 = vmatprep.subr.mxu0 %v36
    %262 = vmatpush1.msra.mxu0 %v35
    %263 = vmatprep.subr.mxu0 %v39
    %264 = vmatpush1.msra.mxu0 %v38
    %265 = vmatprep.subr.mxu0 %v42
    %266 = vmatpush1.msra.mxu0 %v41
    %267 = vmatprep.subr.mxu0 %v45
    %268 = vmatpush1.msra.mxu0 %v44
    %269 = vmatprep.subr.mxu0 %v48
    %270 = vmatpush1.msra.mxu0 %v47
    %271 = vmatprep.subr.mxu0 %v51
    %272 = vmatpush1.msra.mxu0 %v50
    %273 = vmatprep.subr.mxu0 %v54
    %274 = vmatpush1.msra.mxu0 %v53
    %275 = vmatprep.subr.mxu0 %v57
    %276 = vmatpush1.msra.mxu0 %v56
    %277 = vmatprep.subr.mxu0 %v60
    %278 = vmatpush1.msra.mxu0 %v59
    %279 = vmatprep.subr.mxu0 %v63
    %280 = vmatpush1.msra.mxu0 %v62
    %281 = vmatprep.subr.mxu0 %v66
    %282 = vmatpush1.msra.mxu0 %v65
    %283 = vmatprep.subr.mxu0 %v69
    %284 = vmatpush1.msra.mxu0 %v68
    %285 = vmatprep.subr.mxu0 %v72
    %286 = vmatpush1.msra.mxu0 %v71
    %287 = vmatprep.subr.mxu0 %v75
    %288 = vmatpush1.msra.mxu0 %v74
    %289 = vmatprep.subr.mxu0 %v78
    %290 = vmatpush1.msra.mxu0 %v77
    %291 = vmatprep.subr.mxu0 0.0
    %292 = vmatpush1.msra.mxu0 0.0
    %293 = vmatprep.subr.mxu0 0.0
    %294 = vmatpush1.msra.mxu0 0.0
    %295 = vmatprep.subr.mxu0 0.0
    %296 = vmatpush1.msra.mxu0 0.0
    %297 = vmatprep.subr.mxu0 0.0
    %298 = vmatpush1.msra.mxu0 0.0
    %299 = vmatprep.subr.mxu0 0.0
    %300 = vmatpush1.msra.mxu0 0.0
    %301 = vmatprep.subr.mxu0 0.0
    %302 = vmatpush1.msra.mxu0 0.0
    %303 = vmatprep.subr.mxu0 0.0
    %304 = vmatpush1.msra.mxu0 0.0
    %305 = vmatprep.subr.mxu0 0.0
    %306 = vmatpush1.msra.mxu0 0.0
    %307 = vmatprep.subr.mxu0 0.0
    %308 = vmatpush1.msra.mxu0 0.0
    %309 = vmatprep.subr.mxu0 0.0
    %310 = vmatpush1.msra.mxu0 0.0
    %311 = vmatprep.subr.mxu0 0.0
    %312 = vmatpush1.msra.mxu0 0.0
    %313 = vmatprep.subr.mxu0 0.0
    %314 = vmatpush1.msra.mxu0 0.0
    %315 = vmatprep.subr.mxu0 0.0
    %316 = vmatpush1.msra.mxu0 0.0
    %317 = vmatprep.subr.mxu0 0.0
    %318 = vmatpush1.msra.mxu0 0.0
    %319 = vmatprep.subr.mxu0 0.0
    %320 = vmatpush1.msra.mxu0 0.0
    %321 = vmatprep.subr.mxu0 0.0
    %322 = vmatpush1.msra.mxu0 0.0
    %323 = vmatprep.mubr.f32.mxu0 0.0
    %324 = vmatmul.mubr.f32.gmra.mrb[0].mxu0 %v253
    %v325 = vpop.f32.mrb[0].mxu0
    %v326 = vadd.f32 0.0, %v325
    %v327 = vpop.f32.mrb[0].mxu0
    %v328 = vadd.f32 0.0, %v327
    %329 = vdwg.mxu0
    %330 = vmatprep.subr.mxu0 0.0
    %331 = vmatpush1.msra.mxu0 %v34
    %332 = vmatprep.subr.mxu0 0.0
    %333 = vmatpush1.msra.mxu0 %v37
    %334 = vmatprep.subr.mxu0 0.0
    %335 = vmatpush1.msra.mxu0 %v40
    %336 = vmatprep.subr.mxu0 0.0
    %337 = vmatpush1.msra.mxu0 %v43
    %338 = vmatprep.subr.mxu0 0.0
    %339 = vmatpush1.msra.mxu0 %v46
    %340 = vmatprep.subr.mxu0 0.0
    %341 = vmatpush1.msra.mxu0 %v49
    %342 = vmatprep.subr.mxu0 0.0
    %343 = vmatpush1.msra.mxu0 %v52
    %344 = vmatprep.subr.mxu0 0.0
    %345 = vmatpush1.msra.mxu0 %v55
    %346 = vmatprep.subr.mxu0 0.0
    %347 = vmatpush1.msra.mxu0 %v58
    %348 = vmatprep.subr.mxu0 0.0
    %349 = vmatpush1.msra.mxu0 %v61
    %350 = vmatprep.subr.mxu0 0.0
    %351 = vmatpush1.msra.mxu0 %v64
    %352 = vmatprep.subr.mxu0 0.0
    %353 = vmatpush1.msra.mxu0 %v67
    %354 = vmatprep.subr.mxu0 0.0
    %355 = vmatpush1.msra.mxu0 %v70
    %356 = vmatprep.subr.mxu0 0.0
    %357 = vmatpush1.msra.mxu0 %v73
    %358 = vmatprep.subr.mxu0 0.0
    %359 = vmatpush1.msra.mxu0 %v76
    %360 = vmatprep.subr.mxu0 0.0
    %361 = vmatpush1.msra.mxu0 %v79
    %362 = vmatprep.subr.mxu0 0.0
    %363 = vmatpush1.msra.mxu0 0.0
    %364 = vmatprep.subr.mxu0 0.0
    %365 = vmatpush1.msra.mxu0 0.0
    %366 = vmatprep.subr.mxu0 0.0
    %367 = vmatpush1.msra.mxu0 0.0
    %368 = vmatprep.subr.mxu0 0.0
    %369 = vmatpush1.msra.mxu0 0.0
    %370 = vmatprep.subr.mxu0 0.0
    %371 = vmatpush1.msra.mxu0 0.0
    %372 = vmatprep.subr.mxu0 0.0
    %373 = vmatpush1.msra.mxu0 0.0
    %374 = vmatprep.subr.mxu0 0.0
    %375 = vmatpush1.msra.mxu0 0.0
    %376 = vmatprep.subr.mxu0 0.0
    %377 = vmatpush1.msra.mxu0 0.0
    %378 = vmatprep.subr.mxu0 0.0
    %379 = vmatpush1.msra.mxu0 0.0
    %380 = vmatprep.subr.mxu0 0.0
    %381 = vmatpush1.msra.mxu0 0.0
    %382 = vmatprep.subr.mxu0 0.0
    %383 = vmatpush1.msra.mxu0 0.0
    %384 = vmatprep.subr.mxu0 0.0
    %385 = vmatpush1.msra.mxu0 0.0
    %386 = vmatprep.subr.mxu0 0.0
    %387 = vmatpush1.msra.mxu0 0.0
    %388 = vmatprep.subr.mxu0 0.0
    %389 = vmatpush1.msra.mxu0 0.0
    %390 = vmatprep.subr.mxu0 0.0
    %391 = vmatpush1.msra.mxu0 0.0
    %392 = vmatprep.subr.mxu0 0.0
    %393 = vmatpush1.msra.mxu0 0.0
    %394 = vmatprep.mubr.f32.mxu0 0.0
    %395 = vmatmul.mubr.f32.gmra.mrb[0].mxu0 %v253
    %v396 = vpop.f32.mrb[0].mxu0
    %v397 = vadd.f32 0.0, %v396
    %v398 = vpop.f32.mrb[0].mxu0
    %399 = vdwg.mxu0
    %v400 = vadd.f32 %v256, %v326
    %v401 = vxor.u32 %v400, 2147483648
    %v402 = vmul.f32 %v401, 1.442695
    %v403 = vpow.pop %v402
    %v404 = vadd.f32 %v403, 1.0
    %v405 = vrcp.pop %v404
    %v406 = vmul.f32 1.0, %v405
    %v407 = vadd.f32 %v257, %v328
    %v408 = vxor.u32 %v407, 2147483648
    %v409 = vmul.f32 %v408, 1.442695
    %v410 = vpow.pop %v409
    %v411 = vadd.f32 %v410, 1.0
    %v412 = vrcp.pop %v411
    %v413 = vmul.f32 1.0, %v412
    %v414 = vadd.f32 %v397, %v85
    %v415 = vmul.f32 %v406, %v414
    %v416 = vadd.f32 %v258, %v415
    %v417 = vtanh.pop %v416
    %v418 = vsub.f32 1.0, %v413
    %v419 = vmul.f32 %v418, %v417
    %v420 = vmul.f32 %v413, %v253
    %v421 = vadd.f32 %v419, %v420
    %s422 = scalar_lea.vmem [#allocation3], 8
    %423 = vst [vmem:[%s422] sm:$0xff] %v421
    %s424 = scalar_lea.vmem %s0, 48
    %v425 = vld [vmem:[%s424] sm:$0xff]
    %v426 = vld [vmem:[%s424 + $0x8] sm:$0xff]
    %v427 = vld [vmem:[%s424 + $0x10] sm:$0xff]
    %428 = vmatprep.subr.mxu0 %v33
    %429 = vmatpush1.msra.mxu0 %v32
    %430 = vmatprep.subr.mxu0 %v36
    %431 = vmatpush1.msra.mxu0 %v35
    %432 = vmatprep.subr.mxu0 %v39
    %433 = vmatpush1.msra.mxu0 %v38
    %434 = vmatprep.subr.mxu0 %v42
    %435 = vmatpush1.msra.mxu0 %v41
    %436 = vmatprep.subr.mxu0 %v45
    %437 = vmatpush1.msra.mxu0 %v44
    %438 = vmatprep.subr.mxu0 %v48
    %439 = vmatpush1.msra.mxu0 %v47
    %440 = vmatprep.subr.mxu0 %v51
    %441 = vmatpush1.msra.mxu0 %v50
    %442 = vmatprep.subr.mxu0 %v54
    %443 = vmatpush1.msra.mxu0 %v53
    %444 = vmatprep.subr.mxu0 %v57
    %445 = vmatpush1.msra.mxu0 %v56
    %446 = vmatprep.subr.mxu0 %v60
    %447 = vmatpush1.msra.mxu0 %v59
    %448 = vmatprep.subr.mxu0 %v63
    %449 = vmatpush1.msra.mxu0 %v62
    %450 = vmatprep.subr.mxu0 %v66
    %451 = vmatpush1.msra.mxu0 %v65
    %452 = vmatprep.subr.mxu0 %v69
    %453 = vmatpush1.msra.mxu0 %v68
    %454 = vmatprep.subr.mxu0 %v72
    %455 = vmatpush1.msra.mxu0 %v71
    %456 = vmatprep.subr.mxu0 %v75
    %457 = vmatpush1.msra.mxu0 %v74
    %458 = vmatprep.subr.mxu0 %v78
    %459 = vmatpush1.msra.mxu0 %v77
    %460 = vmatprep.subr.mxu0 0.0
    %461 = vmatpush1.msra.mxu0 0.0
    %462 = vmatprep.subr.mxu0 0.0
    %463 = vmatpush1.msra.mxu0 0.0
    %464 = vmatprep.subr.mxu0 0.0
    %465 = vmatpush1.msra.mxu0 0.0
    %466 = vmatprep.subr.mxu0 0.0
    %467 = vmatpush1.msra.mxu0 0.0
    %468 = vmatprep.subr.mxu0 0.0
    %469 = vmatpush1.msra.mxu0 0.0
    %470 = vmatprep.subr.mxu0 0.0
    %471 = vmatpush1.msra.mxu0 0.0
    %472 = vmatprep.subr.mxu0 0.0
    %473 = vmatpush1.msra.mxu0 0.0
    %474 = vmatprep.subr.mxu0 0.0
    %475 = vmatpush1.msra.mxu0 0.0
    %476 = vmatprep.subr.mxu0 0.0
    %477 = vmatpush1.msra.mxu0 0.0
    %478 = vmatprep.subr.mxu0 0.0
    %479 = vmatpush1.msra.mxu0 0.0
    %480 = vmatprep.subr.mxu0 0.0
    %481 = vmatpush1.msra.mxu0 0.0
    %482 = vmatprep.subr.mxu0 0.0
    %483 = vmatpush1.msra.mxu0 0.0
    %484 = vmatprep.subr.mxu0 0.0
    %485 = vmatpush1.msra.mxu0 0.0
    %486 = vmatprep.subr.mxu0 0.0
    %487 = vmatpush1.msra.mxu0 0.0
    %488 = vmatprep.subr.mxu0 0.0
    %489 = vmatpush1.msra.mxu0 0.0
    %490 = vmatprep.subr.mxu0 0.0
    %491 = vmatpush1.msra.mxu0 0.0
    %492 = vmatprep.mubr.f32.mxu0 0.0
    %493 = vmatmul.mubr.f32.gmra.mrb[0].mxu0 %v421
    %v494 = vpop.f32.mrb[0].mxu0
    %v495 = vadd.f32 0.0, %v494
    %v496 = vpop.f32.mrb[0].mxu0
    %v497 = vadd.f32 0.0, %v496
    %498 = vdwg.mxu0
    %499 = vmatprep.subr.mxu0 0.0
    %500 = vmatpush1.msra.mxu0 %v34
    %501 = vmatprep.subr.mxu0 0.0
    %502 = vmatpush1.msra.mxu0 %v37
    %503 = vmatprep.subr.mxu0 0.0
    %504 = vmatpush1.msra.mxu0 %v40
    %505 = vmatprep.subr.mxu0 0.0
    %506 = vmatpush1.msra.mxu0 %v43
    %507 = vmatprep.subr.mxu0 0.0
    %508 = vmatpush1.msra.mxu0 %v46
    %509 = vmatprep.subr.mxu0 0.0
    %510 = vmatpush1.msra.mxu0 %v49
    %511 = vmatprep.subr.mxu0 0.0
    %512 = vmatpush1.msra.mxu0 %v52
    %513 = vmatprep.subr.mxu0 0.0
    %514 = vmatpush1.msra.mxu0 %v55
    %515 = vmatprep.subr.mxu0 0.0
    %516 = vmatpush1.msra.mxu0 %v58
    %517 = vmatprep.subr.mxu0 0.0
    %518 = vmatpush1.msra.mxu0 %v61
    %519 = vmatprep.subr.mxu0 0.0
    %520 = vmatpush1.msra.mxu0 %v64
    %521 = vmatprep.subr.mxu0 0.0
    %522 = vmatpush1.msra.mxu0 %v67
    %523 = vmatprep.subr.mxu0 0.0
    %524 = vmatpush1.msra.mxu0 %v70
    %525 = vmatprep.subr.mxu0 0.0
    %526 = vmatpush1.msra.mxu0 %v73
    %527 = vmatprep.subr.mxu0 0.0
    %528 = vmatpush1.msra.mxu0 %v76
    %529 = vmatprep.subr.mxu0 0.0
    %530 = vmatpush1.msra.mxu0 %v79
    %531 = vmatprep.subr.mxu0 0.0
    %532 = vmatpush1.msra.mxu0 0.0
    %533 = vmatprep.subr.mxu0 0.0
    %534 = vmatpush1.msra.mxu0 0.0
    %535 = vmatprep.subr.mxu0 0.0
    %536 = vmatpush1.msra.mxu0 0.0
    %537 = vmatprep.subr.mxu0 0.0
    %538 = vmatpush1.msra.mxu0 0.0
    %539 = vmatprep.subr.mxu0 0.0
    %540 = vmatpush1.msra.mxu0 0.0
    %541 = vmatprep.subr.mxu0 0.0
    %542 = vmatpush1.msra.mxu0 0.0
    %543 = vmatprep.subr.mxu0 0.0
    %544 = vmatpush1.msra.mxu0 0.0
    %545 = vmatprep.subr.mxu0 0.0
    %546 = vmatpush1.msra.mxu0 0.0
    %547 = vmatprep.subr.mxu0 0.0
    %548 = vmatpush1.msra.mxu0 0.0
    %549 = vmatprep.subr.mxu0 0.0
    %550 = vmatpush1.msra.mxu0 0.0
    %551 = vmatprep.subr.mxu0 0.0
    %552 = vmatpush1.msra.mxu0 0.0
    %553 = vmatprep.subr.mxu0 0.0
    %554 = vmatpush1.msra.mxu0 0.0
    %555 = vmatprep.subr.mxu0 0.0
    %556 = vmatpush1.msra.mxu0 0.0
    %557 = vmatprep.subr.mxu0 0.0
    %558 = vmatpush1.msra.mxu0 0.0
    %559 = vmatprep.subr.mxu0 0.0
    %560 = vmatpush1.msra.mxu0 0.0
    %561 = vmatprep.subr.mxu0 0.0
    %562 = vmatpush1.msra.mxu0 0.0
    %563 = vmatprep.mubr.f32.mxu0 0.0
    %564 = vmatmul.mubr.f32.gmra.mrb[0].mxu0 %v421
    %v565 = vpop.f32.mrb[0].mxu0
    %v566 = vadd.f32 0.0, %v565
    %v567 = vpop.f32.mrb[0].mxu0
    %568 = vdwg.mxu0
    %v569 = vadd.f32 %v425, %v495
    %v570 = vxor.u32 %v569, 2147483648
    %v571 = vmul.f32 %v570, 1.442695
    %v572 = vpow.pop %v571
    %v573 = vadd.f32 %v572, 1.0
    %v574 = vrcp.pop %v573
    %v575 = vmul.f32 1.0, %v574
    %v576 = vadd.f32 %v426, %v497
    %v577 = vxor.u32 %v576, 2147483648
    %v578 = vmul.f32 %v577, 1.442695
    %v579 = vpow.pop %v578
    %v580 = vadd.f32 %v579, 1.0
    %v581 = vrcp.pop %v580
    %v582 = vmul.f32 1.0, %v581
    %v583 = vadd.f32 %v566, %v85
    %v584 = vmul.f32 %v575, %v583
    %v585 = vadd.f32 %v427, %v584
    %v586 = vtanh.pop %v585
    %v587 = vsub.f32 1.0, %v582
    %v588 = vmul.f32 %v587, %v586
    %v589 = vmul.f32 %v582, %v421
    %v590 = vadd.f32 %v588, %v589
    %s591 = scalar_lea.vmem [#allocation3], 16
    %592 = vst [vmem:[%s591] sm:$0xff] %v590
    %s593 = scalar_lea.vmem %s0, 72
    %v594 = vld [vmem:[%s593] sm:$0xff]
    %v595 = vld [vmem:[%s593 + $0x8] sm:$0xff]
    %v596 = vld [vmem:[%s593 + $0x10] sm:$0xff]
    %597 = vmatprep.subr.mxu0 %v33
    %598 = vmatpush1.msra.mxu0 %v32
    %599 = vmatprep.subr.mxu0 %v36
    %600 = vmatpush1.msra.mxu0 %v35
    %601 = vmatprep.subr.mxu0 %v39
    %602 = vmatpush1.msra.mxu0 %v38
    %603 = vmatprep.subr.mxu0 %v42
    %604 = vmatpush1.msra.mxu0 %v41
    %605 = vmatprep.subr.mxu0 %v45
    %606 = vmatpush1.msra.mxu0 %v44
    %607 = vmatprep.subr.mxu0 %v48
    %608 = vmatpush1.msra.mxu0 %v47
    %609 = vmatprep.subr.mxu0 %v51
    %610 = vmatpush1.msra.mxu0 %v50
    %611 = vmatprep.subr.mxu0 %v54
    %612 = vmatpush1.msra.mxu0 %v53
    %613 = vmatprep.subr.mxu0 %v57
    %614 = vmatpush1.msra.mxu0 %v56
    %615 = vmatprep.subr.mxu0 %v60
    %616 = vmatpush1.msra.mxu0 %v59
    %617 = vmatprep.subr.mxu0 %v63
    %618 = vmatpush1.msra.mxu0 %v62
    %619 = vmatprep.subr.mxu0 %v66
    %620 = vmatpush1.msra.mxu0 %v65
    %621 = vmatprep.subr.mxu0 %v69
    %622 = vmatpush1.msra.mxu0 %v68
    %623 = vmatprep.subr.mxu0 %v72
    %624 = vmatpush1.msra.mxu0 %v71
    %625 = vmatprep.subr.mxu0 %v75
    %626 = vmatpush1.msra.mxu0 %v74
    %627 = vmatprep.subr.mxu0 %v78
    %628 = vmatpush1.msra.mxu0 %v77
    %629 = vmatprep.subr.mxu0 0.0
    %630 = vmatpush1.msra.mxu0 0.0
    %631 = vmatprep.subr.mxu0 0.0
    %632 = vmatpush1.msra.mxu0 0.0
    %633 = vmatprep.subr.mxu0 0.0
    %634 = vmatpush1.msra.mxu0 0.0
    %635 = vmatprep.subr.mxu0 0.0
    %636 = vmatpush1.msra.mxu0 0.0
    %637 = vmatprep.subr.mxu0 0.0
    %638 = vmatpush1.msra.mxu0 0.0
    %639 = vmatprep.subr.mxu0 0.0
    %640 = vmatpush1.msra.mxu0 0.0
    %641 = vmatprep.subr.mxu0 0.0
    %642 = vmatpush1.msra.mxu0 0.0
    %643 = vmatprep.subr.mxu0 0.0
    %644 = vmatpush1.msra.mxu0 0.0
    %645 = vmatprep.subr.mxu0 0.0
    %646 = vmatpush1.msra.mxu0 0.0
    %647 = vmatprep.subr.mxu0 0.0
    %648 = vmatpush1.msra.mxu0 0.0
    %649 = vmatprep.subr.mxu0 0.0
    %650 = vmatpush1.msra.mxu0 0.0
    %651 = vmatprep.subr.mxu0 0.0
    %652 = vmatpush1.msra.mxu0 0.0
    %653 = vmatprep.subr.mxu0 0.0
    %654 = vmatpush1.msra.mxu0 0.0
    %655 = vmatprep.subr.mxu0 0.0
    %656 = vmatpush1.msra.mxu0 0.0
    %657 = vmatprep.subr.mxu0 0.0
    %658 = vmatpush1.msra.mxu0 0.0
    %659 = vmatprep.subr.mxu0 0.0
    %660 = vmatpush1.msra.mxu0 0.0
    %661 = vmatprep.mubr.f32.mxu0 0.0
    %662 = vmatmul.mubr.f32.gmra.mrb[0].mxu0 %v590
    %v663 = vpop.f32.mrb[0].mxu0
    %v664 = vadd.f32 0.0, %v663
    %v665 = vpop.f32.mrb[0].mxu0
    %v666 = vadd.f32 0.0, %v665
    %667 = vdwg.mxu0
    %668 = vmatprep.subr.mxu0 0.0
    %669 = vmatpush1.msra.mxu0 %v34
    %670 = vmatprep.subr.mxu0 0.0
    %671 = vmatpush1.msra.mxu0 %v37
    %672 = vmatprep.subr.mxu0 0.0
    %673 = vmatpush1.msra.mxu0 %v40
    %674 = vmatprep.subr.mxu0 0.0
    %675 = vmatpush1.msra.mxu0 %v43
    %676 = vmatprep.subr.mxu0 0.0
    %677 = vmatpush1.msra.mxu0 %v46
    %678 = vmatprep.subr.mxu0 0.0
    %679 = vmatpush1.msra.mxu0 %v49
    %680 = vmatprep.subr.mxu0 0.0
    %681 = vmatpush1.msra.mxu0 %v52
    %682 = vmatprep.subr.mxu0 0.0
    %683 = vmatpush1.msra.mxu0 %v55
    %684 = vmatprep.subr.mxu0 0.0
    %685 = vmatpush1.msra.mxu0 %v58
    %686 = vmatprep.subr.mxu0 0.0
    %687 = vmatpush1.msra.mxu0 %v61
    %688 = vmatprep.subr.mxu0 0.0
    %689 = vmatpush1.msra.mxu0 %v64
    %690 = vmatprep.subr.mxu0 0.0
    %691 = vmatpush1.msra.mxu0 %v67
    %692 = vmatprep.subr.mxu0 0.0
    %693 = vmatpush1.msra.mxu0 %v70
    %694 = vmatprep.subr.mxu0 0.0
    %695 = vmatpush1.msra.mxu0 %v73
    %696 = vmatprep.subr.mxu0 0.0
    %697 = vmatpush1.msra.mxu0 %v76
    %698 = vmatprep.subr.mxu0 0.0
    %699 = vmatpush1.msra.mxu0 %v79
    %700 = vmatprep.subr.mxu0 0.0
    %701 = vmatpush1.msra.mxu0 0.0
    %702 = vmatprep.subr.mxu0 0.0
    %703 = vmatpush1.msra.mxu0 0.0
    %704 = vmatprep.subr.mxu0 0.0
    %705 = vmatpush1.msra.mxu0 0.0
    %706 = vmatprep.subr.mxu0 0.0
    %707 = vmatpush1.msra.mxu0 0.0
    %708 = vmatprep.subr.mxu0 0.0
    %709 = vmatpush1.msra.mxu0 0.0
    %710 = vmatprep.subr.mxu0 0.0
    %711 = vmatpush1.msra.mxu0 0.0
    %712 = vmatprep.subr.mxu0 0.0
    %713 = vmatpush1.msra.mxu0 0.0
    %714 = vmatprep.subr.mxu0 0.0
    %715 = vmatpush1.msra.mxu0 0.0
    %716 = vmatprep.subr.mxu0 0.0
    %717 = vmatpush1.msra.mxu0 0.0
    %718 = vmatprep.subr.mxu0 0.0
    %719 = vmatpush1.msra.mxu0 0.0
    %720 = vmatprep.subr.mxu0 0.0
    %721 = vmatpush1.msra.mxu0 0.0
    %722 = vmatprep.subr.mxu0 0.0
    %723 = vmatpush1.msra.mxu0 0.0
    %724 = vmatprep.subr.mxu0 0.0
    %725 = vmatpush1.msra.mxu0 0.0
    %726 = vmatprep.subr.mxu0 0.0
    %727 = vmatpush1.msra.mxu0 0.0
    %728 = vmatprep.subr.mxu0 0.0
    %729 = vmatpush1.msra.mxu0 0.0
    %730 = vmatprep.subr.mxu0 0.0
    %731 = vmatpush1.msra.mxu0 0.0
    %732 = vmatprep.mubr.f32.mxu0 0.0
    %733 = vmatmul.mubr.f32.gmra.mrb[0].mxu0 %v590
    %v734 = vpop.f32.mrb[0].mxu0
    %v735 = vadd.f32 0.0, %v734
    %v736 = vpop.f32.mrb[0].mxu0
    %737 = vdwg.mxu0
    %v738 = vadd.f32 %v594, %v664
    %v739 = vxor.u32 %v738, 2147483648
    %v740 = vmul.f32 %v739, 1.442695
    %v741 = vpow.pop %v740
    %v742 = vadd.f32 %v741, 1.0
    %v743 = vrcp.pop %v742
    %v744 = vmul.f32 1.0, %v743
    %v745 = vadd.f32 %v595, %v666
    %v746 = vxor.u32 %v745, 2147483648
    %v747 = vmul.f32 %v746, 1.442695
    %v748 = vpow.pop %v747
    %v749 = vadd.f32 %v748, 1.0
    %v750 = vrcp.pop %v749
    %v751 = vmul.f32 1.0, %v750
    %v752 = vadd.f32 %v735, %v85
    %v753 = vmul.f32 %v744, %v752
    %v754 = vadd.f32 %v596, %v753
    %v755 = vtanh.pop %v754
    %v756 = vsub.f32 1.0, %v751
    %v757 = vmul.f32 %v756, %v755
    %v758 = vmul.f32 %v751, %v590
    %v759 = vadd.f32 %v757, %v758
    %s760 = scalar_lea.vmem [#allocation3], 24
    %761 = vst [vmem:[%s760] sm:$0xff] %v759
    %s762 = scalar_lea.vmem %s0, 96
    %v763 = vld [vmem:[%s762] sm:$0xff]
    %v764 = vld [vmem:[%s762 + $0x8] sm:$0xff]
    %v765 = vld [vmem:[%s762 + $0x10] sm:$0xff]
    %766 = vmatprep.subr.mxu0 %v33
    %767 = vmatpush1.msra.mxu0 %v32
    %768 = vmatprep.subr.mxu0 %v36
    %769 = vmatpush1.msra.mxu0 %v35
    %770 = vmatprep.subr.mxu0 %v39
    %771 = vmatpush1.msra.mxu0 %v38
    %772 = vmatprep.subr.mxu0 %v42
    %773 = vmatpush1.msra.mxu0 %v41
    %774 = vmatprep.subr.mxu0 %v45
    %775 = vmatpush1.msra.mxu0 %v44
    %776 = vmatprep.subr.mxu0 %v48
    %777 = vmatpush1.msra.mxu0 %v47
    %778 = vmatprep.subr.mxu0 %v51
    %779 = vmatpush1.msra.mxu0 %v50
    %780 = vmatprep.subr.mxu0 %v54
    %781 = vmatpush1.msra.mxu0 %v53
    %782 = vmatprep.subr.mxu0 %v57
    %783 = vmatpush1.msra.mxu0 %v56
    %784 = vmatprep.subr.mxu0 %v60
    %785 = vmatpush1.msra.mxu0 %v59
    %786 = vmatprep.subr.mxu0 %v63
    %787 = vmatpush1.msra.mxu0 %v62
    %788 = vmatprep.subr.mxu0 %v66
    %789 = vmatpush1.msra.mxu0 %v65
    %790 = vmatprep.subr.mxu0 %v69
    %791 = vmatpush1.msra.mxu0 %v68
    %792 = vmatprep.subr.mxu0 %v72
    %793 = vmatpush1.msra.mxu0 %v71
    %794 = vmatprep.subr.mxu0 %v75
    %795 = vmatpush1.msra.mxu0 %v74
    %796 = vmatprep.subr.mxu0 %v78
    %797 = vmatpush1.msra.mxu0 %v77
    %798 = vmatprep.subr.mxu0 0.0
    %799 = vmatpush1.msra.mxu0 0.0
    %800 = vmatprep.subr.mxu0 0.0
    %801 = vmatpush1.msra.mxu0 0.0
    %802 = vmatprep.subr.mxu0 0.0
    %803 = vmatpush1.msra.mxu0 0.0
    %804 = vmatprep.subr.mxu0 0.0
    %805 = vmatpush1.msra.mxu0 0.0
    %806 = vmatprep.subr.mxu0 0.0
    %807 = vmatpush1.msra.mxu0 0.0
    %808 = vmatprep.subr.mxu0 0.0
    %809 = vmatpush1.msra.mxu0 0.0
    %810 = vmatprep.subr.mxu0 0.0
    %811 = vmatpush1.msra.mxu0 0.0
    %812 = vmatprep.subr.mxu0 0.0
    %813 = vmatpush1.msra.mxu0 0.0
    %814 = vmatprep.subr.mxu0 0.0
    %815 = vmatpush1.msra.mxu0 0.0
    %816 = vmatprep.subr.mxu0 0.0
    %817 = vmatpush1.msra.mxu0 0.0
    %818 = vmatprep.subr.mxu0 0.0
    %819 = vmatpush1.msra.mxu0 0.0
    %820 = vmatprep.subr.mxu0 0.0
    %821 = vmatpush1.msra.mxu0 0.0
    %822 = vmatprep.subr.mxu0 0.0
    %823 = vmatpush1.msra.mxu0 0.0
    %824 = vmatprep.subr.mxu0 0.0
    %825 = vmatpush1.msra.mxu0 0.0
    %826 = vmatprep.subr.mxu0 0.0
    %827 = vmatpush1.msra.mxu0 0.0
    %828 = vmatprep.subr.mxu0 0.0
    %829 = vmatpush1.msra.mxu0 0.0
    %830 = vmatprep.mubr.f32.mxu0 0.0
    %831 = vmatmul.mubr.f32.gmra.mrb[0].mxu0 %v759
    %v832 = vpop.f32.mrb[0].mxu0
    %v833 = vadd.f32 0.0, %v832
    %v834 = vpop.f32.mrb[0].mxu0
    %v835 = vadd.f32 0.0, %v834
    %836 = vdwg.mxu0
    %837 = vmatprep.subr.mxu0 0.0
    %838 = vmatpush1.msra.mxu0 %v34
    %839 = vmatprep.subr.mxu0 0.0
    %840 = vmatpush1.msra.mxu0 %v37
    %841 = vmatprep.subr.mxu0 0.0
    %842 = vmatpush1.msra.mxu0 %v40
    %843 = vmatprep.subr.mxu0 0.0
    %844 = vmatpush1.msra.mxu0 %v43
    %845 = vmatprep.subr.mxu0 0.0
    %846 = vmatpush1.msra.mxu0 %v46
    %847 = vmatprep.subr.mxu0 0.0
    %848 = vmatpush1.msra.mxu0 %v49
    %849 = vmatprep.subr.mxu0 0.0
    %850 = vmatpush1.msra.mxu0 %v52
    %851 = vmatprep.subr.mxu0 0.0
    %852 = vmatpush1.msra.mxu0 %v55
    %853 = vmatprep.subr.mxu0 0.0
    %854 = vmatpush1.msra.mxu0 %v58
    %855 = vmatprep.subr.mxu0 0.0
    %856 = vmatpush1.msra.mxu0 %v61
    %857 = vmatprep.subr.mxu0 0.0
    %858 = vmatpush1.msra.mxu0 %v64
    %859 = vmatprep.subr.mxu0 0.0
    %860 = vmatpush1.msra.mxu0 %v67
    %861 = vmatprep.subr.mxu0 0.0
    %862 = vmatpush1.msra.mxu0 %v70
    %863 = vmatprep.subr.mxu0 0.0
    %864 = vmatpush1.msra.mxu0 %v73
    %865 = vmatprep.subr.mxu0 0.0
    %866 = vmatpush1.msra.mxu0 %v76
    %867 = vmatprep.subr.mxu0 0.0
    %868 = vmatpush1.msra.mxu0 %v79
    %869 = vmatprep.subr.mxu0 0.0
    %870 = vmatpush1.msra.mxu0 0.0
    %871 = vmatprep.subr.mxu0 0.0
    %872 = vmatpush1.msra.mxu0 0.0
    %873 = vmatprep.subr.mxu0 0.0
    %874 = vmatpush1.msra.mxu0 0.0
    %875 = vmatprep.subr.mxu0 0.0
    %876 = vmatpush1.msra.mxu0 0.0
    %877 = vmatprep.subr.mxu0 0.0
    %878 = vmatpush1.msra.mxu0 0.0
    %879 = vmatprep.subr.mxu0 0.0
    %880 = vmatpush1.msra.mxu0 0.0
    %881 = vmatprep.subr.mxu0 0.0
    %882 = vmatpush1.msra.mxu0 0.0
    %883 = vmatprep.subr.mxu0 0.0
    %884 = vmatpush1.msra.mxu0 0.0
    %885 = vmatprep.subr.mxu0 0.0
    %886 = vmatpush1.msra.mxu0 0.0
    %887 = vmatprep.subr.mxu0 0.0
    %888 = vmatpush1.msra.mxu0 0.0
    %889 = vmatprep.subr.mxu0 0.0
    %890 = vmatpush1.msra.mxu0 0.0
    %891 = vmatprep.subr.mxu0 0.0
    %892 = vmatpush1.msra.mxu0 0.0
    %893 = vmatprep.subr.mxu0 0.0
    %894 = vmatpush1.msra.mxu0 0.0
    %895 = vmatprep.subr.mxu0 0.0
    %896 = vmatpush1.msra.mxu0 0.0
    %897 = vmatprep.subr.mxu0 0.0
    %898 = vmatpush1.msra.mxu0 0.0
    %899 = vmatprep.subr.mxu0 0.0
    %900 = vmatpush1.msra.mxu0 0.0
    %901 = vmatprep.mubr.f32.mxu0 0.0
    %902 = vmatmul.mubr.f32.gmra.mrb[0].mxu0 %v759
    %v903 = vpop.f32.mrb[0].mxu0
    %v904 = vadd.f32 0.0, %v903
    %v905 = vpop.f32.mrb[0].mxu0
    %906 = vdwg.mxu0
    %v907 = vadd.f32 %v763, %v833
    %v908 = vxor.u32 %v907, 2147483648
    %v909 = vmul.f32 %v908, 1.442695
    %v910 = vpow.pop %v909
    %v911 = vadd.f32 %v910, 1.0
    %v912 = vrcp.pop %v911
    %v913 = vmul.f32 1.0, %v912
    %v914 = vadd.f32 %v764, %v835
    %v915 = vxor.u32 %v914, 2147483648
    %v916 = vmul.f32 %v915, 1.442695
    %v917 = vpow.pop %v916
    %v918 = vadd.f32 %v917, 1.0
    %v919 = vrcp.pop %v918
    %v920 = vmul.f32 1.0, %v919
    %v921 = vadd.f32 %v904, %v85
    %v922 = vmul.f32 %v913, %v921
    %v923 = vadd.f32 %v765, %v922
    %v924 = vtanh.pop %v923
    %v925 = vsub.f32 1.0, %v920
    %v926 = vmul.f32 %v925, %v924
    %v927 = vmul.f32 %v920, %v759
    %v928 = vadd.f32 %v926, %v927
    %s929 = scalar_lea.vmem [#allocation3], 32
    %930 = vst [vmem:[%s929] sm:$0xff] %v928
    %s931 = scalar_lea.vmem %s0, 120
    %v932 = vld [vmem:[%s931] sm:$0xff]
    %v933 = vld [vmem:[%s931 + $0x8] sm:$0xff]
    %v934 = vld [vmem:[%s931 + $0x10] sm:$0xff]
    %935 = vmatprep.subr.mxu0 %v33
    %936 = vmatpush1.msra.mxu0 %v32
    %937 = vmatprep.subr.mxu0 %v36
    %938 = vmatpush1.msra.mxu0 %v35
    %939 = vmatprep.subr.mxu0 %v39
    %940 = vmatpush1.msra.mxu0 %v38
    %941 = vmatprep.subr.mxu0 %v42
    %942 = vmatpush1.msra.mxu0 %v41
    %943 = vmatprep.subr.mxu0 %v45
    %944 = vmatpush1.msra.mxu0 %v44
    %945 = vmatprep.subr.mxu0 %v48
    %946 = vmatpush1.msra.mxu0 %v47
    %947 = vmatprep.subr.mxu0 %v51
    %948 = vmatpush1.msra.mxu0 %v50
    %949 = vmatprep.subr.mxu0 %v54
    %950 = vmatpush1.msra.mxu0 %v53
    %951 = vmatprep.subr.mxu0 %v57
    %952 = vmatpush1.msra.mxu0 %v56
    %953 = vmatprep.subr.mxu0 %v60
    %954 = vmatpush1.msra.mxu0 %v59
    %955 = vmatprep.subr.mxu0 %v63
    %956 = vmatpush1.msra.mxu0 %v62
    %957 = vmatprep.subr.mxu0 %v66
    %958 = vmatpush1.msra.mxu0 %v65
    %959 = vmatprep.subr.mxu0 %v69
    %960 = vmatpush1.msra.mxu0 %v68
    %961 = vmatprep.subr.mxu0 %v72
    %962 = vmatpush1.msra.mxu0 %v71
    %963 = vmatprep.subr.mxu0 %v75
    %964 = vmatpush1.msra.mxu0 %v74
    %965 = vmatprep.subr.mxu0 %v78
    %966 = vmatpush1.msra.mxu0 %v77
    %967 = vmatprep.subr.mxu0 0.0
    %968 = vmatpush1.msra.mxu0 0.0
    %969 = vmatprep.subr.mxu0 0.0
    %970 = vmatpush1.msra.mxu0 0.0
    %971 = vmatprep.subr.mxu0 0.0
    %972 = vmatpush1.msra.mxu0 0.0
    %973 = vmatprep.subr.mxu0 0.0
    %974 = vmatpush1.msra.mxu0 0.0
    %975 = vmatprep.subr.mxu0 0.0
    %976 = vmatpush1.msra.mxu0 0.0
    %977 = vmatprep.subr.mxu0 0.0
    %978 = vmatpush1.msra.mxu0 0.0
    %979 = vmatprep.subr.mxu0 0.0
    %980 = vmatpush1.msra.mxu0 0.0
    %981 = vmatprep.subr.mxu0 0.0
    %982 = vmatpush1.msra.mxu0 0.0
    %983 = vmatprep.subr.mxu0 0.0
    %984 = vmatpush1.msra.mxu0 0.0
    %985 = vmatprep.subr.mxu0 0.0
    %986 = vmatpush1.msra.mxu0 0.0
    %987 = vmatprep.subr.mxu0 0.0
    %988 = vmatpush1.msra.mxu0 0.0
    %989 = vmatprep.subr.mxu0 0.0
    %990 = vmatpush1.msra.mxu0 0.0
    %991 = vmatprep.subr.mxu0 0.0
    %992 = vmatpush1.msra.mxu0 0.0
    %993 = vmatprep.subr.mxu0 0.0
    %994 = vmatpush1.msra.mxu0 0.0
    %995 = vmatprep.subr.mxu0 0.0
    %996 = vmatpush1.msra.mxu0 0.0
    %997 = vmatprep.subr.mxu0 0.0
    %998 = vmatpush1.msra.mxu0 0.0
    %999 = vmatprep.mubr.f32.mxu0 0.0
    %1000 = vmatmul.mubr.f32.gmra.mrb[0].mxu0 %v928
    %v1001 = vpop.f32.mrb[0].mxu0
    %v1002 = vadd.f32 0.0, %v1001
    %v1003 = vpop.f32.mrb[0].mxu0
    %v1004 = vadd.f32 0.0, %v1003
    %1005 = vdwg.mxu0
    %1006 = vmatprep.subr.mxu0 0.0
    %1007 = vmatpush1.msra.mxu0 %v34
    %1008 = vmatprep.subr.mxu0 0.0
    %1009 = vmatpush1.msra.mxu0 %v37
    %1010 = vmatprep.subr.mxu0 0.0
    %1011 = vmatpush1.msra.mxu0 %v40
    %1012 = vmatprep.subr.mxu0 0.0
    %1013 = vmatpush1.msra.mxu0 %v43
    %1014 = vmatprep.subr.mxu0 0.0
    %1015 = vmatpush1.msra.mxu0 %v46
    %1016 = vmatprep.subr.mxu0 0.0
    %1017 = vmatpush1.msra.mxu0 %v49
    %1018 = vmatprep.subr.mxu0 0.0
    %1019 = vmatpush1.msra.mxu0 %v52
    %1020 = vmatprep.subr.mxu0 0.0
    %1021 = vmatpush1.msra.mxu0 %v55
    %1022 = vmatprep.subr.mxu0 0.0
    %1023 = vmatpush1.msra.mxu0 %v58
    %1024 = vmatprep.subr.mxu0 0.0
    %1025 = vmatpush1.msra.mxu0 %v61
    %1026 = vmatprep.subr.mxu0 0.0
    %1027 = vmatpush1.msra.mxu0 %v64
    %1028 = vmatprep.subr.mxu0 0.0
    %1029 = vmatpush1.msra.mxu0 %v67
    %1030 = vmatprep.subr.mxu0 0.0
    %1031 = vmatpush1.msra.mxu0 %v70
    %1032 = vmatprep.subr.mxu0 0.0
    %1033 = vmatpush1.msra.mxu0 %v73
    %1034 = vmatprep.subr.mxu0 0.0
    %1035 = vmatpush1.msra.mxu0 %v76
    %1036 = vmatprep.subr.mxu0 0.0
    %1037 = vmatpush1.msra.mxu0 %v79
    %1038 = vmatprep.subr.mxu0 0.0
    %1039 = vmatpush1.msra.mxu0 0.0
    %1040 = vmatprep.subr.mxu0 0.0
    %1041 = vmatpush1.msra.mxu0 0.0
    %1042 = vmatprep.subr.mxu0 0.0
    %1043 = vmatpush1.msra.mxu0 0.0
    %1044 = vmatprep.subr.mxu0 0.0
    %1045 = vmatpush1.msra.mxu0 0.0
    %1046 = vmatprep.subr.mxu0 0.0
    %1047 = vmatpush1.msra.mxu0 0.0
    %1048 = vmatprep.subr.mxu0 0.0
    %1049 = vmatpush1.msra.mxu0 0.0
    %1050 = vmatprep.subr.mxu0 0.0
    %1051 = vmatpush1.msra.mxu0 0.0
    %1052 = vmatprep.subr.mxu0 0.0
    %1053 = vmatpush1.msra.mxu0 0.0
    %1054 = vmatprep.subr.mxu0 0.0
    %1055 = vmatpush1.msra.mxu0 0.0
    %1056 = vmatprep.subr.mxu0 0.0
    %1057 = vmatpush1.msra.mxu0 0.0
    %1058 = vmatprep.subr.mxu0 0.0
    %1059 = vmatpush1.msra.mxu0 0.0
    %1060 = vmatprep.subr.mxu0 0.0
    %1061 = vmatpush1.msra.mxu0 0.0
    %1062 = vmatprep.subr.mxu0 0.0
    %1063 = vmatpush1.msra.mxu0 0.0
    %1064 = vmatprep.subr.mxu0 0.0
    %1065 = vmatpush1.msra.mxu0 0.0
    %1066 = vmatprep.subr.mxu0 0.0
    %1067 = vmatpush1.msra.mxu0 0.0
    %1068 = vmatprep.subr.mxu0 0.0
    %1069 = vmatpush1.msra.mxu0 0.0
    %1070 = vmatprep.mubr.f32.mxu0 0.0
    %1071 = vmatmul.mubr.f32.gmra.mrb[0].mxu0 %v928
    %v1072 = vpop.f32.mrb[0].mxu0
    %v1073 = vadd.f32 0.0, %v1072
    %v1074 = vpop.f32.mrb[0].mxu0
    %1075 = vdwg.mxu0
    %v1076 = vadd.f32 %v932, %v1002
    %v1077 = vxor.u32 %v1076, 2147483648
    %v1078 = vmul.f32 %v1077, 1.442695
    %v1079 = vpow.pop %v1078
    %v1080 = vadd.f32 %v1079, 1.0
    %v1081 = vrcp.pop %v1080
    %v1082 = vmul.f32 1.0, %v1081
    %v1083 = vadd.f32 %v933, %v1004
    %v1084 = vxor.u32 %v1083, 2147483648
    %v1085 = vmul.f32 %v1084, 1.442695
    %v1086 = vpow.pop %v1085
    %v1087 = vadd.f32 %v1086, 1.0
    %v1088 = vrcp.pop %v1087
    %v1089 = vmul.f32 1.0, %v1088
    %v1090 = vadd.f32 %v1073, %v85
    %v1091 = vmul.f32 %v1082, %v1090
    %v1092 = vadd.f32 %v934, %v1091
    %v1093 = vtanh.pop %v1092
    %v1094 = vsub.f32 1.0, %v1089
    %v1095 = vmul.f32 %v1094, %v1093
    %v1096 = vmul.f32 %v1089, %v928
    %v1097 = vadd.f32 %v1095, %v1096
    %s1098 = scalar_lea.vmem [#allocation3], 40
    %1099 = vst [vmem:[%s1098] sm:$0xff] %v1097
    %s1100 = scalar_lea.vmem %s0, 144
    %v1101 = vld [vmem:[%s1100] sm:$0xff]
    %v1102 = vld [vmem:[%s1100 + $0x8] sm:$0xff]
    %v1103 = vld [vmem:[%s1100 + $0x10] sm:$0xff]
    %1104 = vmatprep.subr.mxu0 %v33
    %1105 = vmatpush1.msra.mxu0 %v32
    %1106 = vmatprep.subr.mxu0 %v36
    %1107 = vmatpush1.msra.mxu0 %v35
    %1108 = vmatprep.subr.mxu0 %v39
    %1109 = vmatpush1.msra.mxu0 %v38
    %1110 = vmatprep.subr.mxu0 %v42
    %1111 = vmatpush1.msra.mxu0 %v41
    %1112 = vmatprep.subr.mxu0 %v45
    %1113 = vmatpush1.msra.mxu0 %v44
    %1114 = vmatprep.subr.mxu0 %v48
    %1115 = vmatpush1.msra.mxu0 %v47
    %1116 = vmatprep.subr.mxu0 %v51
    %1117 = vmatpush1.msra.mxu0 %v50
    %1118 = vmatprep.subr.mxu0 %v54
    %1119 = vmatpush1.msra.mxu0 %v53
    %1120 = vmatprep.subr.mxu0 %v57
    %1121 = vmatpush1.msra.mxu0 %v56
    %1122 = vmatprep.subr.mxu0 %v60
    %1123 = vmatpush1.msra.mxu0 %v59
    %1124 = vmatprep.subr.mxu0 %v63
    %1125 = vmatpush1.msra.mxu0 %v62
    %1126 = vmatprep.subr.mxu0 %v66
    %1127 = vmatpush1.msra.mxu0 %v65
    %1128 = vmatprep.subr.mxu0 %v69
    %1129 = vmatpush1.msra.mxu0 %v68
    %1130 = vmatprep.subr.mxu0 %v72
    %1131 = vmatpush1.msra.mxu0 %v71
    %1132 = vmatprep.subr.mxu0 %v75
    %1133 = vmatpush1.msra.mxu0 %v74
    %1134 = vmatprep.subr.mxu0 %v78
    %1135 = vmatpush1.msra.mxu0 %v77
    %1136 = vmatprep.subr.mxu0 0.0
    %1137 = vmatpush1.msra.mxu0 0.0
    %1138 = vmatprep.subr.mxu0 0.0
    %1139 = vmatpush1.msra.mxu0 0.0
    %1140 = vmatprep.subr.mxu0 0.0
    %1141 = vmatpush1.msra.mxu0 0.0
    %1142 = vmatprep.subr.mxu0 0.0
    %1143 = vmatpush1.msra.mxu0 0.0
    %1144 = vmatprep.subr.mxu0 0.0
    %1145 = vmatpush1.msra.mxu0 0.0
    %1146 = vmatprep.subr.mxu0 0.0
    %1147 = vmatpush1.msra.mxu0 0.0
    %1148 = vmatprep.subr.mxu0 0.0
    %1149 = vmatpush1.msra.mxu0 0.0
    %1150 = vmatprep.subr.mxu0 0.0
    %1151 = vmatpush1.msra.mxu0 0.0
    %1152 = vmatprep.subr.mxu0 0.0
    %1153 = vmatpush1.msra.mxu0 0.0
    %1154 = vmatprep.subr.mxu0 0.0
    %1155 = vmatpush1.msra.mxu0 0.0
    %1156 = vmatprep.subr.mxu0 0.0
    %1157 = vmatpush1.msra.mxu0 0.0
    %1158 = vmatprep.subr.mxu0 0.0
    %1159 = vmatpush1.msra.mxu0 0.0
    %1160 = vmatprep.subr.mxu0 0.0
    %1161 = vmatpush1.msra.mxu0 0.0
    %1162 = vmatprep.subr.mxu0 0.0
    %1163 = vmatpush1.msra.mxu0 0.0
    %1164 = vmatprep.subr.mxu0 0.0
    %1165 = vmatpush1.msra.mxu0 0.0
    %1166 = vmatprep.subr.mxu0 0.0
    %1167 = vmatpush1.msra.mxu0 0.0
    %1168 = vmatprep.mubr.f32.mxu0 0.0
    %1169 = vmatmul.mubr.f32.gmra.mrb[0].mxu0 %v1097
    %v1170 = vpop.f32.mrb[0].mxu0
    %v1171 = vadd.f32 0.0, %v1170
    %v1172 = vpop.f32.mrb[0].mxu0
    %v1173 = vadd.f32 0.0, %v1172
    %1174 = vdwg.mxu0
    %1175 = vmatprep.subr.mxu0 0.0
    %1176 = vmatpush1.msra.mxu0 %v34
    %1177 = vmatprep.subr.mxu0 0.0
    %1178 = vmatpush1.msra.mxu0 %v37
    %1179 = vmatprep.subr.mxu0 0.0
    %1180 = vmatpush1.msra.mxu0 %v40
    %1181 = vmatprep.subr.mxu0 0.0
    %1182 = vmatpush1.msra.mxu0 %v43
    %1183 = vmatprep.subr.mxu0 0.0
    %1184 = vmatpush1.msra.mxu0 %v46
    %1185 = vmatprep.subr.mxu0 0.0
    %1186 = vmatpush1.msra.mxu0 %v49
    %1187 = vmatprep.subr.mxu0 0.0
    %1188 = vmatpush1.msra.mxu0 %v52
    %1189 = vmatprep.subr.mxu0 0.0
    %1190 = vmatpush1.msra.mxu0 %v55
    %1191 = vmatprep.subr.mxu0 0.0
    %1192 = vmatpush1.msra.mxu0 %v58
    %1193 = vmatprep.subr.mxu0 0.0
    %1194 = vmatpush1.msra.mxu0 %v61
    %1195 = vmatprep.subr.mxu0 0.0
    %1196 = vmatpush1.msra.mxu0 %v64
    %1197 = vmatprep.subr.mxu0 0.0
    %1198 = vmatpush1.msra.mxu0 %v67
    %1199 = vmatprep.subr.mxu0 0.0
    %1200 = vmatpush1.msra.mxu0 %v70
    %1201 = vmatprep.subr.mxu0 0.0
    %1202 = vmatpush1.msra.mxu0 %v73
    %1203 = vmatprep.subr.mxu0 0.0
    %1204 = vmatpush1.msra.mxu0 %v76
    %1205 = vmatprep.subr.mxu0 0.0
    %1206 = vmatpush1.msra.mxu0 %v79
    %1207 = vmatprep.subr.mxu0 0.0
    %1208 = vmatpush1.msra.mxu0 0.0
    %1209 = vmatprep.subr.mxu0 0.0
    %1210 = vmatpush1.msra.mxu0 0.0
    %1211 = vmatprep.subr.mxu0 0.0
    %1212 = vmatpush1.msra.mxu0 0.0
    %1213 = vmatprep.subr.mxu0 0.0
    %1214 = vmatpush1.msra.mxu0 0.0
    %1215 = vmatprep.subr.mxu0 0.0
    %1216 = vmatpush1.msra.mxu0 0.0
    %1217 = vmatprep.subr.mxu0 0.0
    %1218 = vmatpush1.msra.mxu0 0.0
    %1219 = vmatprep.subr.mxu0 0.0
    %1220 = vmatpush1.msra.mxu0 0.0
    %1221 = vmatprep.subr.mxu0 0.0
    %1222 = vmatpush1.msra.mxu0 0.0
    %1223 = vmatprep.subr.mxu0 0.0
    %1224 = vmatpush1.msra.mxu0 0.0
    %1225 = vmatprep.subr.mxu0 0.0
    %1226 = vmatpush1.msra.mxu0 0.0
    %1227 = vmatprep.subr.mxu0 0.0
    %1228 = vmatpush1.msra.mxu0 0.0
    %1229 = vmatprep.subr.mxu0 0.0
    %1230 = vmatpush1.msra.mxu0 0.0
    %1231 = vmatprep.subr.mxu0 0.0
    %1232 = vmatpush1.msra.mxu0 0.0
    %1233 = vmatprep.subr.mxu0 0.0
    %1234 = vmatpush1.msra.mxu0 0.0
    %1235 = vmatprep.subr.mxu0 0.0
    %1236 = vmatpush1.msra.mxu0 0.0
    %1237 = vmatprep.subr.mxu0 0.0
    %1238 = vmatpush1.msra.mxu0 0.0
    %1239 = vmatprep.mubr.f32.mxu0 0.0
    %1240 = vmatmul.mubr.f32.gmra.mrb[0].mxu0 %v1097
    %v1241 = vpop.f32.mrb[0].mxu0
    %v1242 = vadd.f32 0.0, %v1241
    %v1243 = vpop.f32.mrb[0].mxu0
    %1244 = vdwg.mxu0
    %v1245 = vadd.f32 %v1101, %v1171
    %v1246 = vxor.u32 %v1245, 2147483648
    %v1247 = vmul.f32 %v1246, 1.442695
    %v1248 = vpow.pop %v1247
    %v1249 = vadd.f32 %v1248, 1.0
    %v1250 = vrcp.pop %v1249
    %v1251 = vmul.f32 1.0, %v1250
    %v1252 = vadd.f32 %v1102, %v1173
    %v1253 = vxor.u32 %v1252, 2147483648
    %v1254 = vmul.f32 %v1253, 1.442695
    %v1255 = vpow.pop %v1254
    %v1256 = vadd.f32 %v1255, 1.0
    %v1257 = vrcp.pop %v1256
    %v1258 = vmul.f32 1.0, %v1257
    %v1259 = vadd.f32 %v1242, %v85
    %v1260 = vmul.f32 %v1251, %v1259
    %v1261 = vadd.f32 %v1103, %v1260
    %v1262 = vtanh.pop %v1261
    %v1263 = vsub.f32 1.0, %v1258
    %v1264 = vmul.f32 %v1263, %v1262
    %v1265 = vmul.f32 %v1258, %v1097
    %v1266 = vadd.f32 %v1264, %v1265
    %s1267 = scalar_lea.vmem [#allocation3], 48
    %1268 = vst [vmem:[%s1267] sm:$0xff] %v1266
    %s1269 = scalar_lea.vmem %s0, 168
    %v1270 = vld [vmem:[%s1269] sm:$0xff]
    %v1271 = vld [vmem:[%s1269 + $0x8] sm:$0xff]
    %v1272 = vld [vmem:[%s1269 + $0x10] sm:$0xff]
    %1273 = vmatprep.subr.mxu0 %v33
    %1274 = vmatpush1.msra.mxu0 %v32
    %1275 = vmatprep.subr.mxu0 %v36
    %1276 = vmatpush1.msra.mxu0 %v35
    %1277 = vmatprep.subr.mxu0 %v39
    %1278 = vmatpush1.msra.mxu0 %v38
    %1279 = vmatprep.subr.mxu0 %v42
    %1280 = vmatpush1.msra.mxu0 %v41
    %1281 = vmatprep.subr.mxu0 %v45
    %1282 = vmatpush1.msra.mxu0 %v44
    %1283 = vmatprep.subr.mxu0 %v48
    %1284 = vmatpush1.msra.mxu0 %v47
    %1285 = vmatprep.subr.mxu0 %v51
    %1286 = vmatpush1.msra.mxu0 %v50
    %1287 = vmatprep.subr.mxu0 %v54
    %1288 = vmatpush1.msra.mxu0 %v53
    %1289 = vmatprep.subr.mxu0 %v57
    %1290 = vmatpush1.msra.mxu0 %v56
    %1291 = vmatprep.subr.mxu0 %v60
    %1292 = vmatpush1.msra.mxu0 %v59
    %1293 = vmatprep.subr.mxu0 %v63
    %1294 = vmatpush1.msra.mxu0 %v62
    %1295 = vmatprep.subr.mxu0 %v66
    %1296 = vmatpush1.msra.mxu0 %v65
    %1297 = vmatprep.subr.mxu0 %v69
    %1298 = vmatpush1.msra.mxu0 %v68
    %1299 = vmatprep.subr.mxu0 %v72
    %1300 = vmatpush1.msra.mxu0 %v71
    %1301 = vmatprep.subr.mxu0 %v75
    %1302 = vmatpush1.msra.mxu0 %v74
    %1303 = vmatprep.subr.mxu0 %v78
    %1304 = vmatpush1.msra.mxu0 %v77
    %1305 = vmatprep.subr.mxu0 0.0
    %1306 = vmatpush1.msra.mxu0 0.0
    %1307 = vmatprep.subr.mxu0 0.0
    %1308 = vmatpush1.msra.mxu0 0.0
    %1309 = vmatprep.subr.mxu0 0.0
    %1310 = vmatpush1.msra.mxu0 0.0
    %1311 = vmatprep.subr.mxu0 0.0
    %1312 = vmatpush1.msra.mxu0 0.0
    %1313 = vmatprep.subr.mxu0 0.0
    %1314 = vmatpush1.msra.mxu0 0.0
    %1315 = vmatprep.subr.mxu0 0.0
    %1316 = vmatpush1.msra.mxu0 0.0
    %1317 = vmatprep.subr.mxu0 0.0
    %1318 = vmatpush1.msra.mxu0 0.0
    %1319 = vmatprep.subr.mxu0 0.0
    %1320 = vmatpush1.msra.mxu0 0.0
    %1321 = vmatprep.subr.mxu0 0.0
    %1322 = vmatpush1.msra.mxu0 0.0
    %1323 = vmatprep.subr.mxu0 0.0
    %1324 = vmatpush1.msra.mxu0 0.0
    %1325 = vmatprep.subr.mxu0 0.0
    %1326 = vmatpush1.msra.mxu0 0.0
    %1327 = vmatprep.subr.mxu0 0.0
    %1328 = vmatpush1.msra.mxu0 0.0
    %1329 = vmatprep.subr.mxu0 0.0
    %1330 = vmatpush1.msra.mxu0 0.0
    %1331 = vmatprep.subr.mxu0 0.0
    %1332 = vmatpush1.msra.mxu0 0.0
    %1333 = vmatprep.subr.mxu0 0.0
    %1334 = vmatpush1.msra.mxu0 0.0
    %1335 = vmatprep.subr.mxu0 0.0
    %1336 = vmatpush1.msra.mxu0 0.0
    %1337 = vmatprep.mubr.f32.mxu0 0.0
    %1338 = vmatmul.mubr.f32.gmra.mrb[0].mxu0 %v1266
    %v1339 = vpop.f32.mrb[0].mxu0
    %v1340 = vadd.f32 0.0, %v1339
    %v1341 = vpop.f32.mrb[0].mxu0
    %v1342 = vadd.f32 0.0, %v1341
    %1343 = vdwg.mxu0
    %1344 = vmatprep.subr.mxu0 0.0
    %1345 = vmatpush1.msra.mxu0 %v34
    %1346 = vmatprep.subr.mxu0 0.0
    %1347 = vmatpush1.msra.mxu0 %v37
    %1348 = vmatprep.subr.mxu0 0.0
    %1349 = vmatpush1.msra.mxu0 %v40
    %1350 = vmatprep.subr.mxu0 0.0
    %1351 = vmatpush1.msra.mxu0 %v43
    %1352 = vmatprep.subr.mxu0 0.0
    %1353 = vmatpush1.msra.mxu0 %v46
    %1354 = vmatprep.subr.mxu0 0.0
    %1355 = vmatpush1.msra.mxu0 %v49
    %1356 = vmatprep.subr.mxu0 0.0
    %1357 = vmatpush1.msra.mxu0 %v52
    %1358 = vmatprep.subr.mxu0 0.0
    %1359 = vmatpush1.msra.mxu0 %v55
    %1360 = vmatprep.subr.mxu0 0.0
    %1361 = vmatpush1.msra.mxu0 %v58
    %1362 = vmatprep.subr.mxu0 0.0
    %1363 = vmatpush1.msra.mxu0 %v61
    %1364 = vmatprep.subr.mxu0 0.0
    %1365 = vmatpush1.msra.mxu0 %v64
    %1366 = vmatprep.subr.mxu0 0.0
    %1367 = vmatpush1.msra.mxu0 %v67
    %1368 = vmatprep.subr.mxu0 0.0
    %1369 = vmatpush1.msra.mxu0 %v70
    %1370 = vmatprep.subr.mxu0 0.0
    %1371 = vmatpush1.msra.mxu0 %v73
    %1372 = vmatprep.subr.mxu0 0.0
    %1373 = vmatpush1.msra.mxu0 %v76
    %1374 = vmatprep.subr.mxu0 0.0
    %1375 = vmatpush1.msra.mxu0 %v79
    %1376 = vmatprep.subr.mxu0 0.0
    %1377 = vmatpush1.msra.mxu0 0.0
    %1378 = vmatprep.subr.mxu0 0.0
    %1379 = vmatpush1.msra.mxu0 0.0
    %1380 = vmatprep.subr.mxu0 0.0
    %1381 = vmatpush1.msra.mxu0 0.0
    %1382 = vmatprep.subr.mxu0 0.0
    %1383 = vmatpush1.msra.mxu0 0.0
    %1384 = vmatprep.subr.mxu0 0.0
    %1385 = vmatpush1.msra.mxu0 0.0
    %1386 = vmatprep.subr.mxu0 0.0
    %1387 = vmatpush1.msra.mxu0 0.0
    %1388 = vmatprep.subr.mxu0 0.0
    %1389 = vmatpush1.msra.mxu0 0.0
    %1390 = vmatprep.subr.mxu0 0.0
    %1391 = vmatpush1.msra.mxu0 0.0
    %1392 = vmatprep.subr.mxu0 0.0
    %1393 = vmatpush1.msra.mxu0 0.0
    %1394 = vmatprep.subr.mxu0 0.0
    %1395 = vmatpush1.msra.mxu0 0.0
    %1396 = vmatprep.subr.mxu0 0.0
    %1397 = vmatpush1.msra.mxu0 0.0
    %1398 = vmatprep.subr.mxu0 0.0
    %1399 = vmatpush1.msra.mxu0 0.0
    %1400 = vmatprep.subr.mxu0 0.0
    %1401 = vmatpush1.msra.mxu0 0.0
    %1402 = vmatprep.subr.mxu0 0.0
    %1403 = vmatpush1.msra.mxu0 0.0
    %1404 = vmatprep.subr.mxu0 0.0
    %1405 = vmatpush1.msra.mxu0 0.0
    %1406 = vmatprep.subr.mxu0 0.0
    %1407 = vmatpush1.msra.mxu0 0.0
    %1408 = vmatprep.mubr.f32.mxu0 0.0
    %1409 = vmatmul.mubr.f32.gmra.mrb[0].mxu0 %v1266
    %v1410 = vpop.f32.mrb[0].mxu0
    %v1411 = vadd.f32 0.0, %v1410
    %v1412 = vpop.f32.mrb[0].mxu0
    %1413 = vdwg.mxu0
    %v1414 = vadd.f32 %v1270, %v1340
    %v1415 = vxor.u32 %v1414, 2147483648
    %v1416 = vmul.f32 %v1415, 1.442695
    %v1417 = vpow.pop %v1416
    %v1418 = vadd.f32 %v1417, 1.0
    %v1419 = vrcp.pop %v1418
    %v1420 = vmul.f32 1.0, %v1419
    %v1421 = vadd.f32 %v1271, %v1342
    %v1422 = vxor.u32 %v1421, 2147483648
    %v1423 = vmul.f32 %v1422, 1.442695
    %v1424 = vpow.pop %v1423
    %v1425 = vadd.f32 %v1424, 1.0
    %v1426 = vrcp.pop %v1425
    %v1427 = vmul.f32 1.0, %v1426
    %v1428 = vadd.f32 %v1411, %v85
    %v1429 = vmul.f32 %v1420, %v1428
    %v1430 = vadd.f32 %v1272, %v1429
    %v1431 = vtanh.pop %v1430
    %v1432 = vsub.f32 1.0, %v1427
    %v1433 = vmul.f32 %v1432, %v1431
    %v1434 = vmul.f32 %v1427, %v1266
    %v1435 = vadd.f32 %v1433, %v1434
    %s1436 = scalar_lea.vmem [#allocation3], 56
    %1437 = vst [vmem:[%s1436] sm:$0xff] %v1435
    %1438 = vst [vmem:[#allocation2] sm:$0xff] %v1435
    %1439 = vst [vmem:[%s7] sm:$0xff] %v1435
    %v1440 = vld [vmem:[%s4] sm:$0xff]
    %v1441 = vld [vmem:[%s4 + $0x8] sm:$0xff]
    %v1442 = vld [vmem:[%s4 + $0x10] sm:$0xff]
    %v1443 = vld [vmem:[%s4 + $0x18] sm:$0xff]
    %v1444 = vld [vmem:[%s4 + $0x20] sm:$0xff]
    %v1445 = vld [vmem:[%s4 + $0x28] sm:$0xff]
    %v1446 = vld [vmem:[%s4 + $0x30] sm:$0xff]
    %v1447 = vld [vmem:[%s4 + $0x38] sm:$0xff]
    %v1448 = vld [vmem:[%s4 + $0x40] sm:$0xff]
    %v1449 = vld [vmem:[%s4 + $0x48] sm:$0xff]
    %v1450 = vld [vmem:[%s4 + $0x50] sm:$0xff]
    %v1451 = vld [vmem:[%s4 + $0x58] sm:$0xff]
    %v1452 = vld [vmem:[%s4 + $0x60] sm:$0xff]
    %v1453 = vld [vmem:[%s4 + $0x68] sm:$0xff]
    %v1454 = vld [vmem:[%s4 + $0x70] sm:$0xff]
    %v1455 = vld [vmem:[%s4 + $0x78] sm:$0xff]
    %v1456 = vld [vmem:[#allocation3] sm:$0xff]
    %v1457 = vld [vmem:[#allocation3 + $0x8] sm:$0xff]
    %v1458 = vld [vmem:[#allocation3 + $0x10] sm:$0xff]
    %v1459 = vld [vmem:[#allocation3 + $0x18] sm:$0xff]
    %v1460 = vld [vmem:[#allocation3 + $0x20] sm:$0xff]
    %v1461 = vld [vmem:[#allocation3 + $0x28] sm:$0xff]
    %v1462 = vld [vmem:[#allocation3 + $0x30] sm:$0xff]
    %v1463 = vld [vmem:[#allocation3 + $0x38] sm:$0xff]
    %v1464 = vld [vmem:[%s5] sm:$0x1]
    %v1466 = vlaneseq
    %v1467 = vshrl.u32 %v1466, 7
    %v1468 = vsub.s32 0, %v1467
    %v1469 = vrot.slane %v1464, %v1468
    %1471 = vmatprep.subr.mxu0 0.0
    %1472 = vmatpush1.msra.mxu0 %v1440
    %1473 = vmatprep.subr.mxu0 0.0
    %1474 = vmatpush1.msra.mxu0 %v1441
    %1475 = vmatprep.subr.mxu0 0.0
    %1476 = vmatpush1.msra.mxu0 %v1442
    %1477 = vmatprep.subr.mxu0 0.0
    %1478 = vmatpush1.msra.mxu0 %v1443
    %1479 = vmatprep.subr.mxu0 0.0
    %1480 = vmatpush1.msra.mxu0 %v1444
    %1481 = vmatprep.subr.mxu0 0.0
    %1482 = vmatpush1.msra.mxu0 %v1445
    %1483 = vmatprep.subr.mxu0 0.0
    %1484 = vmatpush1.msra.mxu0 %v1446
    %1485 = vmatprep.subr.mxu0 0.0
    %1486 = vmatpush1.msra.mxu0 %v1447
    %1487 = vmatprep.subr.mxu0 0.0
    %1488 = vmatpush1.msra.mxu0 %v1448
    %1489 = vmatprep.subr.mxu0 0.0
    %1490 = vmatpush1.msra.mxu0 %v1449
    %1491 = vmatprep.subr.mxu0 0.0
    %1492 = vmatpush1.msra.mxu0 %v1450
    %1493 = vmatprep.subr.mxu0 0.0
    %1494 = vmatpush1.msra.mxu0 %v1451
    %1495 = vmatprep.subr.mxu0 0.0
    %1496 = vmatpush1.msra.mxu0 %v1452
    %1497 = vmatprep.subr.mxu0 0.0
    %1498 = vmatpush1.msra.mxu0 %v1453
    %1499 = vmatprep.subr.mxu0 0.0
    %1500 = vmatpush1.msra.mxu0 %v1454
    %1501 = vmatprep.subr.mxu0 0.0
    %1502 = vmatpush1.msra.mxu0 %v1455
    %1503 = vmatprep.subr.mxu0 0.0
    %1504 = vmatpush1.msra.mxu0 0.0
    %1505 = vmatprep.subr.mxu0 0.0
    %1506 = vmatpush1.msra.mxu0 0.0
    %1507 = vmatprep.subr.mxu0 0.0
    %1508 = vmatpush1.msra.mxu0 0.0
    %1509 = vmatprep.subr.mxu0 0.0
    %1510 = vmatpush1.msra.mxu0 0.0
    %1511 = vmatprep.subr.mxu0 0.0
    %1512 = vmatpush1.msra.mxu0 0.0
    %1513 = vmatprep.subr.mxu0 0.0
    %1514 = vmatpush1.msra.mxu0 0.0
    %1515 = vmatprep.subr.mxu0 0.0
    %1516 = vmatpush1.msra.mxu0 0.0
    %1517 = vmatprep.subr.mxu0 0.0
    %1518 = vmatpush1.msra.mxu0 0.0
    %1519 = vmatprep.subr.mxu0 0.0
    %1520 = vmatpush1.msra.mxu0 0.0
    %1521 = vmatprep.subr.mxu0 0.0
    %1522 = vmatpush1.msra.mxu0 0.0
    %1523 = vmatprep.subr.mxu0 0.0
    %1524 = vmatpush1.msra.mxu0 0.0
    %1525 = vmatprep.subr.mxu0 0.0
    %1526 = vmatpush1.msra.mxu0 0.0
    %1527 = vmatprep.subr.mxu0 0.0
    %1528 = vmatpush1.msra.mxu0 0.0
    %1529 = vmatprep.subr.mxu0 0.0
    %1530 = vmatpush1.msra.mxu0 0.0
    %1531 = vmatprep.subr.mxu0 0.0
    %1532 = vmatpush1.msra.mxu0 0.0
    %1533 = vmatprep.subr.mxu0 0.0
    %1534 = vmatpush1.msra.mxu0 0.0
    %1535 = vmatprep.mubr.f32.mxu0 0.0
    %1536 = vmatmul.mubr.f32.gmra.mrb[0].mxu0 %v1456
    %v1537 = vpop.f32.mrb[0].mxu0
    %v1538 = vadd.f32 %v1469, %v1537
    %v1539 = vpop.f32.mrb[0].mxu0
    %1540 = vmatprep.mubr.f32.mxu0 0.0
    %1541 = vmatmul.mubr.f32.gmra.mrb[0].mxu0 %v1457
    %v1542 = vpop.f32.mrb[0].mxu0
    %v1543 = vadd.f32 %v1469, %v1542
    %v1544 = vpop.f32.mrb[0].mxu0
    %1545 = vmatprep.mubr.f32.mxu0 0.0
    %1546 = vmatmul.mubr.f32.gmra.mrb[0].mxu0 %v1458
    %v1547 = vpop.f32.mrb[0].mxu0
    %v1548 = vadd.f32 %v1469, %v1547
    %v1549 = vpop.f32.mrb[0].mxu0
    %1550 = vmatprep.mubr.f32.mxu0 0.0
    %1551 = vmatmul.mubr.f32.gmra.mrb[0].mxu0 %v1459
    %v1552 = vpop.f32.mrb[0].mxu0
    %v1553 = vadd.f32 %v1469, %v1552
    %v1554 = vpop.f32.mrb[0].mxu0
    %1555 = vmatprep.mubr.f32.mxu0 0.0
    %1556 = vmatmul.mubr.f32.gmra.mrb[0].mxu0 %v1460
    %v1557 = vpop.f32.mrb[0].mxu0
    %v1558 = vadd.f32 %v1469, %v1557
    %v1559 = vpop.f32.mrb[0].mxu0
    %1560 = vmatprep.mubr.f32.mxu0 0.0
    %1561 = vmatmul.mubr.f32.gmra.mrb[0].mxu0 %v1461
    %v1562 = vpop.f32.mrb[0].mxu0
    %v1563 = vadd.f32 %v1469, %v1562
    %v1564 = vpop.f32.mrb[0].mxu0
    %1565 = vmatprep.mubr.f32.mxu0 0.0
    %1566 = vmatmul.mubr.f32.gmra.mrb[0].mxu0 %v1462
    %v1567 = vpop.f32.mrb[0].mxu0
    %v1568 = vadd.f32 %v1469, %v1567
    %v1569 = vpop.f32.mrb[0].mxu0
    %1570 = vmatprep.mubr.f32.mxu0 0.0
    %1571 = vmatmul.mubr.f32.gmra.mrb[0].mxu0 %v1463
    %v1572 = vpop.f32.mrb[0].mxu0
    %v1573 = vadd.f32 %v1469, %v1572
    %v1574 = vpop.f32.mrb[0].mxu0
    %1575 = vdwg.mxu0
    %v1577 = vcombine.high %v1538, %v1538
    %v1579 = vunpack.c.l.s4 1966171168
    %v1580 = vunpack.c.0.s8 %v1579
    %v1581 = vlaneseq
    %v1582 = vshrl.u32 %v1581, 7
    %v1583 = vsub.s32 %v1580, %v1582
    %v1584 = vrot.slane %v1538, %v1583
    %v1586 = vunpack.c.l.s4 1966171168
    %v1587 = vunpack.c.0.s8 %v1586
    %v1588 = vlaneseq
    %v1589 = vshrl.u32 %v1588, 7
    %v1590 = vsub.s32 %v1587, %v1589
    %v1591 = vrot.slane %v1577, %v1590
    %v1592 = vcombine.high %v1584, %v1584
    %v1593 = vcombine.high %v1591, %v1591
    %v1595 = vunpack.c.l.s4 1966171168
    %v1596 = vunpack.c.0.s8 %v1595
    %v1597 = vlaneseq
    %v1598 = vshrl.u32 %v1597, 7
    %v1599 = vsub.s32 %v1596, %v1598
    %v1600 = vrot.slane %v1584, %v1599
    %v1602 = vunpack.c.l.s4 1966171168
    %v1603 = vunpack.c.0.s8 %v1602
    %v1604 = vlaneseq
    %v1605 = vshrl.u32 %v1604, 7
    %v1606 = vsub.s32 %v1603, %v1605
    %v1607 = vrot.slane %v1591, %v1606
    %v1609 = vunpack.c.l.s4 1966171168
    %v1610 = vunpack.c.0.s8 %v1609
    %v1611 = vlaneseq
    %v1612 = vshrl.u32 %v1611, 7
    %v1613 = vsub.s32 %v1610, %v1612
    %v1614 = vrot.slane %v1592, %v1613
    %v1616 = vunpack.c.l.s4 1966171168
    %v1617 = vunpack.c.0.s8 %v1616
    %v1618 = vlaneseq
    %v1619 = vshrl.u32 %v1618, 7
    %v1620 = vsub.s32 %v1617, %v1619
    %v1621 = vrot.slane %v1593, %v1620
    %v1622 = vcombine.high %v1600, %v1600
    %v1623 = vcombine.high %v1607, %v1607
    %v1624 = vcombine.high %v1614, %v1614
    %v1625 = vcombine.high %v1621, %v1621
    %1634 = vst [vmem:[#allocation4] sm:$0x1] %v1600
    %1635 = vst [vmem:[#allocation4 + $0x8] sm:$0x1] %v1614
    %1636 = vst [vmem:[#allocation4 + $0x10] sm:$0x1] %v1622
    %1637 = vst [vmem:[#allocation4 + $0x18] sm:$0x1] %v1624
    %1638 = vst [vmem:[#allocation4 + $0x20] sm:$0x1] %v1607
    %1639 = vst [vmem:[#allocation4 + $0x28] sm:$0x1] %v1621
    %1640 = vst [vmem:[#allocation4 + $0x30] sm:$0x1] %v1623
    %1641 = vst [vmem:[#allocation4 + $0x38] sm:$0x1] %v1625
    %v1643 = vcombine.high %v1543, %v1543
    %v1645 = vunpack.c.l.s4 1966171168
    %v1646 = vunpack.c.0.s8 %v1645
    %v1647 = vlaneseq
    %v1648 = vshrl.u32 %v1647, 7
    %v1649 = vsub.s32 %v1646, %v1648
    %v1650 = vrot.slane %v1543, %v1649
    %v1652 = vunpack.c.l.s4 1966171168
    %v1653 = vunpack.c.0.s8 %v1652
    %v1654 = vlaneseq
    %v1655 = vshrl.u32 %v1654, 7
    %v1656 = vsub.s32 %v1653, %v1655
    %v1657 = vrot.slane %v1643, %v1656
    %v1658 = vcombine.high %v1650, %v1650
    %v1659 = vcombine.high %v1657, %v1657
    %v1661 = vunpack.c.l.s4 1966171168
    %v1662 = vunpack.c.0.s8 %v1661
    %v1663 = vlaneseq
    %v1664 = vshrl.u32 %v1663, 7
    %v1665 = vsub.s32 %v1662, %v1664
    %v1666 = vrot.slane %v1650, %v1665
    %v1668 = vunpack.c.l.s4 1966171168
    %v1669 = vunpack.c.0.s8 %v1668
    %v1670 = vlaneseq
    %v1671 = vshrl.u32 %v1670, 7
    %v1672 = vsub.s32 %v1669, %v1671
    %v1673 = vrot.slane %v1657, %v1672
    %v1675 = vunpack.c.l.s4 1966171168
    %v1676 = vunpack.c.0.s8 %v1675
    %v1677 = vlaneseq
    %v1678 = vshrl.u32 %v1677, 7
    %v1679 = vsub.s32 %v1676, %v1678
    %v1680 = vrot.slane %v1658, %v1679
    %v1682 = vunpack.c.l.s4 1966171168
    %v1683 = vunpack.c.0.s8 %v1682
    %v1684 = vlaneseq
    %v1685 = vshrl.u32 %v1684, 7
    %v1686 = vsub.s32 %v1683, %v1685
    %v1687 = vrot.slane %v1659, %v1686
    %v1688 = vcombine.high %v1666, %v1666
    %v1689 = vcombine.high %v1673, %v1673
    %v1690 = vcombine.high %v1680, %v1680
    %v1691 = vcombine.high %v1687, %v1687
    %1700 = vst [vmem:[#allocation4 + $0x1] sm:$0x1] %v1666
    %1701 = vst [vmem:[#allocation4 + $0x9] sm:$0x1] %v1680
    %1702 = vst [vmem:[#allocation4 + $0x11] sm:$0x1] %v1688
    %1703 = vst [vmem:[#allocation4 + $0x19] sm:$0x1] %v1690
    %1704 = vst [vmem:[#allocation4 + $0x21] sm:$0x1] %v1673
    %1705 = vst [vmem:[#allocation4 + $0x29] sm:$0x1] %v1687
    %1706 = vst [vmem:[#allocation4 + $0x31] sm:$0x1] %v1689
    %1707 = vst [vmem:[#allocation4 + $0x39] sm:$0x1] %v1691
    %v1709 = vcombine.high %v1548, %v1548
    %v1711 = vunpack.c.l.s4 1966171168
    %v1712 = vunpack.c.0.s8 %v1711
    %v1713 = vlaneseq
    %v1714 = vshrl.u32 %v1713, 7
    %v1715 = vsub.s32 %v1712, %v1714
    %v1716 = vrot.slane %v1548, %v1715
    %v1718 = vunpack.c.l.s4 1966171168
    %v1719 = vunpack.c.0.s8 %v1718
    %v1720 = vlaneseq
    %v1721 = vshrl.u32 %v1720, 7
    %v1722 = vsub.s32 %v1719, %v1721
    %v1723 = vrot.slane %v1709, %v1722
    %v1724 = vcombine.high %v1716, %v1716
    %v1725 = vcombine.high %v1723, %v1723
    %v1727 = vunpack.c.l.s4 1966171168
    %v1728 = vunpack.c.0.s8 %v1727
    %v1729 = vlaneseq
    %v1730 = vshrl.u32 %v1729, 7
    %v1731 = vsub.s32 %v1728, %v1730
    %v1732 = vrot.slane %v1716, %v1731
    %v1734 = vunpack.c.l.s4 1966171168
    %v1735 = vunpack.c.0.s8 %v1734
    %v1736 = vlaneseq
    %v1737 = vshrl.u32 %v1736, 7
    %v1738 = vsub.s32 %v1735, %v1737
    %v1739 = vrot.slane %v1723, %v1738
    %v1741 = vunpack.c.l.s4 1966171168
    %v1742 = vunpack.c.0.s8 %v1741
    %v1743 = vlaneseq
    %v1744 = vshrl.u32 %v1743, 7
    %v1745 = vsub.s32 %v1742, %v1744
    %v1746 = vrot.slane %v1724, %v1745
    %v1748 = vunpack.c.l.s4 1966171168
    %v1749 = vunpack.c.0.s8 %v1748
    %v1750 = vlaneseq
    %v1751 = vshrl.u32 %v1750, 7
    %v1752 = vsub.s32 %v1749, %v1751
    %v1753 = vrot.slane %v1725, %v1752
    %v1754 = vcombine.high %v1732, %v1732
    %v1755 = vcombine.high %v1739, %v1739
    %v1756 = vcombine.high %v1746, %v1746
    %v1757 = vcombine.high %v1753, %v1753
    %1766 = vst [vmem:[#allocation4 + $0x2] sm:$0x1] %v1732
    %1767 = vst [vmem:[#allocation4 + $0xa] sm:$0x1] %v1746
    %1768 = vst [vmem:[#allocation4 + $0x12] sm:$0x1] %v1754
    %1769 = vst [vmem:[#allocation4 + $0x1a] sm:$0x1] %v1756
    %1770 = vst [vmem:[#allocation4 + $0x22] sm:$0x1] %v1739
    %1771 = vst [vmem:[#allocation4 + $0x2a] sm:$0x1] %v1753
    %1772 = vst [vmem:[#allocation4 + $0x32] sm:$0x1] %v1755
    %1773 = vst [vmem:[#allocation4 + $0x3a] sm:$0x1] %v1757
    %v1775 = vcombine.high %v1553, %v1553
    %v1777 = vunpack.c.l.s4 1966171168
    %v1778 = vunpack.c.0.s8 %v1777
    %v1779 = vlaneseq
    %v1780 = vshrl.u32 %v1779, 7
    %v1781 = vsub.s32 %v1778, %v1780
    %v1782 = vrot.slane %v1553, %v1781
    %v1784 = vunpack.c.l.s4 1966171168
    %v1785 = vunpack.c.0.s8 %v1784
    %v1786 = vlaneseq
    %v1787 = vshrl.u32 %v1786, 7
    %v1788 = vsub.s32 %v1785, %v1787
    %v1789 = vrot.slane %v1775, %v1788
    %v1790 = vcombine.high %v1782, %v1782
    %v1791 = vcombine.high %v1789, %v1789
    %v1793 = vunpack.c.l.s4 1966171168
    %v1794 = vunpack.c.0.s8 %v1793
    %v1795 = vlaneseq
    %v1796 = vshrl.u32 %v1795, 7
    %v1797 = vsub.s32 %v1794, %v1796
    %v1798 = vrot.slane %v1782, %v1797
    %v1800 = vunpack.c.l.s4 1966171168
    %v1801 = vunpack.c.0.s8 %v1800
    %v1802 = vlaneseq
    %v1803 = vshrl.u32 %v1802, 7
    %v1804 = vsub.s32 %v1801, %v1803
    %v1805 = vrot.slane %v1789, %v1804
    %v1807 = vunpack.c.l.s4 1966171168
    %v1808 = vunpack.c.0.s8 %v1807
    %v1809 = vlaneseq
    %v1810 = vshrl.u32 %v1809, 7
    %v1811 = vsub.s32 %v1808, %v1810
    %v1812 = vrot.slane %v1790, %v1811
    %v1814 = vunpack.c.l.s4 1966171168
    %v1815 = vunpack.c.0.s8 %v1814
    %v1816 = vlaneseq
    %v1817 = vshrl.u32 %v1816, 7
    %v1818 = vsub.s32 %v1815, %v1817
    %v1819 = vrot.slane %v1791, %v1818
    %v1820 = vcombine.high %v1798, %v1798
    %v1821 = vcombine.high %v1805, %v1805
    %v1822 = vcombine.high %v1812, %v1812
    %v1823 = vcombine.high %v1819, %v1819
    %1832 = vst [vmem:[#allocation4 + $0x3] sm:$0x1] %v1798
    %1833 = vst [vmem:[#allocation4 + $0xb] sm:$0x1] %v1812
    %1834 = vst [vmem:[#allocation4 + $0x13] sm:$0x1] %v1820
    %1835 = vst [vmem:[#allocation4 + $0x1b] sm:$0x1] %v1822
    %1836 = vst [vmem:[#allocation4 + $0x23] sm:$0x1] %v1805
    %1837 = vst [vmem:[#allocation4 + $0x2b] sm:$0x1] %v1819
    %1838 = vst [vmem:[#allocation4 + $0x33] sm:$0x1] %v1821
    %1839 = vst [vmem:[#allocation4 + $0x3b] sm:$0x1] %v1823
    %v1841 = vcombine.high %v1558, %v1558
    %v1843 = vunpack.c.l.s4 1966171168
    %v1844 = vunpack.c.0.s8 %v1843
    %v1845 = vlaneseq
    %v1846 = vshrl.u32 %v1845, 7
    %v1847 = vsub.s32 %v1844, %v1846
    %v1848 = vrot.slane %v1558, %v1847
    %v1850 = vunpack.c.l.s4 1966171168
    %v1851 = vunpack.c.0.s8 %v1850
    %v1852 = vlaneseq
    %v1853 = vshrl.u32 %v1852, 7
    %v1854 = vsub.s32 %v1851, %v1853
    %v1855 = vrot.slane %v1841, %v1854
    %v1856 = vcombine.high %v1848, %v1848
    %v1857 = vcombine.high %v1855, %v1855
    %v1859 = vunpack.c.l.s4 1966171168
    %v1860 = vunpack.c.0.s8 %v1859
    %v1861 = vlaneseq
    %v1862 = vshrl.u32 %v1861, 7
    %v1863 = vsub.s32 %v1860, %v1862
    %v1864 = vrot.slane %v1848, %v1863
    %v1866 = vunpack.c.l.s4 1966171168
    %v1867 = vunpack.c.0.s8 %v1866
    %v1868 = vlaneseq
    %v1869 = vshrl.u32 %v1868, 7
    %v1870 = vsub.s32 %v1867, %v1869
    %v1871 = vrot.slane %v1855, %v1870
    %v1873 = vunpack.c.l.s4 1966171168
    %v1874 = vunpack.c.0.s8 %v1873
    %v1875 = vlaneseq
    %v1876 = vshrl.u32 %v1875, 7
    %v1877 = vsub.s32 %v1874, %v1876
    %v1878 = vrot.slane %v1856, %v1877
    %v1880 = vunpack.c.l.s4 1966171168
    %v1881 = vunpack.c.0.s8 %v1880
    %v1882 = vlaneseq
    %v1883 = vshrl.u32 %v1882, 7
    %v1884 = vsub.s32 %v1881, %v1883
    %v1885 = vrot.slane %v1857, %v1884
    %v1886 = vcombine.high %v1864, %v1864
    %v1887 = vcombine.high %v1871, %v1871
    %v1888 = vcombine.high %v1878, %v1878
    %v1889 = vcombine.high %v1885, %v1885
    %1898 = vst [vmem:[#allocation4 + $0x4] sm:$0x1] %v1864
    %1899 = vst [vmem:[#allocation4 + $0xc] sm:$0x1] %v1878
    %1900 = vst [vmem:[#allocation4 + $0x14] sm:$0x1] %v1886
    %1901 = vst [vmem:[#allocation4 + $0x1c] sm:$0x1] %v1888
    %1902 = vst [vmem:[#allocation4 + $0x24] sm:$0x1] %v1871
    %1903 = vst [vmem:[#allocation4 + $0x2c] sm:$0x1] %v1885
    %1904 = vst [vmem:[#allocation4 + $0x34] sm:$0x1] %v1887
    %1905 = vst [vmem:[#allocation4 + $0x3c] sm:$0x1] %v1889
    %v1907 = vcombine.high %v1563, %v1563
    %v1909 = vunpack.c.l.s4 1966171168
    %v1910 = vunpack.c.0.s8 %v1909
    %v1911 = vlaneseq
    %v1912 = vshrl.u32 %v1911, 7
    %v1913 = vsub.s32 %v1910, %v1912
    %v1914 = vrot.slane %v1563, %v1913
    %v1916 = vunpack.c.l.s4 1966171168
    %v1917 = vunpack.c.0.s8 %v1916
    %v1918 = vlaneseq
    %v1919 = vshrl.u32 %v1918, 7
    %v1920 = vsub.s32 %v1917, %v1919
    %v1921 = vrot.slane %v1907, %v1920
    %v1922 = vcombine.high %v1914, %v1914
    %v1923 = vcombine.high %v1921, %v1921
    %v1925 = vunpack.c.l.s4 1966171168
    %v1926 = vunpack.c.0.s8 %v1925
    %v1927 = vlaneseq
    %v1928 = vshrl.u32 %v1927, 7
    %v1929 = vsub.s32 %v1926, %v1928
    %v1930 = vrot.slane %v1914, %v1929
    %v1932 = vunpack.c.l.s4 1966171168
    %v1933 = vunpack.c.0.s8 %v1932
    %v1934 = vlaneseq
    %v1935 = vshrl.u32 %v1934, 7
    %v1936 = vsub.s32 %v1933, %v1935
    %v1937 = vrot.slane %v1921, %v1936
    %v1939 = vunpack.c.l.s4 1966171168
    %v1940 = vunpack.c.0.s8 %v1939
    %v1941 = vlaneseq
    %v1942 = vshrl.u32 %v1941, 7
    %v1943 = vsub.s32 %v1940, %v1942
    %v1944 = vrot.slane %v1922, %v1943
    %v1946 = vunpack.c.l.s4 1966171168
    %v1947 = vunpack.c.0.s8 %v1946
    %v1948 = vlaneseq
    %v1949 = vshrl.u32 %v1948, 7
    %v1950 = vsub.s32 %v1947, %v1949
    %v1951 = vrot.slane %v1923, %v1950
    %v1952 = vcombine.high %v1930, %v1930
    %v1953 = vcombine.high %v1937, %v1937
    %v1954 = vcombine.high %v1944, %v1944
    %v1955 = vcombine.high %v1951, %v1951
    %1964 = vst [vmem:[#allocation4 + $0x5] sm:$0x1] %v1930
    %1965 = vst [vmem:[#allocation4 + $0xd] sm:$0x1] %v1944
    %1966 = vst [vmem:[#allocation4 + $0x15] sm:$0x1] %v1952
    %1967 = vst [vmem:[#allocation4 + $0x1d] sm:$0x1] %v1954
    %1968 = vst [vmem:[#allocation4 + $0x25] sm:$0x1] %v1937
    %1969 = vst [vmem:[#allocation4 + $0x2d] sm:$0x1] %v1951
    %1970 = vst [vmem:[#allocation4 + $0x35] sm:$0x1] %v1953
    %1971 = vst [vmem:[#allocation4 + $0x3d] sm:$0x1] %v1955
    %v1973 = vcombine.high %v1568, %v1568
    %v1975 = vunpack.c.l.s4 1966171168
    %v1976 = vunpack.c.0.s8 %v1975
    %v1977 = vlaneseq
    %v1978 = vshrl.u32 %v1977, 7
    %v1979 = vsub.s32 %v1976, %v1978
    %v1980 = vrot.slane %v1568, %v1979
    %v1982 = vunpack.c.l.s4 1966171168
    %v1983 = vunpack.c.0.s8 %v1982
    %v1984 = vlaneseq
    %v1985 = vshrl.u32 %v1984, 7
    %v1986 = vsub.s32 %v1983, %v1985
    %v1987 = vrot.slane %v1973, %v1986
    %v1988 = vcombine.high %v1980, %v1980
    %v1989 = vcombine.high %v1987, %v1987
    %v1991 = vunpack.c.l.s4 1966171168
    %v1992 = vunpack.c.0.s8 %v1991
    %v1993 = vlaneseq
    %v1994 = vshrl.u32 %v1993, 7
    %v1995 = vsub.s32 %v1992, %v1994
    %v1996 = vrot.slane %v1980, %v1995
    %v1998 = vunpack.c.l.s4 1966171168
    %v1999 = vunpack.c.0.s8 %v1998
    %v2000 = vlaneseq
    %v2001 = vshrl.u32 %v2000, 7
    %v2002 = vsub.s32 %v1999, %v2001
    %v2003 = vrot.slane %v1987, %v2002
    %v2005 = vunpack.c.l.s4 1966171168
    %v2006 = vunpack.c.0.s8 %v2005
    %v2007 = vlaneseq
    %v2008 = vshrl.u32 %v2007, 7
    %v2009 = vsub.s32 %v2006, %v2008
    %v2010 = vrot.slane %v1988, %v2009
    %v2012 = vunpack.c.l.s4 1966171168
    %v2013 = vunpack.c.0.s8 %v2012
    %v2014 = vlaneseq
    %v2015 = vshrl.u32 %v2014, 7
    %v2016 = vsub.s32 %v2013, %v2015
    %v2017 = vrot.slane %v1989, %v2016
    %v2018 = vcombine.high %v1996, %v1996
    %v2019 = vcombine.high %v2003, %v2003
    %v2020 = vcombine.high %v2010, %v2010
    %v2021 = vcombine.high %v2017, %v2017
    %2030 = vst [vmem:[#allocation4 + $0x6] sm:$0x1] %v1996
    %2031 = vst [vmem:[#allocation4 + $0xe] sm:$0x1] %v2010
    %2032 = vst [vmem:[#allocation4 + $0x16] sm:$0x1] %v2018
    %2033 = vst [vmem:[#allocation4 + $0x1e] sm:$0x1] %v2020
    %2034 = vst [vmem:[#allocation4 + $0x26] sm:$0x1] %v2003
    %2035 = vst [vmem:[#allocation4 + $0x2e] sm:$0x1] %v2017
    %2036 = vst [vmem:[#allocation4 + $0x36] sm:$0x1] %v2019
    %2037 = vst [vmem:[#allocation4 + $0x3e] sm:$0x1] %v2021
    %v2039 = vcombine.high %v1573, %v1573
    %v2041 = vunpack.c.l.s4 1966171168
    %v2042 = vunpack.c.0.s8 %v2041
    %v2043 = vlaneseq
    %v2044 = vshrl.u32 %v2043, 7
    %v2045 = vsub.s32 %v2042, %v2044
    %v2046 = vrot.slane %v1573, %v2045
    %v2048 = vunpack.c.l.s4 1966171168
    %v2049 = vunpack.c.0.s8 %v2048
    %v2050 = vlaneseq
    %v2051 = vshrl.u32 %v2050, 7
    %v2052 = vsub.s32 %v2049, %v2051
    %v2053 = vrot.slane %v2039, %v2052
    %v2054 = vcombine.high %v2046, %v2046
    %v2055 = vcombine.high %v2053, %v2053
    %v2057 = vunpack.c.l.s4 1966171168
    %v2058 = vunpack.c.0.s8 %v2057
    %v2059 = vlaneseq
    %v2060 = vshrl.u32 %v2059, 7
    %v2061 = vsub.s32 %v2058, %v2060
    %v2062 = vrot.slane %v2046, %v2061
    %v2064 = vunpack.c.l.s4 1966171168
    %v2065 = vunpack.c.0.s8 %v2064
    %v2066 = vlaneseq
    %v2067 = vshrl.u32 %v2066, 7
    %v2068 = vsub.s32 %v2065, %v2067
    %v2069 = vrot.slane %v2053, %v2068
    %v2071 = vunpack.c.l.s4 1966171168
    %v2072 = vunpack.c.0.s8 %v2071
    %v2073 = vlaneseq
    %v2074 = vshrl.u32 %v2073, 7
    %v2075 = vsub.s32 %v2072, %v2074
    %v2076 = vrot.slane %v2054, %v2075
    %v2078 = vunpack.c.l.s4 1966171168
    %v2079 = vunpack.c.0.s8 %v2078
    %v2080 = vlaneseq
    %v2081 = vshrl.u32 %v2080, 7
    %v2082 = vsub.s32 %v2079, %v2081
    %v2083 = vrot.slane %v2055, %v2082
    %v2084 = vcombine.high %v2062, %v2062
    %v2085 = vcombine.high %v2069, %v2069
    %v2086 = vcombine.high %v2076, %v2076
    %v2087 = vcombine.high %v2083, %v2083
    %2096 = vst [vmem:[#allocation4 + $0x7] sm:$0x1] %v2062
    %2097 = vst [vmem:[#allocation4 + $0xf] sm:$0x1] %v2076
    %2098 = vst [vmem:[#allocation4 + $0x17] sm:$0x1] %v2084
    %2099 = vst [vmem:[#allocation4 + $0x1f] sm:$0x1] %v2086
    %2100 = vst [vmem:[#allocation4 + $0x27] sm:$0x1] %v2069
    %2101 = vst [vmem:[#allocation4 + $0x2f] sm:$0x1] %v2083
    %2102 = vst [vmem:[#allocation4 + $0x37] sm:$0x1] %v2085
    %2103 = vst [vmem:[#allocation4 + $0x3f] sm:$0x1] %v2087
    // Predicated region
    $region30: #{seq2seq_decoder_forward.3} parent=1 // pred_check
      _
    $region31: #{seq2seq_decoder_forward.3} parent=1 // pred_check_branch
      %2105 = sbr.rel (0) target = $region33
    $region32: #{seq2seq_decoder_forward.3} parent=1 // pred_region
      %s2107 = ssub.s32 1024, 1024
      %2108 = vsyncadd [#allocation5], %s2107
      %s2109 = sshll.u32 [#allocation4], 4
      %s2110 = int_to_ptr.vmem [resolvable:$true] %s2109
      %2115 = dma.vmem_to_hbm [thread:$0]  %s2110, 1024, %s6, [#allocation5], 128, 128, 8
    $region33: #{seq2seq_decoder_forward.3} parent=1 // pred_fallthru
      _
    // Predicated region
    $region34: #{seq2seq_decoder_forward.3} parent=1 // pred_check
      _
    $region35: #{seq2seq_decoder_forward.3} parent=1 // pred_check_branch
      %2117 = sbr.rel (0) target = $region37
    $region36: #{seq2seq_decoder_forward.3} parent=1 // pred_region
      _
    $region37: #{seq2seq_decoder_forward.3} parent=1 // pred_fallthru
      _
    // Predicated region
    $region38: #{seq2seq_decoder_forward.3} parent=1 // pred_check
      _
    $region39: #{seq2seq_decoder_forward.3} parent=1 // pred_check_branch
      %2119 = sbr.rel (0) target = $region41
    $region40: #{seq2seq_decoder_forward.3} parent=1 // pred_region
      %2120 = dma.done [#allocation5], 1024
    $region41: #{seq2seq_decoder_forward.3} parent=1 // pred_fallthru
      _
    // Predicated region
    $region42: #{seq2seq_decoder_forward.3} parent=1 // pred_check
      _
    $region43: #{seq2seq_decoder_forward.3} parent=1 // pred_check_branch
      %2122 = sbr.rel (0) target = $region45
    $region44: #{seq2seq_decoder_forward.3} parent=1 // pred_region
      _
    $region45: #{seq2seq_decoder_forward.3} parent=1 // pred_fallthru
      _
    %2123 = vsyncpa [#allocation5], 1

</llo_original>
